<compile_context>
chip_gen: v7x
topology: tpu7x:2x2x1
jax: 0.10.0
libtpu: 0.0.40
codegen_flags: <defaults>
</compile_context>

<pallas_src>
import math
import functools

import jax
import jax.numpy as jnp
from jax.experimental import pallas as pl
from jax.experimental.pallas import tpu as pltpu

SQRT2 = math.sqrt(2.0)
INV_SQRT2 = 1.0 / SQRT2
LRELU_SLOPE = 0.2

# blur kernel: make_kernel([1,3,3,1]) (normalized to sum 1) * upsample_factor**2 (=4)
_b = [1.0, 3.0, 3.0, 1.0]
BLUR4 = [[_b[i] * _b[j] / 64.0 * 4.0 for j in range(4)] for i in range(4)]


# ----------------------------------------------------------------------- Pallas kernels
def _acc_taps(w_ref, x_ref, tap_offsets, n_lanes):
    """sum_t  W[t] @ X[:, off_t : off_t + n_lanes], accumulated in f32 on the MXU.

    W is the batch-shared (9, Cout_eff, Cin) bf16 weight (equalized-lr scale folded in),
    X the per-sample style-modulated, zero-padded activation flattened row-major to
    (Cin, Hp*Wp) in bf16.  For tap (ky, kx): off = ky*Wp + kx and
    X[:, off + m*Wp + n] == xpad[:, m+ky, n+kx], so these shifted flat views replace an
    HBM im2col; accumulator column m*Wp + n holds the conv output at pixel (m, n)
    (columns n >= W_out of each row are junk and are sliced off outside the kernel).
    """
    acc = None
    for t, off in enumerate(tap_offsets):
        p = jnp.dot(w_ref[t], x_ref[:, off:off + n_lanes],
                    preferred_element_type=jnp.float32)
        acc = p if acc is None else acc + p
    return acc


def styled_conv_mod_kernel(w_ref, x_ref, d_ref, b_ref, m_ref, o_ref, *,
                           tap_offsets, n_lanes):
    # modulated conv (input pre-modulated) -> * demod -> + bias -> lrelu
    # -> * (sqrt(2) activation gain * next-layer per-channel style modulation)
    acc = _acc_taps(w_ref, x_ref, tap_offsets, n_lanes)
    v = acc * d_ref[...] + b_ref[...]
    act = jnp.where(v >= 0.0, v, LRELU_SLOPE * v)
    o_ref[...] = (act * m_ref[...]).astype(o_ref.dtype)


def styled_conv_residual_kernel(w_ref, x_ref, d_ref, b_ref, s_ref, o_ref, *,
                                tap_offsets, n_lanes):
    # conv2 fused with FusedLeakyReLU and the residual combine:
    #   (skip + lrelu(v)*sqrt2) / sqrt2 == skip * inv_sqrt2 + lrelu(v)
    acc = _acc_taps(w_ref, x_ref, tap_offsets, n_lanes)
    v = acc * d_ref[...] + b_ref[...]
    act = jnp.where(v >= 0.0, v, LRELU_SLOPE * v)
    o_ref[...] = (s_ref[...] * INV_SQRT2 + act).astype(o_ref.dtype)


def skip_conv_lrelu_kernel(w_ref, b_ref, x_ref, o_ref):
    # 1x1 EqualConv2d (no conv bias) + FusedLeakyReLU
    y = jnp.dot(w_ref[...], x_ref[...], preferred_element_type=jnp.float32) + b_ref[...]
    o_ref[...] = jnp.where(y >= 0.0, y, LRELU_SLOPE * y) * SQRT2


# --------------------------------------------------------------------------- wrappers
def _styled_conv(kernel_fn, w_taps, x_flat, dcoef, bias, extra, *, wp, n_rows,
                 out_dtype):
    """Shared pallas_call wrapper for the two fused styled-conv kernels.

    grid=(B,) ("parallel"); the bf16 weight / f32 bias blocks use constant index_maps so
    they stay resident in VMEM across the batch.  At these shapes the whole flat-spatial
    extent (n_rows*wp ~ a few hundred / ~1k lanes) is a single lane-dense tile, so no
    spatial grid axis is added; for large H*W an output-row tile axis would go here.
    `extra` is either a per-channel multiplier (B, Ce, 1) or the residual slab
    (B, Ce, n_lanes).
    """
    B, cin, npf = x_flat.shape
    n_taps, coute, _ = w_taps.shape
    n_lanes = n_rows * wp
    tap_offsets = tuple(ky * wp + kx for ky in range(3) for kx in range(3))
    assert n_taps == len(tap_offsets)
    assert tap_offsets[-1] + n_lanes <= npf  # flat shifted views stay in-bounds

    kern = functools.partial(kernel_fn, tap_offsets=tap_offsets, n_lanes=n_lanes)
    e_lanes = extra.shape[2]

    in_specs = [
        pl.BlockSpec((n_taps, coute, cin), lambda b: (0, 0, 0)),  # weight (batch-shared)
        pl.BlockSpec((None, cin, npf), lambda b: (b, 0, 0)),      # padded activations
        pl.BlockSpec((None, coute, 1), lambda b: (b, 0, 0)),      # demod coefficients
        pl.BlockSpec((coute, 1), lambda b: (0, 0)),               # activation bias
        pl.BlockSpec((None, coute, e_lanes), lambda b: (b, 0, 0)),  # mult or residual
    ]

    return pl.pallas_call(
        kern,
        out_shape=jax.ShapeDtypeStruct((B, coute, n_lanes), out_dtype),
        grid=(B,),
        in_specs=in_specs,
        out_specs=pl.BlockSpec((None, coute, n_lanes), lambda b: (b, 0, 0)),
        compiler_params=pltpu.CompilerParams(dimension_semantics=("parallel",)),
    )(w_taps, x_flat, dcoef, bias, extra)


def skip_conv_lrelu(w, bias, x_flat):
    B, cin, hw = x_flat.shape
    cout = w.shape[0]
    return pl.pallas_call(
        skip_conv_lrelu_kernel,
        out_shape=jax.ShapeDtypeStruct((B, cout, hw), jnp.float32),
        grid=(B,),
        in_specs=[
            pl.BlockSpec((cout, cin), lambda b: (0, 0)),          # weight resident
            pl.BlockSpec((cout, 1), lambda b: (0, 0)),
            pl.BlockSpec((None, cin, hw), lambda b: (b, 0, 0)),
        ],
        out_specs=pl.BlockSpec((None, cout, hw), lambda b: (b, 0, 0)),
        compiler_params=pltpu.CompilerParams(dimension_semantics=("parallel",)),
    )(w, bias, x_flat)


# --------------------------------------------------------------------------- JAX glue
def _conv1_phase_weights(weight1, inch, outch):
    """Fold the stride-2 transposed conv and the 4x4 blur into four 3x3 sub-pixel phase
    kernels:  a1_pre[o, 2M+dm, 2N+dn] = sum_{i,j,k} x[i, M-1+j, N-1+k] * P[dm,dn,o,i,j,k].
    Returns the tap-major weight (9, 4*outch, inch) and per-(o,i) squared weight sums
    (for the demodulation coefficients)."""
    scale1 = 1.0 / math.sqrt(inch * 9)
    w1 = scale1 * weight1                                           # (outch, inch, 3, 3)
    blur = jnp.asarray(BLUR4, jnp.float32)
    blur_r = blur[::-1, ::-1]
    # C6[o,i,S,T] = sum_{a,b} w1[o,i,a,b] * blur[a-S+3, b-T+3],  S = (m - 2h) + 2
    c6 = jnp.zeros((outch, inch, 6, 6), jnp.float32)
    for ka in range(3):
        for kb in range(3):
            c6 = c6.at[:, :, ka:ka + 4, kb:kb + 4].add(
                w1[:, :, ka, kb][..., None, None] * blur_r)
    # phase (dm, dn), tap (j, k) uses C6 at S = 4 - 2j + dm, T = 4 - 2k + dn
    phases = [c6[:, :, 4 + dm::-2, 4 + dn::-2] for dm in (0, 1) for dn in (0, 1)]
    p = jnp.stack(phases, axis=0)                                   # (4, outch, inch, 3, 3)
    w_taps = p.transpose(3, 4, 0, 1, 2).reshape(9, 4 * outch, inch)
    wsq = jnp.sum(w1 * w1, axis=(2, 3))                             # (outch, inch)
    return w_taps, wsq


def _conv2_tap_weights(weight2, outch):
    scale2 = 1.0 / math.sqrt(outch * 9)
    w2 = scale2 * weight2                                           # (outch, outch, 3, 3)
    w_taps = w2.transpose(2, 3, 0, 1).reshape(9, outch, outch)      # tap-major
    wsq = jnp.sum(w2 * w2, axis=(2, 3))
    return w_taps, wsq


def _pad_flatten(x):
    """Zero-pad ((1,2),(1,1)) for a 3x3 / pad-1 conv plus flat-view slack, flatten rows
    (stride Wp = W+2), cast to bf16 (no-op if already bf16)."""
    B, C, H, W = x.shape
    xp = jnp.pad(x, ((0, 0), (0, 0), (1, 2), (1, 1)))
    hp, wp = H + 3, W + 2
    return xp.reshape(B, C, hp * wp).astype(jnp.bfloat16), wp


def _modulate_pad_flatten(x, s):
    """Style-modulate per input channel (fused=False form), then pad + flatten."""
    return _pad_flatten(x * s[:, :, None, None])


def _up2_along(a, axis):
    n = a.shape[axis]
    sl = lambda s, e: jax.lax.slice_in_dim(a, s, e, axis=axis)
    left = jnp.concatenate([sl(0, 1), sl(0, n - 1)], axis=axis)
    right = jnp.concatenate([sl(1, n), sl(n - 1, n)], axis=axis)
    even = 0.25 * left + 0.75 * a
    odd = 0.75 * a + 0.25 * right
    out = jnp.stack([even, odd], axis=axis + 1)
    shape = list(a.shape)
    shape[axis] = 2 * n
    return out.reshape(shape)


def bilinear_up2(x):
    # F.interpolate(scale_factor=2, mode='bilinear', align_corners=False); static slices only
    return _up2_along(_up2_along(x, 2), 3)


def make_params(key, inch, outch, styledim):
    ks = jax.random.split(key, 8)
    return {
        "conv1_weight": jax.random.normal(ks[0], (outch, inch, 3, 3), jnp.float32),
        "mod1_weight": jax.random.normal(ks[1], (inch, styledim), jnp.float32),
        "mod1_bias": jnp.ones((inch,), jnp.float32),            # EqualLinear bias_init=1
        "act1_bias": 0.1 * jax.random.normal(ks[2], (outch,), jnp.float32),
        "conv2_weight": jax.random.normal(ks[3], (outch, outch, 3, 3), jnp.float32),
        "mod2_weight": jax.random.normal(ks[4], (outch, styledim), jnp.float32),
        "mod2_bias": jnp.ones((outch,), jnp.float32),
        "act2_bias": 0.1 * jax.random.normal(ks[5], (outch,), jnp.float32),
        "skip_weight": jax.random.normal(ks[6], (outch, inch), jnp.float32),
        "skip_bias": 0.1 * jax.random.normal(ks[7], (outch,), jnp.float32),
    }


def upsampling_resnet_block(x, style, params, inch, outch, styledim):
    B, _, H, W = x.shape
    f32, bf16 = jnp.float32, jnp.bfloat16

    # style modulation (EqualLinear, lr_mul=1, bias_init=1): tiny glue matmuls
    lin_scale = 1.0 / math.sqrt(styledim)
    s1 = style @ params["mod1_weight"].T * lin_scale + params["mod1_bias"]   # (B, inch)
    s2 = style @ params["mod2_weight"].T * lin_scale + params["mod2_bias"]   # (B, outch)

    # ---- conv1: StyledConv(upsample=True). Transposed conv (stride 2, k=3) + 4x4 blur
    # folded into 4 sub-pixel phase kernels; input-modulation / epilogue-demodulation.
    # The epilogue also applies conv2's input modulation (s2) and emits bf16, so the
    # intermediate needs no further elementwise pass before conv2.
    w1_taps, wsq1 = _conv1_phase_weights(params["conv1_weight"], inch, outch)
    d1 = jax.lax.rsqrt((s1 * s1) @ wsq1.T + 1e-8)                  # (B, outch) demod coefs
    x1_flat, wp1 = _modulate_pad_flatten(x, s1)
    post_mult = SQRT2 * s2                                         # act gain * s2 modulation
    y1 = _styled_conv(
        styled_conv_mod_kernel,
        w1_taps.astype(bf16), x1_flat,
        jnp.tile(d1, (1, 4))[:, :, None].astype(f32),              # one copy per phase
        jnp.tile(params["act1_bias"], 4)[:, None].astype(f32),
        jnp.tile(post_mult, (1, 4))[:, :, None].astype(f32),
        wp=wp1, n_rows=H, out_dtype=bf16)                          # (B, 4*outch, H*wp1)
    # phase interleave: (dm, dn, o, M, N) -> (o, 2M+dm, 2N+dn)  (bf16, half the bytes)
    y1 = y1.reshape(B, 2, 2, outch, H, wp1)[:, :, :, :, :, :W]
    a1 = y1.transpose(0, 3, 4, 1, 5, 2).reshape(B, outch, 2 * H, 2 * W)

    # ---- skip: 1x1 EqualConv2d (no bias) + FusedLeakyReLU if inch != outch (Identity
    # otherwise, as in the reference), then bilinear x2 (align_corners=False).
    if inch != outch:
        skip_w = (params["skip_weight"] * (1.0 / math.sqrt(inch))).astype(bf16)
        sk = skip_conv_lrelu(skip_w,
                             params["skip_bias"][:, None].astype(f32),
                             x.astype(bf16).reshape(B, inch, H * W))
        sk = sk.reshape(B, outch, H, W)
    else:
        sk = x
    sk_up = bilinear_up2(sk)                                       # (B, outch, 2H, 2W)
    # TODO(synk): fuse the bilinear x2 skip upsample into the conv2 epilogue to avoid
    # materializing the upsampled skip in HBM.

    # ---- conv2: modulated 3x3 conv (pad 1), fused with bias + lrelu + residual combine
    # (sqrt2 gain and 1/sqrt2 residual scale folded algebraically in the kernel).
    w2_taps, wsq2 = _conv2_tap_weights(params["conv2_weight"], outch)
    d2 = jax.lax.rsqrt((s2 * s2) @ wsq2.T + 1e-8)                  # (B, outch)
    x2_flat, wp2 = _pad_flatten(a1)                                # a1 already s2-modulated
    sk_flat = jnp.pad(sk_up, ((0, 0), (0, 0), (0, 0), (0, wp2 - 2 * W)))
    sk_flat = sk_flat.reshape(B, outch, 2 * H * wp2).astype(f32)
    out_flat = _styled_conv(
        styled_conv_residual_kernel,
        w2_taps.astype(bf16), x2_flat,
        d2[:, :, None].astype(f32),
        params["act2_bias"][:, None].astype(f32),
        sk_flat, wp=wp2, n_rows=2 * H, out_dtype=f32)              # (B, outch, 2H*wp2)
    out = out_flat.reshape(B, outch, 2 * H, wp2)[:, :, :, :2 * W]
    return out


if __name__ == "__main__":
    B, inch, outch, styledim, H, W = 2, 4, 8, 8, 16, 16
    key = jax.random.PRNGKey(0)
    kx, kst, kp = jax.random.split(key, 3)
    x = jax.random.normal(kx, (B, inch, H, W), jnp.float32)
    style = jax.random.normal(kst, (B, styledim), jnp.float32)
    params = make_params(kp, inch, outch, styledim)

    fwd = jax.jit(functools.partial(upsampling_resnet_block,
                                    inch=inch, outch=outch, styledim=styledim))
    out = fwd(x, style, params)
    out = jax.block_until_ready(out)

    assert out.shape == (B, outch, 2 * H, 2 * W), out.shape
    assert bool(jnp.all(jnp.isfinite(out)))
    print("KERNEL_OK")
</pallas_src>

<mosaic_0001>
module attributes {stable_mosaic.version = 11 : i64} {
  func.func @skip_conv_lrelu_kernel(%arg0: i32, %arg1: memref<8x4xbf16, #tpu.memory_space<vmem>>, %arg2: memref<8x1xf32, #tpu.memory_space<vmem>>, %arg3: memref<1x4x256xbf16, #tpu.memory_space<vmem>>, %arg4: memref<1x8x256xf32, #tpu.memory_space<vmem>>) attributes {dimension_semantics = [#tpu.dimension_semantics<parallel>], iteration_bounds = array<i64: 2>, scalar_prefetch = 0 : i64, scratch_operands = 0 : i64, tpu.core_type = #tpu.core_type<tc>, window_params = [{pipeline_mode = #tpu.pipeline_mode<synchronous>, transform_indices = @transform_0, window_bounds = array<i64: 8, 4>}, {pipeline_mode = #tpu.pipeline_mode<synchronous>, transform_indices = @transform_1, window_bounds = array<i64: 8, 1>}, {transform_indices = @transform_2, window_bounds = array<i64: 1, 4, 256>}, {transform_indices = @transform_3, window_bounds = array<i64: 1, 8, 256>}]} {
    %c0 = arith.constant 0 : index
    %c0_0 = arith.constant 0 : index
    %0 = vector.load %arg1[%c0, %c0_0] : memref<8x4xbf16, #tpu.memory_space<vmem>>, vector<8x4xbf16>
    %c0_1 = arith.constant 0 : index
    %c0_2 = arith.constant 0 : index
    %c0_3 = arith.constant 0 : index
    %1 = vector.load %arg3[%c0_1, %c0_2, %c0_3] : memref<1x4x256xbf16, #tpu.memory_space<vmem>>, vector<1x4x256xbf16>
    %2 = vector.shape_cast %1 : vector<1x4x256xbf16> to vector<4x256xbf16>
    %cst = arith.constant dense<0.000000e+00> : vector<8x256xf32>
    %3 = tpu.matmul %0, %2, %cst {dimension_numbers = #tpu.dot_dimension_numbers<[1], [0], [0], [1], [0, 0, 1, 1], [], []>} : vector<8x4xbf16>, vector<4x256xbf16>, vector<8x256xf32> -> vector<8x256xf32>
    %c0_4 = arith.constant 0 : index
    %c0_5 = arith.constant 0 : index
    %4 = vector.load %arg2[%c0_4, %c0_5] : memref<8x1xf32, #tpu.memory_space<vmem>>, vector<8x1xf32>
    %5 = vector.broadcast %4 : vector<8x1xf32> to vector<8x256xf32>
    %6 = arith.addf %3, %5 : vector<8x256xf32>
    %cst_6 = arith.constant 0.000000e+00 : f32
    %7 = vector.broadcast %cst_6 : f32 to vector<8x256xf32>
    %8 = arith.cmpf oge, %6, %7 : vector<8x256xf32>
    %cst_7 = arith.constant 2.000000e-01 : f32
    %9 = vector.broadcast %cst_7 : f32 to vector<8x256xf32>
    %10 = arith.mulf %9, %6 : vector<8x256xf32>
    %11 = arith.select %8, %6, %10 : vector<8x256xi1>, vector<8x256xf32>
    %cst_8 = arith.constant 1.41421354 : f32
    %12 = vector.broadcast %cst_8 : f32 to vector<8x256xf32>
    %13 = arith.mulf %11, %12 : vector<8x256xf32>
    %c0_9 = arith.constant 0 : index
    %c0_10 = arith.constant 0 : index
    %c0_11 = arith.constant 0 : index
    %14 = vector.load %arg4[%c0_9, %c0_10, %c0_11] : memref<1x8x256xf32, #tpu.memory_space<vmem>>, vector<1x8x256xf32>
    %15 = vector.shape_cast %14 : vector<1x8x256xf32> to vector<8x256xf32>
    %16 = vector.shape_cast %13 : vector<8x256xf32> to vector<1x8x256xf32>
    tpu.vector_store %arg4[%c0_9, %c0_10, %c0_11], %16 {strides = array<i32>} : memref<1x8x256xf32, #tpu.memory_space<vmem>>, vector<1x8x256xf32>,
    return
  }
  func.func @transform_0(%arg0: i32) -> (i32, i32) {
    %c0_i32 = arith.constant 0 : i32
    %c0_i32_0 = arith.constant 0 : i32
    %c0_i32_1 = arith.constant 0 : i32
    return %c0_i32, %c0_i32_0 : i32, i32
  }
  func.func @transform_1(%arg0: i32) -> (i32, i32) {
    %c0_i32 = arith.constant 0 : i32
    %c0_i32_0 = arith.constant 0 : i32
    %c0_i32_1 = arith.constant 0 : i32
    return %c0_i32, %c0_i32_0 : i32, i32
  }
  func.func @transform_2(%arg0: i32) -> (i32, i32, i32) {
    %c0_i32 = arith.constant 0 : i32
    %c0_i32_0 = arith.constant 0 : i32
    %c0_i32_1 = arith.constant 0 : i32
    return %arg0, %c0_i32, %c0_i32_0 : i32, i32, i32
  }
  func.func @transform_3(%arg0: i32) -> (i32, i32, i32) {
    %c0_i32 = arith.constant 0 : i32
    %c0_i32_0 = arith.constant 0 : i32
    %c0_i32_1 = arith.constant 0 : i32
    return %arg0, %c0_i32, %c0_i32_0 : i32, i32, i32
  }
}

module attributes {stable_mosaic.version = 11 : i64} {
  func.func @styled_conv_mod_kernel(%arg0: i32, %arg1: memref<9x32x4xbf16, #tpu.memory_space<vmem>>, %arg2: memref<1x4x342xbf16, #tpu.memory_space<vmem>>, %arg3: memref<1x32x1xf32, #tpu.memory_space<vmem>>, %arg4: memref<32x1xf32, #tpu.memory_space<vmem>>, %arg5: memref<1x32x1xf32, #tpu.memory_space<vmem>>, %arg6: memref<1x32x288xbf16, #tpu.memory_space<vmem>>) attributes {dimension_semantics = [#tpu.dimension_semantics<parallel>], iteration_bounds = array<i64: 2>, scalar_prefetch = 0 : i64, scratch_operands = 0 : i64, tpu.core_type = #tpu.core_type<tc>, window_params = [{pipeline_mode = #tpu.pipeline_mode<synchronous>, transform_indices = @transform_0, window_bounds = array<i64: 9, 32, 4>}, {transform_indices = @transform_1, window_bounds = array<i64: 1, 4, 342>}, {transform_indices = @transform_2, window_bounds = array<i64: 1, 32, 1>}, {pipeline_mode = #tpu.pipeline_mode<synchronous>, transform_indices = @transform_3, window_bounds = array<i64: 32, 1>}, {transform_indices = @transform_4, window_bounds = array<i64: 1, 32, 1>}, {transform_indices = @transform_5, window_bounds = array<i64: 1, 32, 288>}]} {
    %c0 = arith.constant 0 : index
    %c0_0 = arith.constant 0 : index
    %c0_1 = arith.constant 0 : index
    %0 = vector.load %arg1[%c0, %c0_0, %c0_1] : memref<9x32x4xbf16, #tpu.memory_space<vmem>>, vector<1x32x4xbf16>
    %1 = vector.shape_cast %0 : vector<1x32x4xbf16> to vector<32x4xbf16>
    %c0_2 = arith.constant 0 : index
    %c0_3 = arith.constant 0 : index
    %c0_4 = arith.constant 0 : index
    %2 = vector.load %arg2[%c0_2, %c0_3, %c0_4] : memref<1x4x342xbf16, #tpu.memory_space<vmem>>, vector<1x4x288xbf16>
    %3 = vector.shape_cast %2 : vector<1x4x288xbf16> to vector<4x288xbf16>
    %cst = arith.constant dense<0.000000e+00> : vector<32x288xf32>
    %4 = tpu.matmul %1, %3, %cst {dimension_numbers = #tpu.dot_dimension_numbers<[1], [0], [0], [1], [0, 0, 1, 1], [], []>} : vector<32x4xbf16>, vector<4x288xbf16>, vector<32x288xf32> -> vector<32x288xf32>
    %c1 = arith.constant 1 : index
    %c0_5 = arith.constant 0 : index
    %c0_6 = arith.constant 0 : index
    %5 = vector.load %arg1[%c1, %c0_5, %c0_6] : memref<9x32x4xbf16, #tpu.memory_space<vmem>>, vector<1x32x4xbf16>
    %6 = vector.shape_cast %5 : vector<1x32x4xbf16> to vector<32x4xbf16>
    %c0_7 = arith.constant 0 : index
    %c0_8 = arith.constant 0 : index
    %c1_9 = arith.constant 1 : index
    %7 = vector.load %arg2[%c0_7, %c0_8, %c1_9] : memref<1x4x342xbf16, #tpu.memory_space<vmem>>, vector<1x4x288xbf16>
    %8 = vector.shape_cast %7 : vector<1x4x288xbf16> to vector<4x288xbf16>
    %cst_10 = arith.constant dense<0.000000e+00> : vector<32x288xf32>
    %9 = tpu.matmul %6, %8, %cst_10 {dimension_numbers = #tpu.dot_dimension_numbers<[1], [0], [0], [1], [0, 0, 1, 1], [], []>} : vector<32x4xbf16>, vector<4x288xbf16>, vector<32x288xf32> -> vector<32x288xf32>
    %10 = arith.addf %4, %9 : vector<32x288xf32>
    %c2 = arith.constant 2 : index
    %c0_11 = arith.constant 0 : index
    %c0_12 = arith.constant 0 : index
    %11 = vector.load %arg1[%c2, %c0_11, %c0_12] : memref<9x32x4xbf16, #tpu.memory_space<vmem>>, vector<1x32x4xbf16>
    %12 = vector.shape_cast %11 : vector<1x32x4xbf16> to vector<32x4xbf16>
    %c0_13 = arith.constant 0 : index
    %c0_14 = arith.constant 0 : index
    %c2_15 = arith.constant 2 : index
    %13 = vector.load %arg2[%c0_13, %c0_14, %c2_15] : memref<1x4x342xbf16, #tpu.memory_space<vmem>>, vector<1x4x288xbf16>
    %14 = vector.shape_cast %13 : vector<1x4x288xbf16> to vector<4x288xbf16>
    %cst_16 = arith.constant dense<0.000000e+00> : vector<32x288xf32>
    %15 = tpu.matmul %12, %14, %cst_16 {dimension_numbers = #tpu.dot_dimension_numbers<[1], [0], [0], [1], [0, 0, 1, 1], [], []>} : vector<32x4xbf16>, vector<4x288xbf16>, vector<32x288xf32> -> vector<32x288xf32>
    %16 = arith.addf %10, %15 : vector<32x288xf32>
    %c3 = arith.constant 3 : index
    %c0_17 = arith.constant 0 : index
    %c0_18 = arith.constant 0 : index
    %17 = vector.load %arg1[%c3, %c0_17, %c0_18] : memref<9x32x4xbf16, #tpu.memory_space<vmem>>, vector<1x32x4xbf16>
    %18 = vector.shape_cast %17 : vector<1x32x4xbf16> to vector<32x4xbf16>
    %c0_19 = arith.constant 0 : index
    %c0_20 = arith.constant 0 : index
    %c18 = arith.constant 18 : index
    %19 = vector.load %arg2[%c0_19, %c0_20, %c18] : memref<1x4x342xbf16, #tpu.memory_space<vmem>>, vector<1x4x288xbf16>
    %20 = vector.shape_cast %19 : vector<1x4x288xbf16> to vector<4x288xbf16>
    %cst_21 = arith.constant dense<0.000000e+00> : vector<32x288xf32>
    %21 = tpu.matmul %18, %20, %cst_21 {dimension_numbers = #tpu.dot_dimension_numbers<[1], [0], [0], [1], [0, 0, 1, 1], [], []>} : vector<32x4xbf16>, vector<4x288xbf16>, vector<32x288xf32> -> vector<32x288xf32>
    %22 = arith.addf %16, %21 : vector<32x288xf32>
    %c4 = arith.constant 4 : index
    %c0_22 = arith.constant 0 : index
    %c0_23 = arith.constant 0 : index
    %23 = vector.load %arg1[%c4, %c0_22, %c0_23] : memref<9x32x4xbf16, #tpu.memory_space<vmem>>, vector<1x32x4xbf16>
    %24 = vector.shape_cast %23 : vector<1x32x4xbf16> to vector<32x4xbf16>
    %c0_24 = arith.constant 0 : index
    %c0_25 = arith.constant 0 : index
    %c19 = arith.constant 19 : index
    %25 = vector.load %arg2[%c0_24, %c0_25, %c19] : memref<1x4x342xbf16, #tpu.memory_space<vmem>>, vector<1x4x288xbf16>
    %26 = vector.shape_cast %25 : vector<1x4x288xbf16> to vector<4x288xbf16>
    %cst_26 = arith.constant dense<0.000000e+00> : vector<32x288xf32>
    %27 = tpu.matmul %24, %26, %cst_26 {dimension_numbers = #tpu.dot_dimension_numbers<[1], [0], [0], [1], [0, 0, 1, 1], [], []>} : vector<32x4xbf16>, vector<4x288xbf16>, vector<32x288xf32> -> vector<32x288xf32>
    %28 = arith.addf %22, %27 : vector<32x288xf32>
    %c5 = arith.constant 5 : index
    %c0_27 = arith.constant 0 : index
    %c0_28 = arith.constant 0 : index
    %29 = vector.load %arg1[%c5, %c0_27, %c0_28] : memref<9x32x4xbf16, #tpu.memory_space<vmem>>, vector<1x32x4xbf16>
    %30 = vector.shape_cast %29 : vector<1x32x4xbf16> to vector<32x4xbf16>
    %c0_29 = arith.constant 0 : index
    %c0_30 = arith.constant 0 : index
    %c20 = arith.constant 20 : index
    %31 = vector.load %arg2[%c0_29, %c0_30, %c20] : memref<1x4x342xbf16, #tpu.memory_space<vmem>>, vector<1x4x288xbf16>
    %32 = vector.shape_cast %31 : vector<1x4x288xbf16> to vector<4x288xbf16>
    %cst_31 = arith.constant dense<0.000000e+00> : vector<32x288xf32>
    %33 = tpu.matmul %30, %32, %cst_31 {dimension_numbers = #tpu.dot_dimension_numbers<[1], [0], [0], [1], [0, 0, 1, 1], [], []>} : vector<32x4xbf16>, vector<4x288xbf16>, vector<32x288xf32> -> vector<32x288xf32>
    %34 = arith.addf %28, %33 : vector<32x288xf32>
    %c6 = arith.constant 6 : index
    %c0_32 = arith.constant 0 : index
    %c0_33 = arith.constant 0 : index
    %35 = vector.load %arg1[%c6, %c0_32, %c0_33] : memref<9x32x4xbf16, #tpu.memory_space<vmem>>, vector<1x32x4xbf16>
    %36 = vector.shape_cast %35 : vector<1x32x4xbf16> to vector<32x4xbf16>
    %c0_34 = arith.constant 0 : index
    %c0_35 = arith.constant 0 : index
    %c36 = arith.constant 36 : index
    %37 = vector.load %arg2[%c0_34, %c0_35, %c36] : memref<1x4x342xbf16, #tpu.memory_space<vmem>>, vector<1x4x288xbf16>
    %38 = vector.shape_cast %37 : vector<1x4x288xbf16> to vector<4x288xbf16>
    %cst_36 = arith.constant dense<0.000000e+00> : vector<32x288xf32>
    %39 = tpu.matmul %36, %38, %cst_36 {dimension_numbers = #tpu.dot_dimension_numbers<[1], [0], [0], [1], [0, 0, 1, 1], [], []>} : vector<32x4xbf16>, vector<4x288xbf16>, vector<32x288xf32> -> vector<32x288xf32>
    %40 = arith.addf %34, %39 : vector<32x288xf32>
    %c7 = arith.constant 7 : index
    %c0_37 = arith.constant 0 : index
    %c0_38 = arith.constant 0 : index
    %41 = vector.load %arg1[%c7, %c0_37, %c0_38] : memref<9x32x4xbf16, #tpu.memory_space<vmem>>, vector<1x32x4xbf16>
    %42 = vector.shape_cast %41 : vector<1x32x4xbf16> to vector<32x4xbf16>
    %c0_39 = arith.constant 0 : index
    %c0_40 = arith.constant 0 : index
    %c37 = arith.constant 37 : index
    %43 = vector.load %arg2[%c0_39, %c0_40, %c37] : memref<1x4x342xbf16, #tpu.memory_space<vmem>>, vector<1x4x288xbf16>
    %44 = vector.shape_cast %43 : vector<1x4x288xbf16> to vector<4x288xbf16>
    %cst_41 = arith.constant dense<0.000000e+00> : vector<32x288xf32>
    %45 = tpu.matmul %42, %44, %cst_41 {dimension_numbers = #tpu.dot_dimension_numbers<[1], [0], [0], [1], [0, 0, 1, 1], [], []>} : vector<32x4xbf16>, vector<4x288xbf16>, vector<32x288xf32> -> vector<32x288xf32>
    %46 = arith.addf %40, %45 : vector<32x288xf32>
    %c8 = arith.constant 8 : index
    %c0_42 = arith.constant 0 : index
    %c0_43 = arith.constant 0 : index
    %47 = vector.load %arg1[%c8, %c0_42, %c0_43] : memref<9x32x4xbf16, #tpu.memory_space<vmem>>, vector<1x32x4xbf16>
    %48 = vector.shape_cast %47 : vector<1x32x4xbf16> to vector<32x4xbf16>
    %c0_44 = arith.constant 0 : index
    %c0_45 = arith.constant 0 : index
    %c38 = arith.constant 38 : index
    %49 = vector.load %arg2[%c0_44, %c0_45, %c38] : memref<1x4x342xbf16, #tpu.memory_space<vmem>>, vector<1x4x288xbf16>
    %50 = vector.shape_cast %49 : vector<1x4x288xbf16> to vector<4x288xbf16>
    %cst_46 = arith.constant dense<0.000000e+00> : vector<32x288xf32>
    %51 = tpu.matmul %48, %50, %cst_46 {dimension_numbers = #tpu.dot_dimension_numbers<[1], [0], [0], [1], [0, 0, 1, 1], [], []>} : vector<32x4xbf16>, vector<4x288xbf16>, vector<32x288xf32> -> vector<32x288xf32>
    %52 = arith.addf %46, %51 : vector<32x288xf32>
    %c0_47 = arith.constant 0 : index
    %c0_48 = arith.constant 0 : index
    %c0_49 = arith.constant 0 : index
    %53 = vector.load %arg3[%c0_47, %c0_48, %c0_49] : memref<1x32x1xf32, #tpu.memory_space<vmem>>, vector<1x32x1xf32>
    %54 = vector.shape_cast %53 : vector<1x32x1xf32> to vector<32x1xf32>
    %55 = vector.broadcast %54 : vector<32x1xf32> to vector<32x288xf32>
    %56 = arith.mulf %52, %55 : vector<32x288xf32>
    %c0_50 = arith.constant 0 : index
    %c0_51 = arith.constant 0 : index
    %57 = vector.load %arg4[%c0_50, %c0_51] : memref<32x1xf32, #tpu.memory_space<vmem>>, vector<32x1xf32>
    %58 = vector.broadcast %57 : vector<32x1xf32> to vector<32x288xf32>
    %59 = arith.addf %56, %58 : vector<32x288xf32>
    %cst_52 = arith.constant 0.000000e+00 : f32
    %60 = vector.broadcast %cst_52 : f32 to vector<32x288xf32>
    %61 = arith.cmpf oge, %59, %60 : vector<32x288xf32>
    %cst_53 = arith.constant 2.000000e-01 : f32
    %62 = vector.broadcast %cst_53 : f32 to vector<32x288xf32>
    %63 = arith.mulf %62, %59 : vector<32x288xf32>
    %64 = arith.select %61, %59, %63 : vector<32x288xi1>, vector<32x288xf32>
    %c0_54 = arith.constant 0 : index
    %c0_55 = arith.constant 0 : index
    %c0_56 = arith.constant 0 : index
    %65 = vector.load %arg5[%c0_54, %c0_55, %c0_56] : memref<1x32x1xf32, #tpu.memory_space<vmem>>, vector<1x32x1xf32>
    %66 = vector.shape_cast %65 : vector<1x32x1xf32> to vector<32x1xf32>
    %67 = vector.broadcast %66 : vector<32x1xf32> to vector<32x288xf32>
    %68 = arith.mulf %64, %67 : vector<32x288xf32>
    %69 = arith.truncf %68 : vector<32x288xf32> to vector<32x288xbf16>
    %c0_57 = arith.constant 0 : index
    %c0_58 = arith.constant 0 : index
    %c0_59 = arith.constant 0 : index
    %70 = vector.load %arg6[%c0_57, %c0_58, %c0_59] : memref<1x32x288xbf16, #tpu.memory_space<vmem>>, vector<1x32x288xbf16>
    %71 = vector.shape_cast %70 : vector<1x32x288xbf16> to vector<32x288xbf16>
    %72 = vector.shape_cast %69 : vector<32x288xbf16> to vector<1x32x288xbf16>
    tpu.vector_store %arg6[%c0_57, %c0_58, %c0_59], %72 {strides = array<i32>} : memref<1x32x288xbf16, #tpu.memory_space<vmem>>, vector<1x32x288xbf16>,
    return
  }
  func.func @transform_0(%arg0: i32) -> (i32, i32, i32) {
    %c0_i32 = arith.constant 0 : i32
    %c0_i32_0 = arith.constant 0 : i32
    %c0_i32_1 = arith.constant 0 : i32
    %c0_i32_2 = arith.constant 0 : i32
    return %c0_i32, %c0_i32_0, %c0_i32_1 : i32, i32, i32
  }
  func.func @transform_1(%arg0: i32) -> (i32, i32, i32) {
    %c0_i32 = arith.constant 0 : i32
    %c0_i32_0 = arith.constant 0 : i32
    %c0_i32_1 = arith.constant 0 : i32
    return %arg0, %c0_i32, %c0_i32_0 : i32, i32, i32
  }
  func.func @transform_2(%arg0: i32) -> (i32, i32, i32) {
    %c0_i32 = arith.constant 0 : i32
    %c0_i32_0 = arith.constant 0 : i32
    %c0_i32_1 = arith.constant 0 : i32
    return %arg0, %c0_i32, %c0_i32_0 : i32, i32, i32
  }
  func.func @transform_3(%arg0: i32) -> (i32, i32) {
    %c0_i32 = arith.constant 0 : i32
    %c0_i32_0 = arith.constant 0 : i32
    %c0_i32_1 = arith.constant 0 : i32
    return %c0_i32, %c0_i32_0 : i32, i32
  }
  func.func @transform_4(%arg0: i32) -> (i32, i32, i32) {
    %c0_i32 = arith.constant 0 : i32
    %c0_i32_0 = arith.constant 0 : i32
    %c0_i32_1 = arith.constant 0 : i32
    return %arg0, %c0_i32, %c0_i32_0 : i32, i32, i32
  }
  func.func @transform_5(%arg0: i32) -> (i32, i32, i32) {
    %c0_i32 = arith.constant 0 : i32
    %c0_i32_0 = arith.constant 0 : i32
    %c0_i32_1 = arith.constant 0 : i32
    return %arg0, %c0_i32, %c0_i32_0 : i32, i32, i32
  }
}

module attributes {stable_mosaic.version = 11 : i64} {
  func.func @styled_conv_residual_kernel(%arg0: i32, %arg1: memref<9x8x8xbf16, #tpu.memory_space<vmem>>, %arg2: memref<1x8x1190xbf16, #tpu.memory_space<vmem>>, %arg3: memref<1x8x1xf32, #tpu.memory_space<vmem>>, %arg4: memref<8x1xf32, #tpu.memory_space<vmem>>, %arg5: memref<1x8x1088xf32, #tpu.memory_space<vmem>>, %arg6: memref<1x8x1088xf32, #tpu.memory_space<vmem>>) attributes {dimension_semantics = [#tpu.dimension_semantics<parallel>], iteration_bounds = array<i64: 2>, scalar_prefetch = 0 : i64, scratch_operands = 0 : i64, tpu.core_type = #tpu.core_type<tc>, window_params = [{pipeline_mode = #tpu.pipeline_mode<synchronous>, transform_indices = @transform_0, window_bounds = array<i64: 9, 8, 8>}, {transform_indices = @transform_1, window_bounds = array<i64: 1, 8, 1190>}, {transform_indices = @transform_2, window_bounds = array<i64: 1, 8, 1>}, {pipeline_mode = #tpu.pipeline_mode<synchronous>, transform_indices = @transform_3, window_bounds = array<i64: 8, 1>}, {transform_indices = @transform_4, window_bounds = array<i64: 1, 8, 1088>}, {transform_indices = @transform_5, window_bounds = array<i64: 1, 8, 1088>}]} {
    %c0 = arith.constant 0 : index
    %c0_0 = arith.constant 0 : index
    %c0_1 = arith.constant 0 : index
    %0 = vector.load %arg1[%c0, %c0_0, %c0_1] : memref<9x8x8xbf16, #tpu.memory_space<vmem>>, vector<1x8x8xbf16>
    %1 = vector.shape_cast %0 : vector<1x8x8xbf16> to vector<8x8xbf16>
    %c0_2 = arith.constant 0 : index
    %c0_3 = arith.constant 0 : index
    %c0_4 = arith.constant 0 : index
    %2 = vector.load %arg2[%c0_2, %c0_3, %c0_4] : memref<1x8x1190xbf16, #tpu.memory_space<vmem>>, vector<1x8x1088xbf16>
    %3 = vector.shape_cast %2 : vector<1x8x1088xbf16> to vector<8x1088xbf16>
    %cst = arith.constant dense<0.000000e+00> : vector<8x1088xf32>
    %4 = tpu.matmul %1, %3, %cst {dimension_numbers = #tpu.dot_dimension_numbers<[1], [0], [0], [1], [0, 0, 1, 1], [], []>} : vector<8x8xbf16>, vector<8x1088xbf16>, vector<8x1088xf32> -> vector<8x1088xf32>
    %c1 = arith.constant 1 : index
    %c0_5 = arith.constant 0 : index
    %c0_6 = arith.constant 0 : index
    %5 = vector.load %arg1[%c1, %c0_5, %c0_6] : memref<9x8x8xbf16, #tpu.memory_space<vmem>>, vector<1x8x8xbf16>
    %6 = vector.shape_cast %5 : vector<1x8x8xbf16> to vector<8x8xbf16>
    %c0_7 = arith.constant 0 : index
    %c0_8 = arith.constant 0 : index
    %c1_9 = arith.constant 1 : index
    %7 = vector.load %arg2[%c0_7, %c0_8, %c1_9] : memref<1x8x1190xbf16, #tpu.memory_space<vmem>>, vector<1x8x1088xbf16>
    %8 = vector.shape_cast %7 : vector<1x8x1088xbf16> to vector<8x1088xbf16>
    %cst_10 = arith.constant dense<0.000000e+00> : vector<8x1088xf32>
    %9 = tpu.matmul %6, %8, %cst_10 {dimension_numbers = #tpu.dot_dimension_numbers<[1], [0], [0], [1], [0, 0, 1, 1], [], []>} : vector<8x8xbf16>, vector<8x1088xbf16>, vector<8x1088xf32> -> vector<8x1088xf32>
    %10 = arith.addf %4, %9 : vector<8x1088xf32>
    %c2 = arith.constant 2 : index
    %c0_11 = arith.constant 0 : index
    %c0_12 = arith.constant 0 : index
    %11 = vector.load %arg1[%c2, %c0_11, %c0_12] : memref<9x8x8xbf16, #tpu.memory_space<vmem>>, vector<1x8x8xbf16>
    %12 = vector.shape_cast %11 : vector<1x8x8xbf16> to vector<8x8xbf16>
    %c0_13 = arith.constant 0 : index
    %c0_14 = arith.constant 0 : index
    %c2_15 = arith.constant 2 : index
    %13 = vector.load %arg2[%c0_13, %c0_14, %c2_15] : memref<1x8x1190xbf16, #tpu.memory_space<vmem>>, vector<1x8x1088xbf16>
    %14 = vector.shape_cast %13 : vector<1x8x1088xbf16> to vector<8x1088xbf16>
    %cst_16 = arith.constant dense<0.000000e+00> : vector<8x1088xf32>
    %15 = tpu.matmul %12, %14, %cst_16 {dimension_numbers = #tpu.dot_dimension_numbers<[1], [0], [0], [1], [0, 0, 1, 1], [], []>} : vector<8x8xbf16>, vector<8x1088xbf16>, vector<8x1088xf32> -> vector<8x1088xf32>
    %16 = arith.addf %10, %15 : vector<8x1088xf32>
    %c3 = arith.constant 3 : index
    %c0_17 = arith.constant 0 : index
    %c0_18 = arith.constant 0 : index
    %17 = vector.load %arg1[%c3, %c0_17, %c0_18] : memref<9x8x8xbf16, #tpu.memory_space<vmem>>, vector<1x8x8xbf16>
    %18 = vector.shape_cast %17 : vector<1x8x8xbf16> to vector<8x8xbf16>
    %c0_19 = arith.constant 0 : index
    %c0_20 = arith.constant 0 : index
    %c34 = arith.constant 34 : index
    %19 = vector.load %arg2[%c0_19, %c0_20, %c34] : memref<1x8x1190xbf16, #tpu.memory_space<vmem>>, vector<1x8x1088xbf16>
    %20 = vector.shape_cast %19 : vector<1x8x1088xbf16> to vector<8x1088xbf16>
    %cst_21 = arith.constant dense<0.000000e+00> : vector<8x1088xf32>
    %21 = tpu.matmul %18, %20, %cst_21 {dimension_numbers = #tpu.dot_dimension_numbers<[1], [0], [0], [1], [0, 0, 1, 1], [], []>} : vector<8x8xbf16>, vector<8x1088xbf16>, vector<8x1088xf32> -> vector<8x1088xf32>
    %22 = arith.addf %16, %21 : vector<8x1088xf32>
    %c4 = arith.constant 4 : index
    %c0_22 = arith.constant 0 : index
    %c0_23 = arith.constant 0 : index
    %23 = vector.load %arg1[%c4, %c0_22, %c0_23] : memref<9x8x8xbf16, #tpu.memory_space<vmem>>, vector<1x8x8xbf16>
    %24 = vector.shape_cast %23 : vector<1x8x8xbf16> to vector<8x8xbf16>
    %c0_24 = arith.constant 0 : index
    %c0_25 = arith.constant 0 : index
    %c35 = arith.constant 35 : index
    %25 = vector.load %arg2[%c0_24, %c0_25, %c35] : memref<1x8x1190xbf16, #tpu.memory_space<vmem>>, vector<1x8x1088xbf16>
    %26 = vector.shape_cast %25 : vector<1x8x1088xbf16> to vector<8x1088xbf16>
    %cst_26 = arith.constant dense<0.000000e+00> : vector<8x1088xf32>
    %27 = tpu.matmul %24, %26, %cst_26 {dimension_numbers = #tpu.dot_dimension_numbers<[1], [0], [0], [1], [0, 0, 1, 1], [], []>} : vector<8x8xbf16>, vector<8x1088xbf16>, vector<8x1088xf32> -> vector<8x1088xf32>
    %28 = arith.addf %22, %27 : vector<8x1088xf32>
    %c5 = arith.constant 5 : index
    %c0_27 = arith.constant 0 : index
    %c0_28 = arith.constant 0 : index
    %29 = vector.load %arg1[%c5, %c0_27, %c0_28] : memref<9x8x8xbf16, #tpu.memory_space<vmem>>, vector<1x8x8xbf16>
    %30 = vector.shape_cast %29 : vector<1x8x8xbf16> to vector<8x8xbf16>
    %c0_29 = arith.constant 0 : index
    %c0_30 = arith.constant 0 : index
    %c36 = arith.constant 36 : index
    %31 = vector.load %arg2[%c0_29, %c0_30, %c36] : memref<1x8x1190xbf16, #tpu.memory_space<vmem>>, vector<1x8x1088xbf16>
    %32 = vector.shape_cast %31 : vector<1x8x1088xbf16> to vector<8x1088xbf16>
    %cst_31 = arith.constant dense<0.000000e+00> : vector<8x1088xf32>
    %33 = tpu.matmul %30, %32, %cst_31 {dimension_numbers = #tpu.dot_dimension_numbers<[1], [0], [0], [1], [0, 0, 1, 1], [], []>} : vector<8x8xbf16>, vector<8x1088xbf16>, vector<8x1088xf32> -> vector<8x1088xf32>
    %34 = arith.addf %28, %33 : vector<8x1088xf32>
    %c6 = arith.constant 6 : index
    %c0_32 = arith.constant 0 : index
    %c0_33 = arith.constant 0 : index
    %35 = vector.load %arg1[%c6, %c0_32, %c0_33] : memref<9x8x8xbf16, #tpu.memory_space<vmem>>, vector<1x8x8xbf16>
    %36 = vector.shape_cast %35 : vector<1x8x8xbf16> to vector<8x8xbf16>
    %c0_34 = arith.constant 0 : index
    %c0_35 = arith.constant 0 : index
    %c68 = arith.constant 68 : index
    %37 = vector.load %arg2[%c0_34, %c0_35, %c68] : memref<1x8x1190xbf16, #tpu.memory_space<vmem>>, vector<1x8x1088xbf16>
    %38 = vector.shape_cast %37 : vector<1x8x1088xbf16> to vector<8x1088xbf16>
    %cst_36 = arith.constant dense<0.000000e+00> : vector<8x1088xf32>
    %39 = tpu.matmul %36, %38, %cst_36 {dimension_numbers = #tpu.dot_dimension_numbers<[1], [0], [0], [1], [0, 0, 1, 1], [], []>} : vector<8x8xbf16>, vector<8x1088xbf16>, vector<8x1088xf32> -> vector<8x1088xf32>
    %40 = arith.addf %34, %39 : vector<8x1088xf32>
    %c7 = arith.constant 7 : index
    %c0_37 = arith.constant 0 : index
    %c0_38 = arith.constant 0 : index
    %41 = vector.load %arg1[%c7, %c0_37, %c0_38] : memref<9x8x8xbf16, #tpu.memory_space<vmem>>, vector<1x8x8xbf16>
    %42 = vector.shape_cast %41 : vector<1x8x8xbf16> to vector<8x8xbf16>
    %c0_39 = arith.constant 0 : index
    %c0_40 = arith.constant 0 : index
    %c69 = arith.constant 69 : index
    %43 = vector.load %arg2[%c0_39, %c0_40, %c69] : memref<1x8x1190xbf16, #tpu.memory_space<vmem>>, vector<1x8x1088xbf16>
    %44 = vector.shape_cast %43 : vector<1x8x1088xbf16> to vector<8x1088xbf16>
    %cst_41 = arith.constant dense<0.000000e+00> : vector<8x1088xf32>
    %45 = tpu.matmul %42, %44, %cst_41 {dimension_numbers = #tpu.dot_dimension_numbers<[1], [0], [0], [1], [0, 0, 1, 1], [], []>} : vector<8x8xbf16>, vector<8x1088xbf16>, vector<8x1088xf32> -> vector<8x1088xf32>
    %46 = arith.addf %40, %45 : vector<8x1088xf32>
    %c8 = arith.constant 8 : index
    %c0_42 = arith.constant 0 : index
    %c0_43 = arith.constant 0 : index
    %47 = vector.load %arg1[%c8, %c0_42, %c0_43] : memref<9x8x8xbf16, #tpu.memory_space<vmem>>, vector<1x8x8xbf16>
    %48 = vector.shape_cast %47 : vector<1x8x8xbf16> to vector<8x8xbf16>
    %c0_44 = arith.constant 0 : index
    %c0_45 = arith.constant 0 : index
    %c70 = arith.constant 70 : index
    %49 = vector.load %arg2[%c0_44, %c0_45, %c70] : memref<1x8x1190xbf16, #tpu.memory_space<vmem>>, vector<1x8x1088xbf16>
    %50 = vector.shape_cast %49 : vector<1x8x1088xbf16> to vector<8x1088xbf16>
    %cst_46 = arith.constant dense<0.000000e+00> : vector<8x1088xf32>
    %51 = tpu.matmul %48, %50, %cst_46 {dimension_numbers = #tpu.dot_dimension_numbers<[1], [0], [0], [1], [0, 0, 1, 1], [], []>} : vector<8x8xbf16>, vector<8x1088xbf16>, vector<8x1088xf32> -> vector<8x1088xf32>
    %52 = arith.addf %46, %51 : vector<8x1088xf32>
    %c0_47 = arith.constant 0 : index
    %c0_48 = arith.constant 0 : index
    %c0_49 = arith.constant 0 : index
    %53 = vector.load %arg3[%c0_47, %c0_48, %c0_49] : memref<1x8x1xf32, #tpu.memory_space<vmem>>, vector<1x8x1xf32>
    %54 = vector.shape_cast %53 : vector<1x8x1xf32> to vector<8x1xf32>
    %55 = vector.broadcast %54 : vector<8x1xf32> to vector<8x1088xf32>
    %56 = arith.mulf %52, %55 : vector<8x1088xf32>
    %c0_50 = arith.constant 0 : index
    %c0_51 = arith.constant 0 : index
    %57 = vector.load %arg4[%c0_50, %c0_51] : memref<8x1xf32, #tpu.memory_space<vmem>>, vector<8x1xf32>
    %58 = vector.broadcast %57 : vector<8x1xf32> to vector<8x1088xf32>
    %59 = arith.addf %56, %58 : vector<8x1088xf32>
    %cst_52 = arith.constant 0.000000e+00 : f32
    %60 = vector.broadcast %cst_52 : f32 to vector<8x1088xf32>
    %61 = arith.cmpf oge, %59, %60 : vector<8x1088xf32>
    %cst_53 = arith.constant 2.000000e-01 : f32
    %62 = vector.broadcast %cst_53 : f32 to vector<8x1088xf32>
    %63 = arith.mulf %62, %59 : vector<8x1088xf32>
    %64 = arith.select %61, %59, %63 : vector<8x1088xi1>, vector<8x1088xf32>
    %c0_54 = arith.constant 0 : index
    %c0_55 = arith.constant 0 : index
    %c0_56 = arith.constant 0 : index
    %65 = vector.load %arg5[%c0_54, %c0_55, %c0_56] : memref<1x8x1088xf32, #tpu.memory_space<vmem>>, vector<1x8x1088xf32>
    %66 = vector.shape_cast %65 : vector<1x8x1088xf32> to vector<8x1088xf32>
    %cst_57 = arith.constant 0.707106769 : f32
    %67 = vector.broadcast %cst_57 : f32 to vector<8x1088xf32>
    %68 = arith.mulf %66, %67 : vector<8x1088xf32>
    %69 = arith.addf %68, %64 : vector<8x1088xf32>
    %c0_58 = arith.constant 0 : index
    %c0_59 = arith.constant 0 : index
    %c0_60 = arith.constant 0 : index
    %70 = vector.load %arg6[%c0_58, %c0_59, %c0_60] : memref<1x8x1088xf32, #tpu.memory_space<vmem>>, vector<1x8x1088xf32>
    %71 = vector.shape_cast %70 : vector<1x8x1088xf32> to vector<8x1088xf32>
    %72 = vector.shape_cast %69 : vector<8x1088xf32> to vector<1x8x1088xf32>
    tpu.vector_store %arg6[%c0_58, %c0_59, %c0_60], %72 {strides = array<i32>} : memref<1x8x1088xf32, #tpu.memory_space<vmem>>, vector<1x8x1088xf32>,
    return
  }
  func.func @transform_0(%arg0: i32) -> (i32, i32, i32) {
    %c0_i32 = arith.constant 0 : i32
    %c0_i32_0 = arith.constant 0 : i32
    %c0_i32_1 = arith.constant 0 : i32
    %c0_i32_2 = arith.constant 0 : i32
    return %c0_i32, %c0_i32_0, %c0_i32_1 : i32, i32, i32
  }
  func.func @transform_1(%arg0: i32) -> (i32, i32, i32) {
    %c0_i32 = arith.constant 0 : i32
    %c0_i32_0 = arith.constant 0 : i32
    %c0_i32_1 = arith.constant 0 : i32
    return %arg0, %c0_i32, %c0_i32_0 : i32, i32, i32
  }
  func.func @transform_2(%arg0: i32) -> (i32, i32, i32) {
    %c0_i32 = arith.constant 0 : i32
    %c0_i32_0 = arith.constant 0 : i32
    %c0_i32_1 = arith.constant 0 : i32
    return %arg0, %c0_i32, %c0_i32_0 : i32, i32, i32
  }
  func.func @transform_3(%arg0: i32) -> (i32, i32) {
    %c0_i32 = arith.constant 0 : i32
    %c0_i32_0 = arith.constant 0 : i32
    %c0_i32_1 = arith.constant 0 : i32
    return %c0_i32, %c0_i32_0 : i32, i32
  }
  func.func @transform_4(%arg0: i32) -> (i32, i32, i32) {
    %c0_i32 = arith.constant 0 : i32
    %c0_i32_0 = arith.constant 0 : i32
    %c0_i32_1 = arith.constant 0 : i32
    return %arg0, %c0_i32, %c0_i32_0 : i32, i32, i32
  }
  func.func @transform_5(%arg0: i32) -> (i32, i32, i32) {
    %c0_i32 = arith.constant 0 : i32
    %c0_i32_0 = arith.constant 0 : i32
    %c0_i32_1 = arith.constant 0 : i32
    return %arg0, %c0_i32, %c0_i32_0 : i32, i32, i32
  }
}

</mosaic_0001>

<llo_original>
// kernel: upsampling_resnet_block.4
$region0: #{upsampling_resnet_block.4}
  #allocation0 [shape = 'u32[]', space=smem, size = 0x4, offset = 0x4, fixed_abs, tag = 'smem constant byte address 0x4 - core index']
  #allocation1 [shape = 'u32[144,128]{1,0:T(1,128)}', space=vmem, size = 0x12000, scoped, tag = 'internal scratch']
  %s0 = inlined_call_operand.vmem [shape: bf16[8,4], index: 0, kind: input, shape index: {}]
  %s1 = inlined_call_operand.vmem [shape: f32[8,1], index: 1, kind: input, shape index: {}]
  %s2 = inlined_call_operand.vmem [shape: bf16[2,4,256], index: 2, kind: input, shape index: {}]
  %s3 = inlined_call_operand.vmem [shape: f32[2,8,256], index: 3, kind: output, shape index: {}]
  %s4 = sld [smem:[#allocation0]]
  $region45: #{upsampling_resnet_block.4} parent=0
    _
  %s6 = ssub.s32 1, %s4
  %s7 = scalar_select 0, %s6, %s4
  loop: start=0, step=1, limit=4
  $region2: #{upsampling_resnet_block.4} parent=0 // loop_pre_header
    _
  $region3: #{upsampling_resnet_block.4} parent=0 // loop_header
    %s9 = sphi 0, %s13
    %p10 = scmp.ge.s32.totalorder %s9, 4
    %s17 = sphi 0, %s17
    %s19 = sphi 0, %s17
    %s20 = sphi 0, %s19
    %s34 = sphi 0, %s20
    %s38 = sphi 0, %s38
    %s40 = sphi 0, %s38
    %s41 = sphi 0, %s40
    %s55 = sphi 0, %s41
    %s61 = sphi 0, %s63
    %s64 = sphi 0, %s61
    %s65 = sphi 0, %s64
    %s81 = sphi 0, %s65
    %s87 = sphi 0, %s89
    %s90 = sphi 0, %s87
    %s91 = sphi 0, %s90
    %s107 = sphi 0, %s91
  $region4: #{upsampling_resnet_block.4} parent=0 // loop_header_branch
    %12 = sbr.rel (%p10) target = $region8
  $region5: #{upsampling_resnet_block.4} parent=0 // loop_body
    %s14 = ssub.s32 %s9, 1
    %s15 = ssub.s32 %s9, 2
    %s16 = sadd.s32 %s9, 1
    %s18 = sadd.s32 %s17, 1
    %p21 = scmp.eq.s32.totalorder %s9, 1
    %p22 = scmp.ne.s32.totalorder %s17, %s19
    %p23 = scmp.eq.s32.totalorder %s9, 0
    %p24 = por %p22, %p23
    %p25 = scmp.ne.s32.totalorder %s17, %s19
    %p26 = scmp.eq.s32.totalorder %s14, 1
    %p27 = por %p25, %p26
    %p28 = scmp.ne.s32.totalorder %s19, %s20
    %p29 = scmp.eq.s32.totalorder %s14, 0
    %p30 = por %p28, %p29
    %p31 = scmp.ne.s32.totalorder %s19, %s20
    %p32 = scmp.eq.s32.totalorder %s15, 1
    %p33 = por %p31, %p32
    %p35 = scmp.ne.s32.totalorder %s20, %s34
    %p36 = scmp.eq.s32.totalorder %s15, 0
    %p37 = por %p35, %p36
    %s39 = sadd.s32 %s38, 1
    %p42 = scmp.eq.s32.totalorder %s9, 1
    %p43 = scmp.ne.s32.totalorder %s38, %s40
    %p44 = scmp.eq.s32.totalorder %s9, 0
    %p45 = por %p43, %p44
    %p46 = scmp.ne.s32.totalorder %s38, %s40
    %p47 = scmp.eq.s32.totalorder %s14, 1
    %p48 = por %p46, %p47
    %p49 = scmp.ne.s32.totalorder %s40, %s41
    %p50 = scmp.eq.s32.totalorder %s14, 0
    %p51 = por %p49, %p50
    %p52 = scmp.ne.s32.totalorder %s40, %s41
    %p53 = scmp.eq.s32.totalorder %s15, 1
    %p54 = por %p52, %p53
    %p56 = scmp.ne.s32.totalorder %s41, %s55
    %p57 = scmp.eq.s32.totalorder %s15, 0
    %p58 = por %p56, %p57
    %s59 = ssub.s32 %s9, %s16
    %p60 = scmp.eq.s32.totalorder %s59, 0
    %s62 = sadd.s32 %s61, 1
    %s63 = scalar_select %p60, %s61, %s62
    %p66 = pneg %p60
    %p67 = scmp.eq.s32.totalorder %s9, 1
    %p68 = por %p66, %p67
    %p69 = scmp.ne.s32.totalorder %s61, %s64
    %p70 = scmp.eq.s32.totalorder %s9, 0
    %p71 = por %p69, %p70
    %p72 = scmp.ne.s32.totalorder %s61, %s64
    %p73 = scmp.eq.s32.totalorder %s14, 1
    %p74 = por %p72, %p73
    %p75 = scmp.ne.s32.totalorder %s64, %s65
    %p76 = scmp.eq.s32.totalorder %s14, 0
    %p77 = por %p75, %p76
    %p78 = scmp.ne.s32.totalorder %s64, %s65
    %p79 = scmp.eq.s32.totalorder %s15, 1
    %p80 = por %p78, %p79
    %p82 = scmp.ne.s32.totalorder %s65, %s81
    %p83 = scmp.eq.s32.totalorder %s15, 0
    %p84 = por %p82, %p83
    %s85 = ssub.s32 %s9, %s16
    %p86 = scmp.eq.s32.totalorder %s85, 0
    %s88 = sadd.s32 %s87, 1
    %s89 = scalar_select %p86, %s87, %s88
    %p92 = pneg %p86
    %p93 = scmp.eq.s32.totalorder %s9, 1
    %p94 = por %p92, %p93
    %p95 = scmp.ne.s32.totalorder %s87, %s90
    %p96 = scmp.eq.s32.totalorder %s9, 0
    %p97 = por %p95, %p96
    %p98 = scmp.ne.s32.totalorder %s87, %s90
    %p99 = scmp.eq.s32.totalorder %s14, 1
    %p100 = por %p98, %p99
    %p101 = scmp.ne.s32.totalorder %s90, %s91
    %p102 = scmp.eq.s32.totalorder %s14, 0
    %p103 = por %p101, %p102
    %p104 = scmp.ne.s32.totalorder %s90, %s91
    %p105 = scmp.eq.s32.totalorder %s15, 1
    %p106 = por %p104, %p105
    %p108 = scmp.ne.s32.totalorder %s91, %s107
    %p109 = scmp.eq.s32.totalorder %s15, 0
    %p110 = por %p108, %p109
    %p111 = scmp.le.s32.totalorder 1, %s9
    %p112 = scmp.lt.s32.totalorder %s9, 3
    %p113 = pnand %p111, %p112
    %p114 = pneg %p113
    // Predicated region
    $region9: #{upsampling_resnet_block.4} parent=5 // pred_check
      _
    $region10: #{upsampling_resnet_block.4} parent=5 // pred_check_branch
      %116 = sbr.rel (%p113) target = $region12
    $region11: #{upsampling_resnet_block.4} parent=5 // pred_region
      %s117 = ssub.s32 %s9, 1
      // Predicated region
      $region13: #{upsampling_resnet_block.4} parent=11 // pred_check
        %p118 = pneg %p30
      $region14: #{upsampling_resnet_block.4} parent=11 // pred_check_branch
        %120 = sbr.rel (%p118) target = $region16
      $region15: #{upsampling_resnet_block.4} parent=11 // pred_region
        _
      $region16: #{upsampling_resnet_block.4} parent=11 // pred_fallthru
        _
      // Predicated region
      $region17: #{upsampling_resnet_block.4} parent=11 // pred_check
        %p121 = pneg %p51
      $region18: #{upsampling_resnet_block.4} parent=11 // pred_check_branch
        %123 = sbr.rel (%p121) target = $region20
      $region19: #{upsampling_resnet_block.4} parent=11 // pred_region
        _
      $region20: #{upsampling_resnet_block.4} parent=11 // pred_fallthru
        _
    $region12: #{upsampling_resnet_block.4} parent=5 // pred_fallthru
      _
    %p124 = scmp.lt.s32.totalorder %s9, 2
    // Predicated region
    $region21: #{upsampling_resnet_block.4} parent=5 // pred_check
      %p125 = pneg %p124
    $region22: #{upsampling_resnet_block.4} parent=5 // pred_check_branch
      %127 = sbr.rel (%p125) target = $region24
    $region23: #{upsampling_resnet_block.4} parent=5 // pred_region
      // Predicated region
      $region25: #{upsampling_resnet_block.4} parent=23 // pred_check
        %p128 = pneg %p71
      $region26: #{upsampling_resnet_block.4} parent=23 // pred_check_branch
        %130 = sbr.rel (%p128) target = $region28
      $region27: #{upsampling_resnet_block.4} parent=23 // pred_region
        %p131 = scmp.lt.s32.totalorder %s9, 1
        %s132 = scalar_select %p131, %s9, 1
        %s133 = smul.addr %s132, 2
        %s134 = smul.addr %s133, 2
        %s135 = scalar_lea.vmem %s2, %s134
      $region28: #{upsampling_resnet_block.4} parent=23 // pred_fallthru
        _
    $region24: #{upsampling_resnet_block.4} parent=5 // pred_fallthru
      _
    %p136 = scmp.le.s32.totalorder 1, %s9
    %p137 = scmp.lt.s32.totalorder %s9, 3
    %p138 = pnand %p136, %p137
    %p139 = pneg %p138
    // Predicated region
    $region29: #{upsampling_resnet_block.4} parent=5 // pred_check
      _
    $region30: #{upsampling_resnet_block.4} parent=5 // pred_check_branch
      %141 = sbr.rel (%p138) target = $region32
    $region31: #{upsampling_resnet_block.4} parent=5 // pred_region
      %s142 = ssub.s32 %s9, 1
      %p143 = pneg %p30
      %p144 = pneg %p27
      %p145 = pneg %p51
      %p146 = pneg %p48
      %p147 = scmp.lt.s32.totalorder %s14, 1
      %s148 = scalar_select %p147, %s14, 1
      %s149 = smul.addr %s148, 2
      %s150 = smul.addr %s149, 2
      %s151 = scalar_lea.vmem %s2, %s150
      %p152 = pneg %p77
      %p153 = pneg %p74
      %p154 = pneg %p103
      %p155 = pneg %p100
      %p156 = scmp.lt.s32.totalorder %s14, 1
      %s157 = scalar_select %p156, %s14, 1
      %s158 = smul.addr %s157, 2
      %s159 = smul.addr %s158, 8
      %s160 = scalar_lea.vmem %s3, %s159
      %p161 = scmp.lt.s32.totalorder %s14, 1
      %s162 = scalar_select %p161, %s14, 1
      %s163 = smul.addr %s162, 2
      %s164 = smul.addr %s163, 2
      %s165 = scalar_lea.vmem %s2, %s164
      %p166 = scmp.lt.s32.totalorder %s14, 1
      %s167 = scalar_select %p166, %s14, 1
      %s168 = smul.addr %s167, 2
      %s169 = smul.addr %s168, 8
      %s170 = scalar_lea.vmem %s3, %s169
      %v172 = vld [vmem:[%s0] sm:$0xf]
      %v173 = vld [vmem:[%s165] sm:$0xf]
      %v174 = vld [vmem:[%s1] sm:$0xff]
      %176 = vset.pattern.permute.xlu0 0
      %177 = vperm.xlu0 %176, %v174
      %v178 = vpop.permute.xlu0 %177
      %v182 = vunpack.c.l.s4 1983009808
      %v183 = vunpack.c.0.s8 %v182
      %v184 = vlaneseq
      %v185 = vshrl.u32 %v184, 7
      %v186 = vsub.s32 %v183, %v185
      %v187 = vrot.slane %v173, %v186
      %v188 = vcombine.high %v187, %v187
      %vm189 = vcmask 31744
      %v191 = vsel %vm189, %v172, 0
      %vm193 = vcmask 1041408
      %v195 = vsel %vm193, %v187, 0
      %v198 = vsel %vm193, %v188, 0
      %200 = vmatprep.subr.bf16.mxu0 %v198
      %201 = vmatpush1.bf16.msra.mxu0 %v195
      %202 = vmatprep.subr.bf16.mxu0 0
      %203 = vmatpush1.bf16.msra.mxu0 0
      %204 = vmatprep.subr.bf16.mxu0 0
      %205 = vmatpush1.bf16.msra.mxu0 0
      %206 = vmatprep.subr.bf16.mxu0 0
      %207 = vmatpush1.bf16.msra.mxu0 0
      %208 = vmatprep.subr.bf16.mxu0 0
      %209 = vmatpush1.bf16.msra.mxu0 0
      %210 = vmatprep.subr.bf16.mxu0 0
      %211 = vmatpush1.bf16.msra.mxu0 0
      %212 = vmatprep.subr.bf16.mxu0 0
      %213 = vmatpush1.bf16.msra.mxu0 0
      %214 = vmatprep.subr.bf16.mxu0 0
      %215 = vmatpush1.bf16.msra.mxu0 0
      %216 = vmatprep.subr.bf16.mxu0 0
      %217 = vmatpush1.bf16.msra.mxu0 0
      %218 = vmatprep.subr.bf16.mxu0 0
      %219 = vmatpush1.bf16.msra.mxu0 0
      %220 = vmatprep.subr.bf16.mxu0 0
      %221 = vmatpush1.bf16.msra.mxu0 0
      %222 = vmatprep.subr.bf16.mxu0 0
      %223 = vmatpush1.bf16.msra.mxu0 0
      %224 = vmatprep.subr.bf16.mxu0 0
      %225 = vmatpush1.bf16.msra.mxu0 0
      %226 = vmatprep.subr.bf16.mxu0 0
      %227 = vmatpush1.bf16.msra.mxu0 0
      %228 = vmatprep.subr.bf16.mxu0 0
      %229 = vmatpush1.bf16.msra.mxu0 0
      %230 = vmatprep.subr.bf16.mxu0 0
      %231 = vmatpush1.bf16.msra.mxu0 0
      %232 = vmatprep.mubr.bf16.mxu0 0
      %233 = vmatmul.mubr.bf16.gmra.mrb[0].mxu0 %v191
      %v234 = vpop.f32.mrb[0].mxu0
      %v235 = vadd.f32 %v178, %v234
      %v236 = vpop.f32.mrb[0].mxu0
      %v237 = vadd.f32 %v178, %v236
      %v238 = vpop.f32.mrb[0].mxu0
      %v239 = vpop.f32.mrb[0].mxu0
      %240 = vdwg.mxu0
      %vm241 = vcmp.ge.f32.partialorder %v235, 0.0
      %vm242 = vcmp.ge.f32.partialorder %v237, 0.0
      %v243 = vmul.f32 %v235, 0.2
      %v244 = vmul.f32 %v237, 0.2
      %v245 = vsel %vm241, %v235, %v243
      %v246 = vsel %vm242, %v237, %v244
      %v247 = vmul.f32 %v245, 1.4142135
      %v248 = vmul.f32 %v246, 1.4142135
      %249 = vst [vmem:[%s170] sm:$0xff] %v247
      %250 = vst [vmem:[%s170 + $0x8] sm:$0xff] %v248
      %p251 = scmp.lt.s32.totalorder %s14, 1
      %s252 = scalar_select %p251, %s14, 1
      %s253 = smul.addr %s252, 2
      %s254 = smul.addr %s253, 8
      %s255 = scalar_lea.vmem %s3, %s254
      // Predicated region
      $region33: #{upsampling_resnet_block.4} parent=31 // pred_check
        %p256 = pneg %p100
      $region34: #{upsampling_resnet_block.4} parent=31 // pred_check_branch
        %258 = sbr.rel (%p256) target = $region36
      $region35: #{upsampling_resnet_block.4} parent=31 // pred_region
        _
      $region36: #{upsampling_resnet_block.4} parent=31 // pred_fallthru
        _
    $region32: #{upsampling_resnet_block.4} parent=5 // pred_fallthru
      _
    %p259 = scmp.le.s32.totalorder 2, %s9
    // Predicated region
    $region37: #{upsampling_resnet_block.4} parent=5 // pred_check
      %p260 = pneg %p259
    $region38: #{upsampling_resnet_block.4} parent=5 // pred_check_branch
      %262 = sbr.rel (%p260) target = $region40
    $region39: #{upsampling_resnet_block.4} parent=5 // pred_region
      %s263 = ssub.s32 %s9, 2
      // Predicated region
      $region41: #{upsampling_resnet_block.4} parent=39 // pred_check
        %p264 = pneg %p106
      $region42: #{upsampling_resnet_block.4} parent=39 // pred_check_branch
        %266 = sbr.rel (%p264) target = $region44
      $region43: #{upsampling_resnet_block.4} parent=39 // pred_region
        %p267 = scmp.lt.s32.totalorder %s15, 1
        %s268 = scalar_select %p267, %s15, 1
        %s269 = smul.addr %s268, 2
        %s270 = smul.addr %s269, 8
        %s271 = scalar_lea.vmem %s3, %s270
      $region44: #{upsampling_resnet_block.4} parent=39 // pred_fallthru
        _
    $region40: #{upsampling_resnet_block.4} parent=5 // pred_fallthru
      _
  $region6: #{upsampling_resnet_block.4} parent=0 // loop_footer
    %s13 = sadd.s32 1, %s9
  $region7: #{upsampling_resnet_block.4} parent=0 // loop_footer_branch
    %8 = sbr.rel target = $region3
  $region8: #{upsampling_resnet_block.4} parent=0 // loop_exit
    _

// kernel: tile.23
$region0: #{tile.23}
  #allocation0 [shape = 's32[1]{0}', space=sflag, size = 0x4, scoped, tag = 'scoped memory for tile.23']
  %s0 = inlined_call_operand.vmem [shape: f32[8], index: 0, kind: input, shape index: {}]
  %s1 = inlined_call_operand.vmem [shape: f32[4,8], index: 1, kind: output, shape index: {}]
  // Predicated region
  $region2: #{tile.23} parent=0 // pred_check
    _
  $region3: #{tile.23} parent=0 // pred_check_branch
    %3 = sbr.rel (0) target = $region5
  $region4: #{tile.23} parent=0 // pred_region
    _
  $region5: #{tile.23} parent=0 // pred_fallthru
    _
  %v4 = vld [vmem:[%s0] ss:$0 sm:$0xff]
  %5 = vst [vmem:[%s1] sm:$0xf] %v4

// kernel: tile.0
$region0: #{tile.0}
  %s0 = inlined_call_operand.vmem [shape: f32[4,8], index: 0, kind: input, shape index: {}]
  %s1 = inlined_call_operand.vmem [shape: f32[32,1], index: 1, kind: output, shape index: {}]
  $region1: #{tile.0} parent=0
    #allocation0 [shape = 'u8[4096]{0}', space=vmem, size = 0x1000, scoped, tag = 'scoped mem for input reshape']
    %s3 = sshllo.u32 0, 4
    %v4 = vld [vmem:[%s0] sm:%s3]
    %5 = vst [vmem:[#allocation0] sm:%s3] %v4
    %v6 = vld [vmem:[#allocation0] sm:$0xf]
    %vm7 = vcmask 7168
    %8 = vst.msk [vmem:[%s1] ss:$8 sm:$0xf] %vm7, %v6
    %v9 = vld [vmem:[#allocation0] sm:$0xf]
    %10 = vrot.lane.b32.xlu0 %v9, 127
    %v11 = vpop.permute.xlu0 %10
    %vm12 = vcmask 7168
    %s13 = scalar_lea.vmem %s1, 1
    %14 = vst.msk [vmem:[%s13] ss:$8 sm:$0xf] %vm12, %v11
    %v15 = vld [vmem:[#allocation0] sm:$0xf]
    %16 = vrot.lane.b32.xlu0 %v15, 126
    %v17 = vpop.permute.xlu0 %16
    %vm18 = vcmask 7168
    %s19 = scalar_lea.vmem %s1, 2
    %20 = vst.msk [vmem:[%s19] ss:$8 sm:$0xf] %vm18, %v17
    %v21 = vld [vmem:[#allocation0] sm:$0xf]
    %22 = vrot.lane.b32.xlu0 %v21, 125
    %v23 = vpop.permute.xlu0 %22
    %vm24 = vcmask 7168
    %s25 = scalar_lea.vmem %s1, 3
    %26 = vst.msk [vmem:[%s25] ss:$8 sm:$0xf] %vm24, %v23
    %v27 = vld [vmem:[#allocation0] sm:$0xf]
    %28 = vrot.lane.b32.xlu0 %v27, 124
    %v29 = vpop.permute.xlu0 %28
    %vm30 = vcmask 7168
    %s31 = scalar_lea.vmem %s1, 4
    %32 = vst.msk [vmem:[%s31] ss:$8 sm:$0xf] %vm30, %v29
    %v33 = vld [vmem:[#allocation0] sm:$0xf]
    %34 = vrot.lane.b32.xlu0 %v33, 123
    %v35 = vpop.permute.xlu0 %34
    %vm36 = vcmask 7168
    %s37 = scalar_lea.vmem %s1, 5
    %38 = vst.msk [vmem:[%s37] ss:$8 sm:$0xf] %vm36, %v35
    %v39 = vld [vmem:[#allocation0] sm:$0xf]
    %40 = vrot.lane.b32.xlu0 %v39, 122
    %v41 = vpop.permute.xlu0 %40
    %vm42 = vcmask 7168
    %s43 = scalar_lea.vmem %s1, 6
    %44 = vst.msk [vmem:[%s43] ss:$8 sm:$0xf] %vm42, %v41
    %v45 = vld [vmem:[#allocation0] sm:$0xf]
    %46 = vrot.lane.b32.xlu0 %v45, 121
    %v47 = vpop.permute.xlu0 %46
    %vm48 = vcmask 7168
    %s49 = scalar_lea.vmem %s1, 7
    %50 = vst.msk [vmem:[%s49] ss:$8 sm:$0xf] %vm48, %v47

// kernel: upsampling_resnet_block.3
$region0: #{upsampling_resnet_block.3}
  #allocation0 [shape = 'u32[]', space=smem, size = 0x4, offset = 0x4, fixed_abs, tag = 'smem constant byte address 0x4 - core index']
  #allocation1 [shape = 'u32[144,128]{1,0:T(1,128)}', space=vmem, size = 0x12000, scoped, tag = 'internal scratch']
  %s0 = inlined_call_operand.vmem [shape: bf16[9,32,4], index: 0, kind: input, shape index: {}]
  %s1 = inlined_call_operand.vmem [shape: bf16[2,4,342], index: 1, kind: input, shape index: {}]
  %s2 = inlined_call_operand.vmem [shape: f32[2,32,1], index: 2, kind: input, shape index: {}]
  %s3 = inlined_call_operand.vmem [shape: f32[32,1], index: 3, kind: input, shape index: {}]
  %s4 = inlined_call_operand.vmem [shape: f32[2,32,1], index: 4, kind: input, shape index: {}]
  %s5 = inlined_call_operand.vmem [shape: bf16[2,32,288], index: 5, kind: output, shape index: {}]
  %s6 = sld [smem:[#allocation0]]
  $region53: #{upsampling_resnet_block.3} parent=0
    _
  %s8 = ssub.s32 1, %s6
  %s9 = scalar_select 0, %s8, %s6
  loop: start=0, step=1, limit=4
  $region2: #{upsampling_resnet_block.3} parent=0 // loop_pre_header
    _
  $region3: #{upsampling_resnet_block.3} parent=0 // loop_header
    %s11 = sphi 0, %s15
    %p12 = scmp.ge.s32.totalorder %s11, 4
    %s19 = sphi 0, %s19
    %s21 = sphi 0, %s19
    %s22 = sphi 0, %s21
    %s36 = sphi 0, %s22
    %s42 = sphi 0, %s44
    %s45 = sphi 0, %s42
    %s46 = sphi 0, %s45
    %s62 = sphi 0, %s46
    %s68 = sphi 0, %s70
    %s71 = sphi 0, %s68
    %s72 = sphi 0, %s71
    %s88 = sphi 0, %s72
    %s92 = sphi 0, %s92
    %s94 = sphi 0, %s92
    %s95 = sphi 0, %s94
    %s109 = sphi 0, %s95
    %s115 = sphi 0, %s117
    %s118 = sphi 0, %s115
    %s119 = sphi 0, %s118
    %s135 = sphi 0, %s119
    %s141 = sphi 0, %s143
    %s144 = sphi 0, %s141
    %s145 = sphi 0, %s144
    %s161 = sphi 0, %s145
  $region4: #{upsampling_resnet_block.3} parent=0 // loop_header_branch
    %14 = sbr.rel (%p12) target = $region8
  $region5: #{upsampling_resnet_block.3} parent=0 // loop_body
    %s16 = ssub.s32 %s11, 1
    %s17 = ssub.s32 %s11, 2
    %s18 = sadd.s32 %s11, 1
    %s20 = sadd.s32 %s19, 1
    %p23 = scmp.eq.s32.totalorder %s11, 1
    %p24 = scmp.ne.s32.totalorder %s19, %s21
    %p25 = scmp.eq.s32.totalorder %s11, 0
    %p26 = por %p24, %p25
    %p27 = scmp.ne.s32.totalorder %s19, %s21
    %p28 = scmp.eq.s32.totalorder %s16, 1
    %p29 = por %p27, %p28
    %p30 = scmp.ne.s32.totalorder %s21, %s22
    %p31 = scmp.eq.s32.totalorder %s16, 0
    %p32 = por %p30, %p31
    %p33 = scmp.ne.s32.totalorder %s21, %s22
    %p34 = scmp.eq.s32.totalorder %s17, 1
    %p35 = por %p33, %p34
    %p37 = scmp.ne.s32.totalorder %s22, %s36
    %p38 = scmp.eq.s32.totalorder %s17, 0
    %p39 = por %p37, %p38
    %s40 = ssub.s32 %s11, %s18
    %p41 = scmp.eq.s32.totalorder %s40, 0
    %s43 = sadd.s32 %s42, 1
    %s44 = scalar_select %p41, %s42, %s43
    %p47 = pneg %p41
    %p48 = scmp.eq.s32.totalorder %s11, 1
    %p49 = por %p47, %p48
    %p50 = scmp.ne.s32.totalorder %s42, %s45
    %p51 = scmp.eq.s32.totalorder %s11, 0
    %p52 = por %p50, %p51
    %p53 = scmp.ne.s32.totalorder %s42, %s45
    %p54 = scmp.eq.s32.totalorder %s16, 1
    %p55 = por %p53, %p54
    %p56 = scmp.ne.s32.totalorder %s45, %s46
    %p57 = scmp.eq.s32.totalorder %s16, 0
    %p58 = por %p56, %p57
    %p59 = scmp.ne.s32.totalorder %s45, %s46
    %p60 = scmp.eq.s32.totalorder %s17, 1
    %p61 = por %p59, %p60
    %p63 = scmp.ne.s32.totalorder %s46, %s62
    %p64 = scmp.eq.s32.totalorder %s17, 0
    %p65 = por %p63, %p64
    %s66 = ssub.s32 %s11, %s18
    %p67 = scmp.eq.s32.totalorder %s66, 0
    %s69 = sadd.s32 %s68, 1
    %s70 = scalar_select %p67, %s68, %s69
    %p73 = pneg %p67
    %p74 = scmp.eq.s32.totalorder %s11, 1
    %p75 = por %p73, %p74
    %p76 = scmp.ne.s32.totalorder %s68, %s71
    %p77 = scmp.eq.s32.totalorder %s11, 0
    %p78 = por %p76, %p77
    %p79 = scmp.ne.s32.totalorder %s68, %s71
    %p80 = scmp.eq.s32.totalorder %s16, 1
    %p81 = por %p79, %p80
    %p82 = scmp.ne.s32.totalorder %s71, %s72
    %p83 = scmp.eq.s32.totalorder %s16, 0
    %p84 = por %p82, %p83
    %p85 = scmp.ne.s32.totalorder %s71, %s72
    %p86 = scmp.eq.s32.totalorder %s17, 1
    %p87 = por %p85, %p86
    %p89 = scmp.ne.s32.totalorder %s72, %s88
    %p90 = scmp.eq.s32.totalorder %s17, 0
    %p91 = por %p89, %p90
    %s93 = sadd.s32 %s92, 1
    %p96 = scmp.eq.s32.totalorder %s11, 1
    %p97 = scmp.ne.s32.totalorder %s92, %s94
    %p98 = scmp.eq.s32.totalorder %s11, 0
    %p99 = por %p97, %p98
    %p100 = scmp.ne.s32.totalorder %s92, %s94
    %p101 = scmp.eq.s32.totalorder %s16, 1
    %p102 = por %p100, %p101
    %p103 = scmp.ne.s32.totalorder %s94, %s95
    %p104 = scmp.eq.s32.totalorder %s16, 0
    %p105 = por %p103, %p104
    %p106 = scmp.ne.s32.totalorder %s94, %s95
    %p107 = scmp.eq.s32.totalorder %s17, 1
    %p108 = por %p106, %p107
    %p110 = scmp.ne.s32.totalorder %s95, %s109
    %p111 = scmp.eq.s32.totalorder %s17, 0
    %p112 = por %p110, %p111
    %s113 = ssub.s32 %s11, %s18
    %p114 = scmp.eq.s32.totalorder %s113, 0
    %s116 = sadd.s32 %s115, 1
    %s117 = scalar_select %p114, %s115, %s116
    %p120 = pneg %p114
    %p121 = scmp.eq.s32.totalorder %s11, 1
    %p122 = por %p120, %p121
    %p123 = scmp.ne.s32.totalorder %s115, %s118
    %p124 = scmp.eq.s32.totalorder %s11, 0
    %p125 = por %p123, %p124
    %p126 = scmp.ne.s32.totalorder %s115, %s118
    %p127 = scmp.eq.s32.totalorder %s16, 1
    %p128 = por %p126, %p127
    %p129 = scmp.ne.s32.totalorder %s118, %s119
    %p130 = scmp.eq.s32.totalorder %s16, 0
    %p131 = por %p129, %p130
    %p132 = scmp.ne.s32.totalorder %s118, %s119
    %p133 = scmp.eq.s32.totalorder %s17, 1
    %p134 = por %p132, %p133
    %p136 = scmp.ne.s32.totalorder %s119, %s135
    %p137 = scmp.eq.s32.totalorder %s17, 0
    %p138 = por %p136, %p137
    %s139 = ssub.s32 %s11, %s18
    %p140 = scmp.eq.s32.totalorder %s139, 0
    %s142 = sadd.s32 %s141, 1
    %s143 = scalar_select %p140, %s141, %s142
    %p146 = pneg %p140
    %p147 = scmp.eq.s32.totalorder %s11, 1
    %p148 = por %p146, %p147
    %p149 = scmp.ne.s32.totalorder %s141, %s144
    %p150 = scmp.eq.s32.totalorder %s11, 0
    %p151 = por %p149, %p150
    %p152 = scmp.ne.s32.totalorder %s141, %s144
    %p153 = scmp.eq.s32.totalorder %s16, 1
    %p154 = por %p152, %p153
    %p155 = scmp.ne.s32.totalorder %s144, %s145
    %p156 = scmp.eq.s32.totalorder %s16, 0
    %p157 = por %p155, %p156
    %p158 = scmp.ne.s32.totalorder %s144, %s145
    %p159 = scmp.eq.s32.totalorder %s17, 1
    %p160 = por %p158, %p159
    %p162 = scmp.ne.s32.totalorder %s145, %s161
    %p163 = scmp.eq.s32.totalorder %s17, 0
    %p164 = por %p162, %p163
    %p165 = scmp.le.s32.totalorder 1, %s11
    %p166 = scmp.lt.s32.totalorder %s11, 3
    %p167 = pnand %p165, %p166
    %p168 = pneg %p167
    // Predicated region
    $region9: #{upsampling_resnet_block.3} parent=5 // pred_check
      _
    $region10: #{upsampling_resnet_block.3} parent=5 // pred_check_branch
      %170 = sbr.rel (%p167) target = $region12
    $region11: #{upsampling_resnet_block.3} parent=5 // pred_region
      %s171 = ssub.s32 %s11, 1
      // Predicated region
      $region13: #{upsampling_resnet_block.3} parent=11 // pred_check
        %p172 = pneg %p32
      $region14: #{upsampling_resnet_block.3} parent=11 // pred_check_branch
        %174 = sbr.rel (%p172) target = $region16
      $region15: #{upsampling_resnet_block.3} parent=11 // pred_region
        _
      $region16: #{upsampling_resnet_block.3} parent=11 // pred_fallthru
        _
      // Predicated region
      $region17: #{upsampling_resnet_block.3} parent=11 // pred_check
        %p175 = pneg %p105
      $region18: #{upsampling_resnet_block.3} parent=11 // pred_check_branch
        %177 = sbr.rel (%p175) target = $region20
      $region19: #{upsampling_resnet_block.3} parent=11 // pred_region
        _
      $region20: #{upsampling_resnet_block.3} parent=11 // pred_fallthru
        _
    $region12: #{upsampling_resnet_block.3} parent=5 // pred_fallthru
      _
    %p178 = scmp.lt.s32.totalorder %s11, 2
    // Predicated region
    $region21: #{upsampling_resnet_block.3} parent=5 // pred_check
      %p179 = pneg %p178
    $region22: #{upsampling_resnet_block.3} parent=5 // pred_check_branch
      %181 = sbr.rel (%p179) target = $region24
    $region23: #{upsampling_resnet_block.3} parent=5 // pred_region
      // Predicated region
      $region25: #{upsampling_resnet_block.3} parent=23 // pred_check
        %p182 = pneg %p52
      $region26: #{upsampling_resnet_block.3} parent=23 // pred_check_branch
        %184 = sbr.rel (%p182) target = $region28
      $region27: #{upsampling_resnet_block.3} parent=23 // pred_region
        %p185 = scmp.lt.s32.totalorder %s11, 1
        %s186 = scalar_select %p185, %s11, 1
        %s187 = smul.addr %s186, 3
        %s188 = smul.addr %s187, 2
        %s189 = scalar_lea.vmem %s1, %s188
      $region28: #{upsampling_resnet_block.3} parent=23 // pred_fallthru
        _
      // Predicated region
      $region29: #{upsampling_resnet_block.3} parent=23 // pred_check
        %p190 = pneg %p78
      $region30: #{upsampling_resnet_block.3} parent=23 // pred_check_branch
        %192 = sbr.rel (%p190) target = $region32
      $region31: #{upsampling_resnet_block.3} parent=23 // pred_region
        %p193 = scmp.lt.s32.totalorder %s11, 1
        %s194 = scalar_select %p193, %s11, 1
        %s195 = smul.addr %s194, 4
        %s196 = smul.addr %s195, 8
        %s197 = scalar_lea.vmem %s2, %s196
      $region32: #{upsampling_resnet_block.3} parent=23 // pred_fallthru
        _
      // Predicated region
      $region33: #{upsampling_resnet_block.3} parent=23 // pred_check
        %p198 = pneg %p125
      $region34: #{upsampling_resnet_block.3} parent=23 // pred_check_branch
        %200 = sbr.rel (%p198) target = $region36
      $region35: #{upsampling_resnet_block.3} parent=23 // pred_region
        %p201 = scmp.lt.s32.totalorder %s11, 1
        %s202 = scalar_select %p201, %s11, 1
        %s203 = smul.addr %s202, 4
        %s204 = smul.addr %s203, 8
        %s205 = scalar_lea.vmem %s4, %s204
      $region36: #{upsampling_resnet_block.3} parent=23 // pred_fallthru
        _
    $region24: #{upsampling_resnet_block.3} parent=5 // pred_fallthru
      _
    %p206 = scmp.le.s32.totalorder 1, %s11
    %p207 = scmp.lt.s32.totalorder %s11, 3
    %p208 = pnand %p206, %p207
    %p209 = pneg %p208
    // Predicated region
    $region37: #{upsampling_resnet_block.3} parent=5 // pred_check
      _
    $region38: #{upsampling_resnet_block.3} parent=5 // pred_check_branch
      %211 = sbr.rel (%p208) target = $region40
    $region39: #{upsampling_resnet_block.3} parent=5 // pred_region
      %s212 = ssub.s32 %s11, 1
      %p213 = pneg %p32
      %p214 = pneg %p29
      %p215 = scmp.lt.s32.totalorder %s16, 1
      %s216 = scalar_select %p215, %s16, 1
      %s217 = smul.addr %s216, 3
      %s218 = smul.addr %s217, 2
      %s219 = scalar_lea.vmem %s1, %s218
      %p220 = pneg %p58
      %p221 = pneg %p55
      %p222 = scmp.lt.s32.totalorder %s16, 1
      %s223 = scalar_select %p222, %s16, 1
      %s224 = smul.addr %s223, 4
      %s225 = smul.addr %s224, 8
      %s226 = scalar_lea.vmem %s2, %s225
      %p227 = pneg %p84
      %p228 = pneg %p81
      %p229 = pneg %p105
      %p230 = pneg %p102
      %p231 = scmp.lt.s32.totalorder %s16, 1
      %s232 = scalar_select %p231, %s16, 1
      %s233 = smul.addr %s232, 4
      %s234 = smul.addr %s233, 8
      %s235 = scalar_lea.vmem %s4, %s234
      %p236 = pneg %p131
      %p237 = pneg %p128
      %p238 = pneg %p157
      %p239 = pneg %p154
      %p240 = scmp.lt.s32.totalorder %s16, 1
      %s241 = scalar_select %p240, %s16, 1
      %s242 = smul.addr %s241, 12
      %s243 = smul.addr %s242, 4
      %s244 = scalar_lea.vmem %s5, %s243
      %p245 = scmp.lt.s32.totalorder %s16, 1
      %s246 = scalar_select %p245, %s16, 1
      %s247 = smul.addr %s246, 3
      %s248 = smul.addr %s247, 2
      %s249 = scalar_lea.vmem %s1, %s248
      %p250 = scmp.lt.s32.totalorder %s16, 1
      %s251 = scalar_select %p250, %s16, 1
      %s252 = smul.addr %s251, 4
      %s253 = smul.addr %s252, 8
      %s254 = scalar_lea.vmem %s2, %s253
      %p255 = scmp.lt.s32.totalorder %s16, 1
      %s256 = scalar_select %p255, %s16, 1
      %s257 = smul.addr %s256, 4
      %s258 = smul.addr %s257, 8
      %s259 = scalar_lea.vmem %s4, %s258
      %p260 = scmp.lt.s32.totalorder %s16, 1
      %s261 = scalar_select %p260, %s16, 1
      %s262 = smul.addr %s261, 12
      %s263 = smul.addr %s262, 4
      %s264 = scalar_lea.vmem %s5, %s263
      %v266 = vld [vmem:[%s0] sm:$0xf]
      %v267 = vld [vmem:[%s0 + $0x4] sm:$0xf]
      %v268 = vld [vmem:[%s0 + $0x8] sm:$0xf]
      %v269 = vld [vmem:[%s0 + $0xc] sm:$0xf]
      %v270 = vld [vmem:[%s249] sm:$0x3f]
      %s271 = scalar_lea.vmem %s0, 16
      %v272 = vld [vmem:[%s271] sm:$0xf]
      %v273 = vld [vmem:[%s271 + $0x4] sm:$0xf]
      %v274 = vld [vmem:[%s271 + $0x8] sm:$0xf]
      %v275 = vld [vmem:[%s271 + $0xc] sm:$0xf]
      %v280 = vunpack.c.l.b16 %v272
      %v281 = vunpack.c.l.b16 %v273
      %v282 = vunpack.c.l.b16 %v274
      %v283 = vunpack.c.l.b16 %v275
      %v284 = vpack.c.b16 %v281, %v280
      %v285 = vpack.c.b16 %v283, %v282
      %v287 = vcombine.high %v270, %v270
      %v289 = vunpack.c.l.s4 1983009808
      %v290 = vunpack.c.0.s8 %v289
      %v291 = vlaneseq
      %v292 = vshrl.u32 %v291, 7
      %v293 = vsub.s32 %v290, %v292
      %v294 = vrot.slane %v270, %v293
      %v296 = vunpack.c.l.s4 1983009808
      %v297 = vunpack.c.0.s8 %v296
      %v298 = vlaneseq
      %v299 = vshrl.u32 %v298, 7
      %v300 = vsub.s32 %v297, %v299
      %v301 = vrot.slane %v287, %v300
      %v302 = vcombine.high %v294, %v294
      %303 = vrot.lane.b32.xlu0 %v294, 127
      %v304 = vpop.permute.xlu0 %303
      %305 = vrot.lane.b32.xlu0 %v302, 127
      %v306 = vpop.permute.xlu0 %305
      %307 = vrot.lane.b32.xlu0 %v301, 127
      %v308 = vpop.permute.xlu0 %307
      %vm309 = vcmask 1039360
      %v310 = vsel %vm309, %v304, %v306
      %v311 = vsel %vm309, %v306, %v308
      %vm312 = vcmask 31744
      %v314 = vsel %vm312, %v284, 0
      %v317 = vsel %vm312, %v285, 0
      %vm319 = vcmask 1041408
      %v321 = vsel %vm319, %v310, 0
      %v324 = vsel %vm319, %v311, 0
      %v327 = vsel %vm319, %v308, 0
      %329 = vmatprep.subr.bf16.mxu0 %v324
      %330 = vmatpush1.bf16.msra.mxu0 %v321
      %331 = vmatprep.subr.bf16.mxu0 0
      %332 = vmatpush1.bf16.msra.mxu0 0
      %333 = vmatprep.subr.bf16.mxu0 0
      %334 = vmatpush1.bf16.msra.mxu0 0
      %335 = vmatprep.subr.bf16.mxu0 0
      %336 = vmatpush1.bf16.msra.mxu0 0
      %337 = vmatprep.subr.bf16.mxu0 0
      %338 = vmatpush1.bf16.msra.mxu0 0
      %339 = vmatprep.subr.bf16.mxu0 0
      %340 = vmatpush1.bf16.msra.mxu0 0
      %341 = vmatprep.subr.bf16.mxu0 0
      %342 = vmatpush1.bf16.msra.mxu0 0
      %343 = vmatprep.subr.bf16.mxu0 0
      %344 = vmatpush1.bf16.msra.mxu0 0
      %345 = vmatprep.subr.bf16.mxu0 0
      %346 = vmatpush1.bf16.msra.mxu0 0
      %347 = vmatprep.subr.bf16.mxu0 0
      %348 = vmatpush1.bf16.msra.mxu0 0
      %349 = vmatprep.subr.bf16.mxu0 0
      %350 = vmatpush1.bf16.msra.mxu0 0
      %351 = vmatprep.subr.bf16.mxu0 0
      %352 = vmatpush1.bf16.msra.mxu0 0
      %353 = vmatprep.subr.bf16.mxu0 0
      %354 = vmatpush1.bf16.msra.mxu0 0
      %355 = vmatprep.subr.bf16.mxu0 0
      %356 = vmatpush1.bf16.msra.mxu0 0
      %357 = vmatprep.subr.bf16.mxu0 0
      %358 = vmatpush1.bf16.msra.mxu0 0
      %359 = vmatprep.subr.bf16.mxu0 0
      %360 = vmatpush1.bf16.msra.mxu0 0
      %361 = vmatprep.mubr.bf16.mxu0 0
      %362 = vmatmul.mubr.bf16.gmra.mrb[0].mxu0 %v314
      %v363 = vpop.f32.mrb[0].mxu0
      %v364 = vadd.f32 0.0, %v363
      %v365 = vpop.f32.mrb[0].mxu0
      %v366 = vadd.f32 0.0, %v365
      %v367 = vpop.f32.mrb[0].mxu0
      %v368 = vadd.f32 0.0, %v367
      %v369 = vpop.f32.mrb[0].mxu0
      %v370 = vadd.f32 0.0, %v369
      %371 = vmatprep.mubr.bf16.mxu0 0
      %372 = vmatmul.mubr.bf16.gmra.mrb[0].mxu0 %v317
      %v373 = vpop.f32.mrb[0].mxu0
      %v374 = vadd.f32 0.0, %v373
      %v375 = vpop.f32.mrb[0].mxu0
      %v376 = vadd.f32 0.0, %v375
      %v377 = vpop.f32.mrb[0].mxu0
      %v378 = vadd.f32 0.0, %v377
      %v379 = vpop.f32.mrb[0].mxu0
      %v380 = vadd.f32 0.0, %v379
      %381 = vdwg.mxu0
      %382 = vmatprep.subr.bf16.mxu0 0
      %383 = vmatpush1.bf16.msra.mxu0 %v327
      %384 = vmatprep.subr.bf16.mxu0 0
      %385 = vmatpush1.bf16.msra.mxu0 0
      %386 = vmatprep.subr.bf16.mxu0 0
      %387 = vmatpush1.bf16.msra.mxu0 0
      %388 = vmatprep.subr.bf16.mxu0 0
      %389 = vmatpush1.bf16.msra.mxu0 0
      %390 = vmatprep.subr.bf16.mxu0 0
      %391 = vmatpush1.bf16.msra.mxu0 0
      %392 = vmatprep.subr.bf16.mxu0 0
      %393 = vmatpush1.bf16.msra.mxu0 0
      %394 = vmatprep.subr.bf16.mxu0 0
      %395 = vmatpush1.bf16.msra.mxu0 0
      %396 = vmatprep.subr.bf16.mxu0 0
      %397 = vmatpush1.bf16.msra.mxu0 0
      %398 = vmatprep.subr.bf16.mxu0 0
      %399 = vmatpush1.bf16.msra.mxu0 0
      %400 = vmatprep.subr.bf16.mxu0 0
      %401 = vmatpush1.bf16.msra.mxu0 0
      %402 = vmatprep.subr.bf16.mxu0 0
      %403 = vmatpush1.bf16.msra.mxu0 0
      %404 = vmatprep.subr.bf16.mxu0 0
      %405 = vmatpush1.bf16.msra.mxu0 0
      %406 = vmatprep.subr.bf16.mxu0 0
      %407 = vmatpush1.bf16.msra.mxu0 0
      %408 = vmatprep.subr.bf16.mxu0 0
      %409 = vmatpush1.bf16.msra.mxu0 0
      %410 = vmatprep.subr.bf16.mxu0 0
      %411 = vmatpush1.bf16.msra.mxu0 0
      %412 = vmatprep.subr.bf16.mxu0 0
      %413 = vmatpush1.bf16.msra.mxu0 0
      %414 = vmatprep.mubr.bf16.mxu0 0
      %415 = vmatmul.mubr.bf16.gmra.mrb[0].mxu0 %v314
      %v416 = vpop.f32.mrb[0].mxu0
      %v417 = vadd.f32 0.0, %v416
      %v418 = vpop.f32.mrb[0].mxu0
      %v419 = vpop.f32.mrb[0].mxu0
      %v420 = vadd.f32 0.0, %v419
      %v421 = vpop.f32.mrb[0].mxu0
      %422 = vmatprep.mubr.bf16.mxu0 0
      %423 = vmatmul.mubr.bf16.gmra.mrb[0].mxu0 %v317
      %v424 = vpop.f32.mrb[0].mxu0
      %v425 = vadd.f32 0.0, %v424
      %v426 = vpop.f32.mrb[0].mxu0
      %v427 = vpop.f32.mrb[0].mxu0
      %v428 = vadd.f32 0.0, %v427
      %v429 = vpop.f32.mrb[0].mxu0
      %430 = vdwg.mxu0
      %v435 = vunpack.c.l.b16 %v266
      %v436 = vunpack.c.l.b16 %v267
      %v437 = vunpack.c.l.b16 %v268
      %v438 = vunpack.c.l.b16 %v269
      %v439 = vpack.c.b16 %v436, %v435
      %v440 = vpack.c.b16 %v438, %v437
      %v442 = vsel %vm312, %v439, 0
      %v445 = vsel %vm312, %v440, 0
      %v448 = vsel %vm319, %v294, 0
      %v451 = vsel %vm319, %v302, 0
      %v454 = vsel %vm319, %v301, 0
      %456 = vmatprep.subr.bf16.mxu0 %v451
      %457 = vmatpush1.bf16.msra.mxu0 %v448
      %458 = vmatprep.subr.bf16.mxu0 0
      %459 = vmatpush1.bf16.msra.mxu0 0
      %460 = vmatprep.subr.bf16.mxu0 0
      %461 = vmatpush1.bf16.msra.mxu0 0
      %462 = vmatprep.subr.bf16.mxu0 0
      %463 = vmatpush1.bf16.msra.mxu0 0
      %464 = vmatprep.subr.bf16.mxu0 0
      %465 = vmatpush1.bf16.msra.mxu0 0
      %466 = vmatprep.subr.bf16.mxu0 0
      %467 = vmatpush1.bf16.msra.mxu0 0
      %468 = vmatprep.subr.bf16.mxu0 0
      %469 = vmatpush1.bf16.msra.mxu0 0
      %470 = vmatprep.subr.bf16.mxu0 0
      %471 = vmatpush1.bf16.msra.mxu0 0
      %472 = vmatprep.subr.bf16.mxu0 0
      %473 = vmatpush1.bf16.msra.mxu0 0
      %474 = vmatprep.subr.bf16.mxu0 0
      %475 = vmatpush1.bf16.msra.mxu0 0
      %476 = vmatprep.subr.bf16.mxu0 0
      %477 = vmatpush1.bf16.msra.mxu0 0
      %478 = vmatprep.subr.bf16.mxu0 0
      %479 = vmatpush1.bf16.msra.mxu0 0
      %480 = vmatprep.subr.bf16.mxu0 0
      %481 = vmatpush1.bf16.msra.mxu0 0
      %482 = vmatprep.subr.bf16.mxu0 0
      %483 = vmatpush1.bf16.msra.mxu0 0
      %484 = vmatprep.subr.bf16.mxu0 0
      %485 = vmatpush1.bf16.msra.mxu0 0
      %486 = vmatprep.subr.bf16.mxu0 0
      %487 = vmatpush1.bf16.msra.mxu0 0
      %488 = vmatprep.mubr.bf16.mxu0 0
      %489 = vmatmul.mubr.bf16.gmra.mrb[0].mxu0 %v442
      %v490 = vpop.f32.mrb[0].mxu0
      %v491 = vadd.f32 %v364, %v490
      %v492 = vpop.f32.mrb[0].mxu0
      %v493 = vadd.f32 %v366, %v492
      %v494 = vpop.f32.mrb[0].mxu0
      %v495 = vadd.f32 %v368, %v494
      %v496 = vpop.f32.mrb[0].mxu0
      %v497 = vadd.f32 %v370, %v496
      %498 = vmatprep.mubr.bf16.mxu0 0
      %499 = vmatmul.mubr.bf16.gmra.mrb[0].mxu0 %v445
      %v500 = vpop.f32.mrb[0].mxu0
      %v501 = vadd.f32 %v374, %v500
      %v502 = vpop.f32.mrb[0].mxu0
      %v503 = vadd.f32 %v376, %v502
      %v504 = vpop.f32.mrb[0].mxu0
      %v505 = vadd.f32 %v378, %v504
      %v506 = vpop.f32.mrb[0].mxu0
      %v507 = vadd.f32 %v380, %v506
      %508 = vdwg.mxu0
      %509 = vmatprep.subr.bf16.mxu0 0
      %510 = vmatpush1.bf16.msra.mxu0 %v454
      %511 = vmatprep.subr.bf16.mxu0 0
      %512 = vmatpush1.bf16.msra.mxu0 0
      %513 = vmatprep.subr.bf16.mxu0 0
      %514 = vmatpush1.bf16.msra.mxu0 0
      %515 = vmatprep.subr.bf16.mxu0 0
      %516 = vmatpush1.bf16.msra.mxu0 0
      %517 = vmatprep.subr.bf16.mxu0 0
      %518 = vmatpush1.bf16.msra.mxu0 0
      %519 = vmatprep.subr.bf16.mxu0 0
      %520 = vmatpush1.bf16.msra.mxu0 0
      %521 = vmatprep.subr.bf16.mxu0 0
      %522 = vmatpush1.bf16.msra.mxu0 0
      %523 = vmatprep.subr.bf16.mxu0 0
      %524 = vmatpush1.bf16.msra.mxu0 0
      %525 = vmatprep.subr.bf16.mxu0 0
      %526 = vmatpush1.bf16.msra.mxu0 0
      %527 = vmatprep.subr.bf16.mxu0 0
      %528 = vmatpush1.bf16.msra.mxu0 0
      %529 = vmatprep.subr.bf16.mxu0 0
      %530 = vmatpush1.bf16.msra.mxu0 0
      %531 = vmatprep.subr.bf16.mxu0 0
      %532 = vmatpush1.bf16.msra.mxu0 0
      %533 = vmatprep.subr.bf16.mxu0 0
      %534 = vmatpush1.bf16.msra.mxu0 0
      %535 = vmatprep.subr.bf16.mxu0 0
      %536 = vmatpush1.bf16.msra.mxu0 0
      %537 = vmatprep.subr.bf16.mxu0 0
      %538 = vmatpush1.bf16.msra.mxu0 0
      %539 = vmatprep.subr.bf16.mxu0 0
      %540 = vmatpush1.bf16.msra.mxu0 0
      %541 = vmatprep.mubr.bf16.mxu0 0
      %542 = vmatmul.mubr.bf16.gmra.mrb[0].mxu0 %v442
      %v543 = vpop.f32.mrb[0].mxu0
      %v544 = vadd.f32 %v417, %v543
      %v545 = vpop.f32.mrb[0].mxu0
      %v546 = vpop.f32.mrb[0].mxu0
      %v547 = vadd.f32 %v420, %v546
      %v548 = vpop.f32.mrb[0].mxu0
      %549 = vmatprep.mubr.bf16.mxu0 0
      %550 = vmatmul.mubr.bf16.gmra.mrb[0].mxu0 %v445
      %v551 = vpop.f32.mrb[0].mxu0
      %v552 = vadd.f32 %v425, %v551
      %v553 = vpop.f32.mrb[0].mxu0
      %v554 = vpop.f32.mrb[0].mxu0
      %v555 = vadd.f32 %v428, %v554
      %v556 = vpop.f32.mrb[0].mxu0
      %557 = vdwg.mxu0
      %s558 = scalar_lea.vmem %s0, 32
      %v559 = vld [vmem:[%s558] sm:$0xf]
      %v560 = vld [vmem:[%s558 + $0x4] sm:$0xf]
      %v561 = vld [vmem:[%s558 + $0x8] sm:$0xf]
      %v562 = vld [vmem:[%s558 + $0xc] sm:$0xf]
      %v563 = vld [vmem:[%s249] sm:$0x3f]
      %v568 = vunpack.c.l.b16 %v559
      %v569 = vunpack.c.l.b16 %v560
      %v570 = vunpack.c.l.b16 %v561
      %v571 = vunpack.c.l.b16 %v562
      %v572 = vpack.c.b16 %v569, %v568
      %v573 = vpack.c.b16 %v571, %v570
      %v575 = vcombine.high %v563, %v563
      %v577 = vunpack.c.l.s4 1983009808
      %v578 = vunpack.c.0.s8 %v577
      %v579 = vlaneseq
      %v580 = vshrl.u32 %v579, 7
      %v581 = vsub.s32 %v578, %v580
      %v582 = vrot.slane %v563, %v581
      %v584 = vunpack.c.l.s4 1983009808
      %v585 = vunpack.c.0.s8 %v584
      %v586 = vlaneseq
      %v587 = vshrl.u32 %v586, 7
      %v588 = vsub.s32 %v585, %v587
      %v589 = vrot.slane %v575, %v588
      %v590 = vcombine.high %v582, %v582
      %591 = vrot.lane.b32.xlu0 %v582, 126
      %v592 = vpop.permute.xlu0 %591
      %593 = vrot.lane.b32.xlu0 %v590, 126
      %v594 = vpop.permute.xlu0 %593
      %595 = vrot.lane.b32.xlu0 %v589, 126
      %v596 = vpop.permute.xlu0 %595
      %vm597 = vcmask 1031168
      %v598 = vsel %vm597, %v592, %v594
      %v599 = vsel %vm597, %v594, %v596
      %v601 = vsel %vm312, %v572, 0
      %v604 = vsel %vm312, %v573, 0
      %v607 = vsel %vm319, %v598, 0
      %v610 = vsel %vm319, %v599, 0
      %v613 = vsel %vm319, %v596, 0
      %615 = vmatprep.subr.bf16.mxu0 %v610
      %616 = vmatpush1.bf16.msra.mxu0 %v607
      %617 = vmatprep.subr.bf16.mxu0 0
      %618 = vmatpush1.bf16.msra.mxu0 0
      %619 = vmatprep.subr.bf16.mxu0 0
      %620 = vmatpush1.bf16.msra.mxu0 0
      %621 = vmatprep.subr.bf16.mxu0 0
      %622 = vmatpush1.bf16.msra.mxu0 0
      %623 = vmatprep.subr.bf16.mxu0 0
      %624 = vmatpush1.bf16.msra.mxu0 0
      %625 = vmatprep.subr.bf16.mxu0 0
      %626 = vmatpush1.bf16.msra.mxu0 0
      %627 = vmatprep.subr.bf16.mxu0 0
      %628 = vmatpush1.bf16.msra.mxu0 0
      %629 = vmatprep.subr.bf16.mxu0 0
      %630 = vmatpush1.bf16.msra.mxu0 0
      %631 = vmatprep.subr.bf16.mxu0 0
      %632 = vmatpush1.bf16.msra.mxu0 0
      %633 = vmatprep.subr.bf16.mxu0 0
      %634 = vmatpush1.bf16.msra.mxu0 0
      %635 = vmatprep.subr.bf16.mxu0 0
      %636 = vmatpush1.bf16.msra.mxu0 0
      %637 = vmatprep.subr.bf16.mxu0 0
      %638 = vmatpush1.bf16.msra.mxu0 0
      %639 = vmatprep.subr.bf16.mxu0 0
      %640 = vmatpush1.bf16.msra.mxu0 0
      %641 = vmatprep.subr.bf16.mxu0 0
      %642 = vmatpush1.bf16.msra.mxu0 0
      %643 = vmatprep.subr.bf16.mxu0 0
      %644 = vmatpush1.bf16.msra.mxu0 0
      %645 = vmatprep.subr.bf16.mxu0 0
      %646 = vmatpush1.bf16.msra.mxu0 0
      %647 = vmatprep.mubr.bf16.mxu0 0
      %648 = vmatmul.mubr.bf16.gmra.mrb[0].mxu0 %v601
      %v649 = vpop.f32.mrb[0].mxu0
      %v650 = vadd.f32 0.0, %v649
      %v651 = vpop.f32.mrb[0].mxu0
      %v652 = vadd.f32 0.0, %v651
      %v653 = vpop.f32.mrb[0].mxu0
      %v654 = vadd.f32 0.0, %v653
      %v655 = vpop.f32.mrb[0].mxu0
      %v656 = vadd.f32 0.0, %v655
      %657 = vmatprep.mubr.bf16.mxu0 0
      %658 = vmatmul.mubr.bf16.gmra.mrb[0].mxu0 %v604
      %v659 = vpop.f32.mrb[0].mxu0
      %v660 = vadd.f32 0.0, %v659
      %v661 = vpop.f32.mrb[0].mxu0
      %v662 = vadd.f32 0.0, %v661
      %v663 = vpop.f32.mrb[0].mxu0
      %v664 = vadd.f32 0.0, %v663
      %v665 = vpop.f32.mrb[0].mxu0
      %v666 = vadd.f32 0.0, %v665
      %667 = vdwg.mxu0
      %668 = vmatprep.subr.bf16.mxu0 0
      %669 = vmatpush1.bf16.msra.mxu0 %v613
      %670 = vmatprep.subr.bf16.mxu0 0
      %671 = vmatpush1.bf16.msra.mxu0 0
      %672 = vmatprep.subr.bf16.mxu0 0
      %673 = vmatpush1.bf16.msra.mxu0 0
      %674 = vmatprep.subr.bf16.mxu0 0
      %675 = vmatpush1.bf16.msra.mxu0 0
      %676 = vmatprep.subr.bf16.mxu0 0
      %677 = vmatpush1.bf16.msra.mxu0 0
      %678 = vmatprep.subr.bf16.mxu0 0
      %679 = vmatpush1.bf16.msra.mxu0 0
      %680 = vmatprep.subr.bf16.mxu0 0
      %681 = vmatpush1.bf16.msra.mxu0 0
      %682 = vmatprep.subr.bf16.mxu0 0
      %683 = vmatpush1.bf16.msra.mxu0 0
      %684 = vmatprep.subr.bf16.mxu0 0
      %685 = vmatpush1.bf16.msra.mxu0 0
      %686 = vmatprep.subr.bf16.mxu0 0
      %687 = vmatpush1.bf16.msra.mxu0 0
      %688 = vmatprep.subr.bf16.mxu0 0
      %689 = vmatpush1.bf16.msra.mxu0 0
      %690 = vmatprep.subr.bf16.mxu0 0
      %691 = vmatpush1.bf16.msra.mxu0 0
      %692 = vmatprep.subr.bf16.mxu0 0
      %693 = vmatpush1.bf16.msra.mxu0 0
      %694 = vmatprep.subr.bf16.mxu0 0
      %695 = vmatpush1.bf16.msra.mxu0 0
      %696 = vmatprep.subr.bf16.mxu0 0
      %697 = vmatpush1.bf16.msra.mxu0 0
      %698 = vmatprep.subr.bf16.mxu0 0
      %699 = vmatpush1.bf16.msra.mxu0 0
      %700 = vmatprep.mubr.bf16.mxu0 0
      %701 = vmatmul.mubr.bf16.gmra.mrb[0].mxu0 %v601
      %v702 = vpop.f32.mrb[0].mxu0
      %v703 = vadd.f32 0.0, %v702
      %v704 = vpop.f32.mrb[0].mxu0
      %v705 = vpop.f32.mrb[0].mxu0
      %v706 = vadd.f32 0.0, %v705
      %v707 = vpop.f32.mrb[0].mxu0
      %708 = vmatprep.mubr.bf16.mxu0 0
      %709 = vmatmul.mubr.bf16.gmra.mrb[0].mxu0 %v604
      %v710 = vpop.f32.mrb[0].mxu0
      %v711 = vadd.f32 0.0, %v710
      %v712 = vpop.f32.mrb[0].mxu0
      %v713 = vpop.f32.mrb[0].mxu0
      %v714 = vadd.f32 0.0, %v713
      %v715 = vpop.f32.mrb[0].mxu0
      %716 = vdwg.mxu0
      %v717 = vadd.f32 %v491, %v650
      %v718 = vadd.f32 %v493, %v652
      %v719 = vadd.f32 %v544, %v703
      %v720 = vadd.f32 %v495, %v654
      %v721 = vadd.f32 %v497, %v656
      %v722 = vadd.f32 %v547, %v706
      %v723 = vadd.f32 %v501, %v660
      %v724 = vadd.f32 %v503, %v662
      %v725 = vadd.f32 %v552, %v711
      %v726 = vadd.f32 %v505, %v664
      %v727 = vadd.f32 %v507, %v666
      %v728 = vadd.f32 %v555, %v714
      %s729 = scalar_lea.vmem %s0, 48
      %v730 = vld [vmem:[%s729] sm:$0xf]
      %v731 = vld [vmem:[%s729 + $0x4] sm:$0xf]
      %v732 = vld [vmem:[%s729 + $0x8] sm:$0xf]
      %v733 = vld [vmem:[%s729 + $0xc] sm:$0xf]
      %v734 = vld [vmem:[%s249] sm:$0x3f]
      %v739 = vunpack.c.l.b16 %v730
      %v740 = vunpack.c.l.b16 %v731
      %v741 = vunpack.c.l.b16 %v732
      %v742 = vunpack.c.l.b16 %v733
      %v743 = vpack.c.b16 %v740, %v739
      %v744 = vpack.c.b16 %v742, %v741
      %v746 = vcombine.high %v734, %v734
      %v748 = vunpack.c.l.s4 1983009808
      %v749 = vunpack.c.0.s8 %v748
      %v750 = vlaneseq
      %v751 = vshrl.u32 %v750, 7
      %v752 = vsub.s32 %v749, %v751
      %v753 = vrot.slane %v734, %v752
      %v755 = vunpack.c.l.s4 1983009808
      %v756 = vunpack.c.0.s8 %v755
      %v757 = vlaneseq
      %v758 = vshrl.u32 %v757, 7
      %v759 = vsub.s32 %v756, %v758
      %v760 = vrot.slane %v746, %v759
      %v761 = vcombine.high %v753, %v753
      %762 = vrot.lane.b32.xlu0 %v753, 110
      %v763 = vpop.permute.xlu0 %762
      %764 = vrot.lane.b32.xlu0 %v761, 110
      %v765 = vpop.permute.xlu0 %764
      %766 = vrot.lane.b32.xlu0 %v760, 110
      %v767 = vpop.permute.xlu0 %766
      %vm768 = vcmask 900096
      %v769 = vsel %vm768, %v763, %v765
      %v770 = vsel %vm768, %v765, %v767
      %v772 = vsel %vm312, %v743, 0
      %v775 = vsel %vm312, %v744, 0
      %v778 = vsel %vm319, %v769, 0
      %v781 = vsel %vm319, %v770, 0
      %v784 = vsel %vm319, %v767, 0
      %786 = vmatprep.subr.bf16.mxu0 %v781
      %787 = vmatpush1.bf16.msra.mxu0 %v778
      %788 = vmatprep.subr.bf16.mxu0 0
      %789 = vmatpush1.bf16.msra.mxu0 0
      %790 = vmatprep.subr.bf16.mxu0 0
      %791 = vmatpush1.bf16.msra.mxu0 0
      %792 = vmatprep.subr.bf16.mxu0 0
      %793 = vmatpush1.bf16.msra.mxu0 0
      %794 = vmatprep.subr.bf16.mxu0 0
      %795 = vmatpush1.bf16.msra.mxu0 0
      %796 = vmatprep.subr.bf16.mxu0 0
      %797 = vmatpush1.bf16.msra.mxu0 0
      %798 = vmatprep.subr.bf16.mxu0 0
      %799 = vmatpush1.bf16.msra.mxu0 0
      %800 = vmatprep.subr.bf16.mxu0 0
      %801 = vmatpush1.bf16.msra.mxu0 0
      %802 = vmatprep.subr.bf16.mxu0 0
      %803 = vmatpush1.bf16.msra.mxu0 0
      %804 = vmatprep.subr.bf16.mxu0 0
      %805 = vmatpush1.bf16.msra.mxu0 0
      %806 = vmatprep.subr.bf16.mxu0 0
      %807 = vmatpush1.bf16.msra.mxu0 0
      %808 = vmatprep.subr.bf16.mxu0 0
      %809 = vmatpush1.bf16.msra.mxu0 0
      %810 = vmatprep.subr.bf16.mxu0 0
      %811 = vmatpush1.bf16.msra.mxu0 0
      %812 = vmatprep.subr.bf16.mxu0 0
      %813 = vmatpush1.bf16.msra.mxu0 0
      %814 = vmatprep.subr.bf16.mxu0 0
      %815 = vmatpush1.bf16.msra.mxu0 0
      %816 = vmatprep.subr.bf16.mxu0 0
      %817 = vmatpush1.bf16.msra.mxu0 0
      %818 = vmatprep.mubr.bf16.mxu0 0
      %819 = vmatmul.mubr.bf16.gmra.mrb[0].mxu0 %v772
      %v820 = vpop.f32.mrb[0].mxu0
      %v821 = vadd.f32 0.0, %v820
      %v822 = vpop.f32.mrb[0].mxu0
      %v823 = vadd.f32 0.0, %v822
      %v824 = vpop.f32.mrb[0].mxu0
      %v825 = vadd.f32 0.0, %v824
      %v826 = vpop.f32.mrb[0].mxu0
      %v827 = vadd.f32 0.0, %v826
      %828 = vmatprep.mubr.bf16.mxu0 0
      %829 = vmatmul.mubr.bf16.gmra.mrb[0].mxu0 %v775
      %v830 = vpop.f32.mrb[0].mxu0
      %v831 = vadd.f32 0.0, %v830
      %v832 = vpop.f32.mrb[0].mxu0
      %v833 = vadd.f32 0.0, %v832
      %v834 = vpop.f32.mrb[0].mxu0
      %v835 = vadd.f32 0.0, %v834
      %v836 = vpop.f32.mrb[0].mxu0
      %v837 = vadd.f32 0.0, %v836
      %838 = vdwg.mxu0
      %839 = vmatprep.subr.bf16.mxu0 0
      %840 = vmatpush1.bf16.msra.mxu0 %v784
      %841 = vmatprep.subr.bf16.mxu0 0
      %842 = vmatpush1.bf16.msra.mxu0 0
      %843 = vmatprep.subr.bf16.mxu0 0
      %844 = vmatpush1.bf16.msra.mxu0 0
      %845 = vmatprep.subr.bf16.mxu0 0
      %846 = vmatpush1.bf16.msra.mxu0 0
      %847 = vmatprep.subr.bf16.mxu0 0
      %848 = vmatpush1.bf16.msra.mxu0 0
      %849 = vmatprep.subr.bf16.mxu0 0
      %850 = vmatpush1.bf16.msra.mxu0 0
      %851 = vmatprep.subr.bf16.mxu0 0
      %852 = vmatpush1.bf16.msra.mxu0 0
      %853 = vmatprep.subr.bf16.mxu0 0
      %854 = vmatpush1.bf16.msra.mxu0 0
      %855 = vmatprep.subr.bf16.mxu0 0
      %856 = vmatpush1.bf16.msra.mxu0 0
      %857 = vmatprep.subr.bf16.mxu0 0
      %858 = vmatpush1.bf16.msra.mxu0 0
      %859 = vmatprep.subr.bf16.mxu0 0
      %860 = vmatpush1.bf16.msra.mxu0 0
      %861 = vmatprep.subr.bf16.mxu0 0
      %862 = vmatpush1.bf16.msra.mxu0 0
      %863 = vmatprep.subr.bf16.mxu0 0
      %864 = vmatpush1.bf16.msra.mxu0 0
      %865 = vmatprep.subr.bf16.mxu0 0
      %866 = vmatpush1.bf16.msra.mxu0 0
      %867 = vmatprep.subr.bf16.mxu0 0
      %868 = vmatpush1.bf16.msra.mxu0 0
      %869 = vmatprep.subr.bf16.mxu0 0
      %870 = vmatpush1.bf16.msra.mxu0 0
      %871 = vmatprep.mubr.bf16.mxu0 0
      %872 = vmatmul.mubr.bf16.gmra.mrb[0].mxu0 %v772
      %v873 = vpop.f32.mrb[0].mxu0
      %v874 = vadd.f32 0.0, %v873
      %v875 = vpop.f32.mrb[0].mxu0
      %v876 = vpop.f32.mrb[0].mxu0
      %v877 = vadd.f32 0.0, %v876
      %v878 = vpop.f32.mrb[0].mxu0
      %879 = vmatprep.mubr.bf16.mxu0 0
      %880 = vmatmul.mubr.bf16.gmra.mrb[0].mxu0 %v775
      %v881 = vpop.f32.mrb[0].mxu0
      %v882 = vadd.f32 0.0, %v881
      %v883 = vpop.f32.mrb[0].mxu0
      %v884 = vpop.f32.mrb[0].mxu0
      %v885 = vadd.f32 0.0, %v884
      %v886 = vpop.f32.mrb[0].mxu0
      %887 = vdwg.mxu0
      %v888 = vadd.f32 %v717, %v821
      %v889 = vadd.f32 %v718, %v823
      %v890 = vadd.f32 %v719, %v874
      %v891 = vadd.f32 %v720, %v825
      %v892 = vadd.f32 %v721, %v827
      %v893 = vadd.f32 %v722, %v877
      %v894 = vadd.f32 %v723, %v831
      %v895 = vadd.f32 %v724, %v833
      %v896 = vadd.f32 %v725, %v882
      %v897 = vadd.f32 %v726, %v835
      %v898 = vadd.f32 %v727, %v837
      %v899 = vadd.f32 %v728, %v885
      %s900 = scalar_lea.vmem %s0, 64
      %v901 = vld [vmem:[%s900] sm:$0xf]
      %v902 = vld [vmem:[%s900 + $0x4] sm:$0xf]
      %v903 = vld [vmem:[%s900 + $0x8] sm:$0xf]
      %v904 = vld [vmem:[%s900 + $0xc] sm:$0xf]
      %v905 = vld [vmem:[%s249] sm:$0x3f]
      %v910 = vunpack.c.l.b16 %v901
      %v911 = vunpack.c.l.b16 %v902
      %v912 = vunpack.c.l.b16 %v903
      %v913 = vunpack.c.l.b16 %v904
      %v914 = vpack.c.b16 %v911, %v910
      %v915 = vpack.c.b16 %v913, %v912
      %v917 = vcombine.high %v905, %v905
      %v919 = vunpack.c.l.s4 1983009808
      %v920 = vunpack.c.0.s8 %v919
      %v921 = vlaneseq
      %v922 = vshrl.u32 %v921, 7
      %v923 = vsub.s32 %v920, %v922
      %v924 = vrot.slane %v905, %v923
      %v926 = vunpack.c.l.s4 1983009808
      %v927 = vunpack.c.0.s8 %v926
      %v928 = vlaneseq
      %v929 = vshrl.u32 %v928, 7
      %v930 = vsub.s32 %v927, %v929
      %v931 = vrot.slane %v917, %v930
      %v932 = vcombine.high %v924, %v924
      %933 = vrot.lane.b32.xlu0 %v924, 109
      %v934 = vpop.permute.xlu0 %933
      %935 = vrot.lane.b32.xlu0 %v932, 109
      %v936 = vpop.permute.xlu0 %935
      %937 = vrot.lane.b32.xlu0 %v931, 109
      %v938 = vpop.permute.xlu0 %937
      %vm939 = vcmask 891904
      %v940 = vsel %vm939, %v934, %v936
      %v941 = vsel %vm939, %v936, %v938
      %v943 = vsel %vm312, %v914, 0
      %v946 = vsel %vm312, %v915, 0
      %v949 = vsel %vm319, %v940, 0
      %v952 = vsel %vm319, %v941, 0
      %v955 = vsel %vm319, %v938, 0
      %957 = vmatprep.subr.bf16.mxu0 %v952
      %958 = vmatpush1.bf16.msra.mxu0 %v949
      %959 = vmatprep.subr.bf16.mxu0 0
      %960 = vmatpush1.bf16.msra.mxu0 0
      %961 = vmatprep.subr.bf16.mxu0 0
      %962 = vmatpush1.bf16.msra.mxu0 0
      %963 = vmatprep.subr.bf16.mxu0 0
      %964 = vmatpush1.bf16.msra.mxu0 0
      %965 = vmatprep.subr.bf16.mxu0 0
      %966 = vmatpush1.bf16.msra.mxu0 0
      %967 = vmatprep.subr.bf16.mxu0 0
      %968 = vmatpush1.bf16.msra.mxu0 0
      %969 = vmatprep.subr.bf16.mxu0 0
      %970 = vmatpush1.bf16.msra.mxu0 0
      %971 = vmatprep.subr.bf16.mxu0 0
      %972 = vmatpush1.bf16.msra.mxu0 0
      %973 = vmatprep.subr.bf16.mxu0 0
      %974 = vmatpush1.bf16.msra.mxu0 0
      %975 = vmatprep.subr.bf16.mxu0 0
      %976 = vmatpush1.bf16.msra.mxu0 0
      %977 = vmatprep.subr.bf16.mxu0 0
      %978 = vmatpush1.bf16.msra.mxu0 0
      %979 = vmatprep.subr.bf16.mxu0 0
      %980 = vmatpush1.bf16.msra.mxu0 0
      %981 = vmatprep.subr.bf16.mxu0 0
      %982 = vmatpush1.bf16.msra.mxu0 0
      %983 = vmatprep.subr.bf16.mxu0 0
      %984 = vmatpush1.bf16.msra.mxu0 0
      %985 = vmatprep.subr.bf16.mxu0 0
      %986 = vmatpush1.bf16.msra.mxu0 0
      %987 = vmatprep.subr.bf16.mxu0 0
      %988 = vmatpush1.bf16.msra.mxu0 0
      %989 = vmatprep.mubr.bf16.mxu0 0
      %990 = vmatmul.mubr.bf16.gmra.mrb[0].mxu0 %v943
      %v991 = vpop.f32.mrb[0].mxu0
      %v992 = vadd.f32 0.0, %v991
      %v993 = vpop.f32.mrb[0].mxu0
      %v994 = vadd.f32 0.0, %v993
      %v995 = vpop.f32.mrb[0].mxu0
      %v996 = vadd.f32 0.0, %v995
      %v997 = vpop.f32.mrb[0].mxu0
      %v998 = vadd.f32 0.0, %v997
      %999 = vmatprep.mubr.bf16.mxu0 0
      %1000 = vmatmul.mubr.bf16.gmra.mrb[0].mxu0 %v946
      %v1001 = vpop.f32.mrb[0].mxu0
      %v1002 = vadd.f32 0.0, %v1001
      %v1003 = vpop.f32.mrb[0].mxu0
      %v1004 = vadd.f32 0.0, %v1003
      %v1005 = vpop.f32.mrb[0].mxu0
      %v1006 = vadd.f32 0.0, %v1005
      %v1007 = vpop.f32.mrb[0].mxu0
      %v1008 = vadd.f32 0.0, %v1007
      %1009 = vdwg.mxu0
      %1010 = vmatprep.subr.bf16.mxu0 0
      %1011 = vmatpush1.bf16.msra.mxu0 %v955
      %1012 = vmatprep.subr.bf16.mxu0 0
      %1013 = vmatpush1.bf16.msra.mxu0 0
      %1014 = vmatprep.subr.bf16.mxu0 0
      %1015 = vmatpush1.bf16.msra.mxu0 0
      %1016 = vmatprep.subr.bf16.mxu0 0
      %1017 = vmatpush1.bf16.msra.mxu0 0
      %1018 = vmatprep.subr.bf16.mxu0 0
      %1019 = vmatpush1.bf16.msra.mxu0 0
      %1020 = vmatprep.subr.bf16.mxu0 0
      %1021 = vmatpush1.bf16.msra.mxu0 0
      %1022 = vmatprep.subr.bf16.mxu0 0
      %1023 = vmatpush1.bf16.msra.mxu0 0
      %1024 = vmatprep.subr.bf16.mxu0 0
      %1025 = vmatpush1.bf16.msra.mxu0 0
      %1026 = vmatprep.subr.bf16.mxu0 0
      %1027 = vmatpush1.bf16.msra.mxu0 0
      %1028 = vmatprep.subr.bf16.mxu0 0
      %1029 = vmatpush1.bf16.msra.mxu0 0
      %1030 = vmatprep.subr.bf16.mxu0 0
      %1031 = vmatpush1.bf16.msra.mxu0 0
      %1032 = vmatprep.subr.bf16.mxu0 0
      %1033 = vmatpush1.bf16.msra.mxu0 0
      %1034 = vmatprep.subr.bf16.mxu0 0
      %1035 = vmatpush1.bf16.msra.mxu0 0
      %1036 = vmatprep.subr.bf16.mxu0 0
      %1037 = vmatpush1.bf16.msra.mxu0 0
      %1038 = vmatprep.subr.bf16.mxu0 0
      %1039 = vmatpush1.bf16.msra.mxu0 0
      %1040 = vmatprep.subr.bf16.mxu0 0
      %1041 = vmatpush1.bf16.msra.mxu0 0
      %1042 = vmatprep.mubr.bf16.mxu0 0
      %1043 = vmatmul.mubr.bf16.gmra.mrb[0].mxu0 %v943
      %v1044 = vpop.f32.mrb[0].mxu0
      %v1045 = vadd.f32 0.0, %v1044
      %v1046 = vpop.f32.mrb[0].mxu0
      %v1047 = vpop.f32.mrb[0].mxu0
      %v1048 = vadd.f32 0.0, %v1047
      %v1049 = vpop.f32.mrb[0].mxu0
      %1050 = vmatprep.mubr.bf16.mxu0 0
      %1051 = vmatmul.mubr.bf16.gmra.mrb[0].mxu0 %v946
      %v1052 = vpop.f32.mrb[0].mxu0
      %v1053 = vadd.f32 0.0, %v1052
      %v1054 = vpop.f32.mrb[0].mxu0
      %v1055 = vpop.f32.mrb[0].mxu0
      %v1056 = vadd.f32 0.0, %v1055
      %v1057 = vpop.f32.mrb[0].mxu0
      %1058 = vdwg.mxu0
      %v1059 = vadd.f32 %v888, %v992
      %v1060 = vadd.f32 %v889, %v994
      %v1061 = vadd.f32 %v890, %v1045
      %v1062 = vadd.f32 %v891, %v996
      %v1063 = vadd.f32 %v892, %v998
      %v1064 = vadd.f32 %v893, %v1048
      %v1065 = vadd.f32 %v894, %v1002
      %v1066 = vadd.f32 %v895, %v1004
      %v1067 = vadd.f32 %v896, %v1053
      %v1068 = vadd.f32 %v897, %v1006
      %v1069 = vadd.f32 %v898, %v1008
      %v1070 = vadd.f32 %v899, %v1056
      %s1071 = scalar_lea.vmem %s0, 80
      %v1072 = vld [vmem:[%s1071] sm:$0xf]
      %v1073 = vld [vmem:[%s1071 + $0x4] sm:$0xf]
      %v1074 = vld [vmem:[%s1071 + $0x8] sm:$0xf]
      %v1075 = vld [vmem:[%s1071 + $0xc] sm:$0xf]
      %v1076 = vld [vmem:[%s249] sm:$0x3f]
      %v1081 = vunpack.c.l.b16 %v1072
      %v1082 = vunpack.c.l.b16 %v1073
      %v1083 = vunpack.c.l.b16 %v1074
      %v1084 = vunpack.c.l.b16 %v1075
      %v1085 = vpack.c.b16 %v1082, %v1081
      %v1086 = vpack.c.b16 %v1084, %v1083
      %v1088 = vcombine.high %v1076, %v1076
      %v1090 = vunpack.c.l.s4 1983009808
      %v1091 = vunpack.c.0.s8 %v1090
      %v1092 = vlaneseq
      %v1093 = vshrl.u32 %v1092, 7
      %v1094 = vsub.s32 %v1091, %v1093
      %v1095 = vrot.slane %v1076, %v1094
      %v1097 = vunpack.c.l.s4 1983009808
      %v1098 = vunpack.c.0.s8 %v1097
      %v1099 = vlaneseq
      %v1100 = vshrl.u32 %v1099, 7
      %v1101 = vsub.s32 %v1098, %v1100
      %v1102 = vrot.slane %v1088, %v1101
      %v1103 = vcombine.high %v1095, %v1095
      %1104 = vrot.lane.b32.xlu0 %v1095, 108
      %v1105 = vpop.permute.xlu0 %1104
      %1106 = vrot.lane.b32.xlu0 %v1103, 108
      %v1107 = vpop.permute.xlu0 %1106
      %1108 = vrot.lane.b32.xlu0 %v1102, 108
      %v1109 = vpop.permute.xlu0 %1108
      %vm1110 = vcmask 883712
      %v1111 = vsel %vm1110, %v1105, %v1107
      %v1112 = vsel %vm1110, %v1107, %v1109
      %v1114 = vsel %vm312, %v1085, 0
      %v1117 = vsel %vm312, %v1086, 0
      %v1120 = vsel %vm319, %v1111, 0
      %v1123 = vsel %vm319, %v1112, 0
      %v1126 = vsel %vm319, %v1109, 0
      %1128 = vmatprep.subr.bf16.mxu0 %v1123
      %1129 = vmatpush1.bf16.msra.mxu0 %v1120
      %1130 = vmatprep.subr.bf16.mxu0 0
      %1131 = vmatpush1.bf16.msra.mxu0 0
      %1132 = vmatprep.subr.bf16.mxu0 0
      %1133 = vmatpush1.bf16.msra.mxu0 0
      %1134 = vmatprep.subr.bf16.mxu0 0
      %1135 = vmatpush1.bf16.msra.mxu0 0
      %1136 = vmatprep.subr.bf16.mxu0 0
      %1137 = vmatpush1.bf16.msra.mxu0 0
      %1138 = vmatprep.subr.bf16.mxu0 0
      %1139 = vmatpush1.bf16.msra.mxu0 0
      %1140 = vmatprep.subr.bf16.mxu0 0
      %1141 = vmatpush1.bf16.msra.mxu0 0
      %1142 = vmatprep.subr.bf16.mxu0 0
      %1143 = vmatpush1.bf16.msra.mxu0 0
      %1144 = vmatprep.subr.bf16.mxu0 0
      %1145 = vmatpush1.bf16.msra.mxu0 0
      %1146 = vmatprep.subr.bf16.mxu0 0
      %1147 = vmatpush1.bf16.msra.mxu0 0
      %1148 = vmatprep.subr.bf16.mxu0 0
      %1149 = vmatpush1.bf16.msra.mxu0 0
      %1150 = vmatprep.subr.bf16.mxu0 0
      %1151 = vmatpush1.bf16.msra.mxu0 0
      %1152 = vmatprep.subr.bf16.mxu0 0
      %1153 = vmatpush1.bf16.msra.mxu0 0
      %1154 = vmatprep.subr.bf16.mxu0 0
      %1155 = vmatpush1.bf16.msra.mxu0 0
      %1156 = vmatprep.subr.bf16.mxu0 0
      %1157 = vmatpush1.bf16.msra.mxu0 0
      %1158 = vmatprep.subr.bf16.mxu0 0
      %1159 = vmatpush1.bf16.msra.mxu0 0
      %1160 = vmatprep.mubr.bf16.mxu0 0
      %1161 = vmatmul.mubr.bf16.gmra.mrb[0].mxu0 %v1114
      %v1162 = vpop.f32.mrb[0].mxu0
      %v1163 = vadd.f32 0.0, %v1162
      %v1164 = vpop.f32.mrb[0].mxu0
      %v1165 = vadd.f32 0.0, %v1164
      %v1166 = vpop.f32.mrb[0].mxu0
      %v1167 = vadd.f32 0.0, %v1166
      %v1168 = vpop.f32.mrb[0].mxu0
      %v1169 = vadd.f32 0.0, %v1168
      %1170 = vmatprep.mubr.bf16.mxu0 0
      %1171 = vmatmul.mubr.bf16.gmra.mrb[0].mxu0 %v1117
      %v1172 = vpop.f32.mrb[0].mxu0
      %v1173 = vadd.f32 0.0, %v1172
      %v1174 = vpop.f32.mrb[0].mxu0
      %v1175 = vadd.f32 0.0, %v1174
      %v1176 = vpop.f32.mrb[0].mxu0
      %v1177 = vadd.f32 0.0, %v1176
      %v1178 = vpop.f32.mrb[0].mxu0
      %v1179 = vadd.f32 0.0, %v1178
      %1180 = vdwg.mxu0
      %1181 = vmatprep.subr.bf16.mxu0 0
      %1182 = vmatpush1.bf16.msra.mxu0 %v1126
      %1183 = vmatprep.subr.bf16.mxu0 0
      %1184 = vmatpush1.bf16.msra.mxu0 0
      %1185 = vmatprep.subr.bf16.mxu0 0
      %1186 = vmatpush1.bf16.msra.mxu0 0
      %1187 = vmatprep.subr.bf16.mxu0 0
      %1188 = vmatpush1.bf16.msra.mxu0 0
      %1189 = vmatprep.subr.bf16.mxu0 0
      %1190 = vmatpush1.bf16.msra.mxu0 0
      %1191 = vmatprep.subr.bf16.mxu0 0
      %1192 = vmatpush1.bf16.msra.mxu0 0
      %1193 = vmatprep.subr.bf16.mxu0 0
      %1194 = vmatpush1.bf16.msra.mxu0 0
      %1195 = vmatprep.subr.bf16.mxu0 0
      %1196 = vmatpush1.bf16.msra.mxu0 0
      %1197 = vmatprep.subr.bf16.mxu0 0
      %1198 = vmatpush1.bf16.msra.mxu0 0
      %1199 = vmatprep.subr.bf16.mxu0 0
      %1200 = vmatpush1.bf16.msra.mxu0 0
      %1201 = vmatprep.subr.bf16.mxu0 0
      %1202 = vmatpush1.bf16.msra.mxu0 0
      %1203 = vmatprep.subr.bf16.mxu0 0
      %1204 = vmatpush1.bf16.msra.mxu0 0
      %1205 = vmatprep.subr.bf16.mxu0 0
      %1206 = vmatpush1.bf16.msra.mxu0 0
      %1207 = vmatprep.subr.bf16.mxu0 0
      %1208 = vmatpush1.bf16.msra.mxu0 0
      %1209 = vmatprep.subr.bf16.mxu0 0
      %1210 = vmatpush1.bf16.msra.mxu0 0
      %1211 = vmatprep.subr.bf16.mxu0 0
      %1212 = vmatpush1.bf16.msra.mxu0 0
      %1213 = vmatprep.mubr.bf16.mxu0 0
      %1214 = vmatmul.mubr.bf16.gmra.mrb[0].mxu0 %v1114
      %v1215 = vpop.f32.mrb[0].mxu0
      %v1216 = vadd.f32 0.0, %v1215
      %v1217 = vpop.f32.mrb[0].mxu0
      %v1218 = vpop.f32.mrb[0].mxu0
      %v1219 = vadd.f32 0.0, %v1218
      %v1220 = vpop.f32.mrb[0].mxu0
      %1221 = vmatprep.mubr.bf16.mxu0 0
      %1222 = vmatmul.mubr.bf16.gmra.mrb[0].mxu0 %v1117
      %v1223 = vpop.f32.mrb[0].mxu0
      %v1224 = vadd.f32 0.0, %v1223
      %v1225 = vpop.f32.mrb[0].mxu0
      %v1226 = vpop.f32.mrb[0].mxu0
      %v1227 = vadd.f32 0.0, %v1226
      %v1228 = vpop.f32.mrb[0].mxu0
      %1229 = vdwg.mxu0
      %v1230 = vadd.f32 %v1059, %v1163
      %v1231 = vadd.f32 %v1060, %v1165
      %v1232 = vadd.f32 %v1061, %v1216
      %v1233 = vadd.f32 %v1062, %v1167
      %v1234 = vadd.f32 %v1063, %v1169
      %v1235 = vadd.f32 %v1064, %v1219
      %v1236 = vadd.f32 %v1065, %v1173
      %v1237 = vadd.f32 %v1066, %v1175
      %v1238 = vadd.f32 %v1067, %v1224
      %v1239 = vadd.f32 %v1068, %v1177
      %v1240 = vadd.f32 %v1069, %v1179
      %v1241 = vadd.f32 %v1070, %v1227
      %s1242 = scalar_lea.vmem %s0, 96
      %v1243 = vld [vmem:[%s1242] sm:$0xf]
      %v1244 = vld [vmem:[%s1242 + $0x4] sm:$0xf]
      %v1245 = vld [vmem:[%s1242 + $0x8] sm:$0xf]
      %v1246 = vld [vmem:[%s1242 + $0xc] sm:$0xf]
      %v1247 = vld [vmem:[%s249] sm:$0x3f]
      %v1252 = vunpack.c.l.b16 %v1243
      %v1253 = vunpack.c.l.b16 %v1244
      %v1254 = vunpack.c.l.b16 %v1245
      %v1255 = vunpack.c.l.b16 %v1246
      %v1256 = vpack.c.b16 %v1253, %v1252
      %v1257 = vpack.c.b16 %v1255, %v1254
      %v1259 = vcombine.high %v1247, %v1247
      %v1261 = vunpack.c.l.s4 1983009808
      %v1262 = vunpack.c.0.s8 %v1261
      %v1263 = vlaneseq
      %v1264 = vshrl.u32 %v1263, 7
      %v1265 = vsub.s32 %v1262, %v1264
      %v1266 = vrot.slane %v1247, %v1265
      %v1268 = vunpack.c.l.s4 1983009808
      %v1269 = vunpack.c.0.s8 %v1268
      %v1270 = vlaneseq
      %v1271 = vshrl.u32 %v1270, 7
      %v1272 = vsub.s32 %v1269, %v1271
      %v1273 = vrot.slane %v1259, %v1272
      %v1274 = vcombine.high %v1266, %v1266
      %1275 = vrot.lane.b32.xlu0 %v1266, 92
      %v1276 = vpop.permute.xlu0 %1275
      %1277 = vrot.lane.b32.xlu0 %v1274, 92
      %v1278 = vpop.permute.xlu0 %1277
      %1279 = vrot.lane.b32.xlu0 %v1273, 92
      %v1280 = vpop.permute.xlu0 %1279
      %vm1281 = vcmask 752640
      %v1282 = vsel %vm1281, %v1276, %v1278
      %v1283 = vsel %vm1281, %v1278, %v1280
      %v1285 = vsel %vm312, %v1256, 0
      %v1288 = vsel %vm312, %v1257, 0
      %v1291 = vsel %vm319, %v1282, 0
      %v1294 = vsel %vm319, %v1283, 0
      %v1297 = vsel %vm319, %v1280, 0
      %1299 = vmatprep.subr.bf16.mxu0 %v1294
      %1300 = vmatpush1.bf16.msra.mxu0 %v1291
      %1301 = vmatprep.subr.bf16.mxu0 0
      %1302 = vmatpush1.bf16.msra.mxu0 0
      %1303 = vmatprep.subr.bf16.mxu0 0
      %1304 = vmatpush1.bf16.msra.mxu0 0
      %1305 = vmatprep.subr.bf16.mxu0 0
      %1306 = vmatpush1.bf16.msra.mxu0 0
      %1307 = vmatprep.subr.bf16.mxu0 0
      %1308 = vmatpush1.bf16.msra.mxu0 0
      %1309 = vmatprep.subr.bf16.mxu0 0
      %1310 = vmatpush1.bf16.msra.mxu0 0
      %1311 = vmatprep.subr.bf16.mxu0 0
      %1312 = vmatpush1.bf16.msra.mxu0 0
      %1313 = vmatprep.subr.bf16.mxu0 0
      %1314 = vmatpush1.bf16.msra.mxu0 0
      %1315 = vmatprep.subr.bf16.mxu0 0
      %1316 = vmatpush1.bf16.msra.mxu0 0
      %1317 = vmatprep.subr.bf16.mxu0 0
      %1318 = vmatpush1.bf16.msra.mxu0 0
      %1319 = vmatprep.subr.bf16.mxu0 0
      %1320 = vmatpush1.bf16.msra.mxu0 0
      %1321 = vmatprep.subr.bf16.mxu0 0
      %1322 = vmatpush1.bf16.msra.mxu0 0
      %1323 = vmatprep.subr.bf16.mxu0 0
      %1324 = vmatpush1.bf16.msra.mxu0 0
      %1325 = vmatprep.subr.bf16.mxu0 0
      %1326 = vmatpush1.bf16.msra.mxu0 0
      %1327 = vmatprep.subr.bf16.mxu0 0
      %1328 = vmatpush1.bf16.msra.mxu0 0
      %1329 = vmatprep.subr.bf16.mxu0 0
      %1330 = vmatpush1.bf16.msra.mxu0 0
      %1331 = vmatprep.mubr.bf16.mxu0 0
      %1332 = vmatmul.mubr.bf16.gmra.mrb[0].mxu0 %v1285
      %v1333 = vpop.f32.mrb[0].mxu0
      %v1334 = vadd.f32 0.0, %v1333
      %v1335 = vpop.f32.mrb[0].mxu0
      %v1336 = vadd.f32 0.0, %v1335
      %v1337 = vpop.f32.mrb[0].mxu0
      %v1338 = vadd.f32 0.0, %v1337
      %v1339 = vpop.f32.mrb[0].mxu0
      %v1340 = vadd.f32 0.0, %v1339
      %1341 = vmatprep.mubr.bf16.mxu0 0
      %1342 = vmatmul.mubr.bf16.gmra.mrb[0].mxu0 %v1288
      %v1343 = vpop.f32.mrb[0].mxu0
      %v1344 = vadd.f32 0.0, %v1343
      %v1345 = vpop.f32.mrb[0].mxu0
      %v1346 = vadd.f32 0.0, %v1345
      %v1347 = vpop.f32.mrb[0].mxu0
      %v1348 = vadd.f32 0.0, %v1347
      %v1349 = vpop.f32.mrb[0].mxu0
      %v1350 = vadd.f32 0.0, %v1349
      %1351 = vdwg.mxu0
      %1352 = vmatprep.subr.bf16.mxu0 0
      %1353 = vmatpush1.bf16.msra.mxu0 %v1297
      %1354 = vmatprep.subr.bf16.mxu0 0
      %1355 = vmatpush1.bf16.msra.mxu0 0
      %1356 = vmatprep.subr.bf16.mxu0 0
      %1357 = vmatpush1.bf16.msra.mxu0 0
      %1358 = vmatprep.subr.bf16.mxu0 0
      %1359 = vmatpush1.bf16.msra.mxu0 0
      %1360 = vmatprep.subr.bf16.mxu0 0
      %1361 = vmatpush1.bf16.msra.mxu0 0
      %1362 = vmatprep.subr.bf16.mxu0 0
      %1363 = vmatpush1.bf16.msra.mxu0 0
      %1364 = vmatprep.subr.bf16.mxu0 0
      %1365 = vmatpush1.bf16.msra.mxu0 0
      %1366 = vmatprep.subr.bf16.mxu0 0
      %1367 = vmatpush1.bf16.msra.mxu0 0
      %1368 = vmatprep.subr.bf16.mxu0 0
      %1369 = vmatpush1.bf16.msra.mxu0 0
      %1370 = vmatprep.subr.bf16.mxu0 0
      %1371 = vmatpush1.bf16.msra.mxu0 0
      %1372 = vmatprep.subr.bf16.mxu0 0
      %1373 = vmatpush1.bf16.msra.mxu0 0
      %1374 = vmatprep.subr.bf16.mxu0 0
      %1375 = vmatpush1.bf16.msra.mxu0 0
      %1376 = vmatprep.subr.bf16.mxu0 0
      %1377 = vmatpush1.bf16.msra.mxu0 0
      %1378 = vmatprep.subr.bf16.mxu0 0
      %1379 = vmatpush1.bf16.msra.mxu0 0
      %1380 = vmatprep.subr.bf16.mxu0 0
      %1381 = vmatpush1.bf16.msra.mxu0 0
      %1382 = vmatprep.subr.bf16.mxu0 0
      %1383 = vmatpush1.bf16.msra.mxu0 0
      %1384 = vmatprep.mubr.bf16.mxu0 0
      %1385 = vmatmul.mubr.bf16.gmra.mrb[0].mxu0 %v1285
      %v1386 = vpop.f32.mrb[0].mxu0
      %v1387 = vadd.f32 0.0, %v1386
      %v1388 = vpop.f32.mrb[0].mxu0
      %v1389 = vpop.f32.mrb[0].mxu0
      %v1390 = vadd.f32 0.0, %v1389
      %v1391 = vpop.f32.mrb[0].mxu0
      %1392 = vmatprep.mubr.bf16.mxu0 0
      %1393 = vmatmul.mubr.bf16.gmra.mrb[0].mxu0 %v1288
      %v1394 = vpop.f32.mrb[0].mxu0
      %v1395 = vadd.f32 0.0, %v1394
      %v1396 = vpop.f32.mrb[0].mxu0
      %v1397 = vpop.f32.mrb[0].mxu0
      %v1398 = vadd.f32 0.0, %v1397
      %v1399 = vpop.f32.mrb[0].mxu0
      %1400 = vdwg.mxu0
      %v1401 = vadd.f32 %v1230, %v1334
      %v1402 = vadd.f32 %v1231, %v1336
      %v1403 = vadd.f32 %v1232, %v1387
      %v1404 = vadd.f32 %v1233, %v1338
      %v1405 = vadd.f32 %v1234, %v1340
      %v1406 = vadd.f32 %v1235, %v1390
      %v1407 = vadd.f32 %v1236, %v1344
      %v1408 = vadd.f32 %v1237, %v1346
      %v1409 = vadd.f32 %v1238, %v1395
      %v1410 = vadd.f32 %v1239, %v1348
      %v1411 = vadd.f32 %v1240, %v1350
      %v1412 = vadd.f32 %v1241, %v1398
      %s1413 = scalar_lea.vmem %s0, 112
      %v1414 = vld [vmem:[%s1413] sm:$0xf]
      %v1415 = vld [vmem:[%s1413 + $0x4] sm:$0xf]
      %v1416 = vld [vmem:[%s1413 + $0x8] sm:$0xf]
      %v1417 = vld [vmem:[%s1413 + $0xc] sm:$0xf]
      %v1418 = vld [vmem:[%s249] sm:$0x3f]
      %v1423 = vunpack.c.l.b16 %v1414
      %v1424 = vunpack.c.l.b16 %v1415
      %v1425 = vunpack.c.l.b16 %v1416
      %v1426 = vunpack.c.l.b16 %v1417
      %v1427 = vpack.c.b16 %v1424, %v1423
      %v1428 = vpack.c.b16 %v1426, %v1425
      %v1430 = vcombine.high %v1418, %v1418
      %v1432 = vunpack.c.l.s4 1983009808
      %v1433 = vunpack.c.0.s8 %v1432
      %v1434 = vlaneseq
      %v1435 = vshrl.u32 %v1434, 7
      %v1436 = vsub.s32 %v1433, %v1435
      %v1437 = vrot.slane %v1418, %v1436
      %v1439 = vunpack.c.l.s4 1983009808
      %v1440 = vunpack.c.0.s8 %v1439
      %v1441 = vlaneseq
      %v1442 = vshrl.u32 %v1441, 7
      %v1443 = vsub.s32 %v1440, %v1442
      %v1444 = vrot.slane %v1430, %v1443
      %v1445 = vcombine.high %v1437, %v1437
      %1446 = vrot.lane.b32.xlu0 %v1437, 91
      %v1447 = vpop.permute.xlu0 %1446
      %1448 = vrot.lane.b32.xlu0 %v1445, 91
      %v1449 = vpop.permute.xlu0 %1448
      %1450 = vrot.lane.b32.xlu0 %v1444, 91
      %v1451 = vpop.permute.xlu0 %1450
      %vm1452 = vcmask 744448
      %v1453 = vsel %vm1452, %v1447, %v1449
      %v1454 = vsel %vm1452, %v1449, %v1451
      %v1456 = vsel %vm312, %v1427, 0
      %v1459 = vsel %vm312, %v1428, 0
      %v1462 = vsel %vm319, %v1453, 0
      %v1465 = vsel %vm319, %v1454, 0
      %v1468 = vsel %vm319, %v1451, 0
      %1470 = vmatprep.subr.bf16.mxu0 %v1465
      %1471 = vmatpush1.bf16.msra.mxu0 %v1462
      %1472 = vmatprep.subr.bf16.mxu0 0
      %1473 = vmatpush1.bf16.msra.mxu0 0
      %1474 = vmatprep.subr.bf16.mxu0 0
      %1475 = vmatpush1.bf16.msra.mxu0 0
      %1476 = vmatprep.subr.bf16.mxu0 0
      %1477 = vmatpush1.bf16.msra.mxu0 0
      %1478 = vmatprep.subr.bf16.mxu0 0
      %1479 = vmatpush1.bf16.msra.mxu0 0
      %1480 = vmatprep.subr.bf16.mxu0 0
      %1481 = vmatpush1.bf16.msra.mxu0 0
      %1482 = vmatprep.subr.bf16.mxu0 0
      %1483 = vmatpush1.bf16.msra.mxu0 0
      %1484 = vmatprep.subr.bf16.mxu0 0
      %1485 = vmatpush1.bf16.msra.mxu0 0
      %1486 = vmatprep.subr.bf16.mxu0 0
      %1487 = vmatpush1.bf16.msra.mxu0 0
      %1488 = vmatprep.subr.bf16.mxu0 0
      %1489 = vmatpush1.bf16.msra.mxu0 0
      %1490 = vmatprep.subr.bf16.mxu0 0
      %1491 = vmatpush1.bf16.msra.mxu0 0
      %1492 = vmatprep.subr.bf16.mxu0 0
      %1493 = vmatpush1.bf16.msra.mxu0 0
      %1494 = vmatprep.subr.bf16.mxu0 0
      %1495 = vmatpush1.bf16.msra.mxu0 0
      %1496 = vmatprep.subr.bf16.mxu0 0
      %1497 = vmatpush1.bf16.msra.mxu0 0
      %1498 = vmatprep.subr.bf16.mxu0 0
      %1499 = vmatpush1.bf16.msra.mxu0 0
      %1500 = vmatprep.subr.bf16.mxu0 0
      %1501 = vmatpush1.bf16.msra.mxu0 0
      %1502 = vmatprep.mubr.bf16.mxu0 0
      %1503 = vmatmul.mubr.bf16.gmra.mrb[0].mxu0 %v1456
      %v1504 = vpop.f32.mrb[0].mxu0
      %v1505 = vadd.f32 0.0, %v1504
      %v1506 = vpop.f32.mrb[0].mxu0
      %v1507 = vadd.f32 0.0, %v1506
      %v1508 = vpop.f32.mrb[0].mxu0
      %v1509 = vadd.f32 0.0, %v1508
      %v1510 = vpop.f32.mrb[0].mxu0
      %v1511 = vadd.f32 0.0, %v1510
      %1512 = vmatprep.mubr.bf16.mxu0 0
      %1513 = vmatmul.mubr.bf16.gmra.mrb[0].mxu0 %v1459
      %v1514 = vpop.f32.mrb[0].mxu0
      %v1515 = vadd.f32 0.0, %v1514
      %v1516 = vpop.f32.mrb[0].mxu0
      %v1517 = vadd.f32 0.0, %v1516
      %v1518 = vpop.f32.mrb[0].mxu0
      %v1519 = vadd.f32 0.0, %v1518
      %v1520 = vpop.f32.mrb[0].mxu0
      %v1521 = vadd.f32 0.0, %v1520
      %1522 = vdwg.mxu0
      %1523 = vmatprep.subr.bf16.mxu0 0
      %1524 = vmatpush1.bf16.msra.mxu0 %v1468
      %1525 = vmatprep.subr.bf16.mxu0 0
      %1526 = vmatpush1.bf16.msra.mxu0 0
      %1527 = vmatprep.subr.bf16.mxu0 0
      %1528 = vmatpush1.bf16.msra.mxu0 0
      %1529 = vmatprep.subr.bf16.mxu0 0
      %1530 = vmatpush1.bf16.msra.mxu0 0
      %1531 = vmatprep.subr.bf16.mxu0 0
      %1532 = vmatpush1.bf16.msra.mxu0 0
      %1533 = vmatprep.subr.bf16.mxu0 0
      %1534 = vmatpush1.bf16.msra.mxu0 0
      %1535 = vmatprep.subr.bf16.mxu0 0
      %1536 = vmatpush1.bf16.msra.mxu0 0
      %1537 = vmatprep.subr.bf16.mxu0 0
      %1538 = vmatpush1.bf16.msra.mxu0 0
      %1539 = vmatprep.subr.bf16.mxu0 0
      %1540 = vmatpush1.bf16.msra.mxu0 0
      %1541 = vmatprep.subr.bf16.mxu0 0
      %1542 = vmatpush1.bf16.msra.mxu0 0
      %1543 = vmatprep.subr.bf16.mxu0 0
      %1544 = vmatpush1.bf16.msra.mxu0 0
      %1545 = vmatprep.subr.bf16.mxu0 0
      %1546 = vmatpush1.bf16.msra.mxu0 0
      %1547 = vmatprep.subr.bf16.mxu0 0
      %1548 = vmatpush1.bf16.msra.mxu0 0
      %1549 = vmatprep.subr.bf16.mxu0 0
      %1550 = vmatpush1.bf16.msra.mxu0 0
      %1551 = vmatprep.subr.bf16.mxu0 0
      %1552 = vmatpush1.bf16.msra.mxu0 0
      %1553 = vmatprep.subr.bf16.mxu0 0
      %1554 = vmatpush1.bf16.msra.mxu0 0
      %1555 = vmatprep.mubr.bf16.mxu0 0
      %1556 = vmatmul.mubr.bf16.gmra.mrb[0].mxu0 %v1456
      %v1557 = vpop.f32.mrb[0].mxu0
      %v1558 = vadd.f32 0.0, %v1557
      %v1559 = vpop.f32.mrb[0].mxu0
      %v1560 = vpop.f32.mrb[0].mxu0
      %v1561 = vadd.f32 0.0, %v1560
      %v1562 = vpop.f32.mrb[0].mxu0
      %1563 = vmatprep.mubr.bf16.mxu0 0
      %1564 = vmatmul.mubr.bf16.gmra.mrb[0].mxu0 %v1459
      %v1565 = vpop.f32.mrb[0].mxu0
      %v1566 = vadd.f32 0.0, %v1565
      %v1567 = vpop.f32.mrb[0].mxu0
      %v1568 = vpop.f32.mrb[0].mxu0
      %v1569 = vadd.f32 0.0, %v1568
      %v1570 = vpop.f32.mrb[0].mxu0
      %1571 = vdwg.mxu0
      %v1572 = vadd.f32 %v1401, %v1505
      %v1573 = vadd.f32 %v1402, %v1507
      %v1574 = vadd.f32 %v1403, %v1558
      %v1575 = vadd.f32 %v1404, %v1509
      %v1576 = vadd.f32 %v1405, %v1511
      %v1577 = vadd.f32 %v1406, %v1561
      %v1578 = vadd.f32 %v1407, %v1515
      %v1579 = vadd.f32 %v1408, %v1517
      %v1580 = vadd.f32 %v1409, %v1566
      %v1581 = vadd.f32 %v1410, %v1519
      %v1582 = vadd.f32 %v1411, %v1521
      %v1583 = vadd.f32 %v1412, %v1569
      %s1584 = scalar_lea.vmem %s0, 128
      %v1585 = vld [vmem:[%s1584] sm:$0xf]
      %v1586 = vld [vmem:[%s1584 + $0x4] sm:$0xf]
      %v1587 = vld [vmem:[%s1584 + $0x8] sm:$0xf]
      %v1588 = vld [vmem:[%s1584 + $0xc] sm:$0xf]
      %v1589 = vld [vmem:[%s249] sm:$0x3f]
      %v1594 = vunpack.c.l.b16 %v1585
      %v1595 = vunpack.c.l.b16 %v1586
      %v1596 = vunpack.c.l.b16 %v1587
      %v1597 = vunpack.c.l.b16 %v1588
      %v1598 = vpack.c.b16 %v1595, %v1594
      %v1599 = vpack.c.b16 %v1597, %v1596
      %v1601 = vcombine.high %v1589, %v1589
      %v1603 = vunpack.c.l.s4 1983009808
      %v1604 = vunpack.c.0.s8 %v1603
      %v1605 = vlaneseq
      %v1606 = vshrl.u32 %v1605, 7
      %v1607 = vsub.s32 %v1604, %v1606
      %v1608 = vrot.slane %v1589, %v1607
      %v1610 = vunpack.c.l.s4 1983009808
      %v1611 = vunpack.c.0.s8 %v1610
      %v1612 = vlaneseq
      %v1613 = vshrl.u32 %v1612, 7
      %v1614 = vsub.s32 %v1611, %v1613
      %v1615 = vrot.slane %v1601, %v1614
      %v1616 = vcombine.high %v1608, %v1608
      %1617 = vrot.lane.b32.xlu0 %v1608, 90
      %v1618 = vpop.permute.xlu0 %1617
      %1619 = vrot.lane.b32.xlu0 %v1616, 90
      %v1620 = vpop.permute.xlu0 %1619
      %1621 = vrot.lane.b32.xlu0 %v1615, 90
      %v1622 = vpop.permute.xlu0 %1621
      %vm1623 = vcmask 736256
      %v1624 = vsel %vm1623, %v1618, %v1620
      %v1625 = vsel %vm1623, %v1620, %v1622
      %v1627 = vsel %vm312, %v1598, 0
      %v1630 = vsel %vm312, %v1599, 0
      %v1633 = vsel %vm319, %v1624, 0
      %v1636 = vsel %vm319, %v1625, 0
      %v1639 = vsel %vm319, %v1622, 0
      %1641 = vmatprep.subr.bf16.mxu0 %v1636
      %1642 = vmatpush1.bf16.msra.mxu0 %v1633
      %1643 = vmatprep.subr.bf16.mxu0 0
      %1644 = vmatpush1.bf16.msra.mxu0 0
      %1645 = vmatprep.subr.bf16.mxu0 0
      %1646 = vmatpush1.bf16.msra.mxu0 0
      %1647 = vmatprep.subr.bf16.mxu0 0
      %1648 = vmatpush1.bf16.msra.mxu0 0
      %1649 = vmatprep.subr.bf16.mxu0 0
      %1650 = vmatpush1.bf16.msra.mxu0 0
      %1651 = vmatprep.subr.bf16.mxu0 0
      %1652 = vmatpush1.bf16.msra.mxu0 0
      %1653 = vmatprep.subr.bf16.mxu0 0
      %1654 = vmatpush1.bf16.msra.mxu0 0
      %1655 = vmatprep.subr.bf16.mxu0 0
      %1656 = vmatpush1.bf16.msra.mxu0 0
      %1657 = vmatprep.subr.bf16.mxu0 0
      %1658 = vmatpush1.bf16.msra.mxu0 0
      %1659 = vmatprep.subr.bf16.mxu0 0
      %1660 = vmatpush1.bf16.msra.mxu0 0
      %1661 = vmatprep.subr.bf16.mxu0 0
      %1662 = vmatpush1.bf16.msra.mxu0 0
      %1663 = vmatprep.subr.bf16.mxu0 0
      %1664 = vmatpush1.bf16.msra.mxu0 0
      %1665 = vmatprep.subr.bf16.mxu0 0
      %1666 = vmatpush1.bf16.msra.mxu0 0
      %1667 = vmatprep.subr.bf16.mxu0 0
      %1668 = vmatpush1.bf16.msra.mxu0 0
      %1669 = vmatprep.subr.bf16.mxu0 0
      %1670 = vmatpush1.bf16.msra.mxu0 0
      %1671 = vmatprep.subr.bf16.mxu0 0
      %1672 = vmatpush1.bf16.msra.mxu0 0
      %1673 = vmatprep.mubr.bf16.mxu0 0
      %1674 = vmatmul.mubr.bf16.gmra.mrb[0].mxu0 %v1627
      %v1675 = vpop.f32.mrb[0].mxu0
      %v1676 = vadd.f32 0.0, %v1675
      %v1677 = vpop.f32.mrb[0].mxu0
      %v1678 = vadd.f32 0.0, %v1677
      %v1679 = vpop.f32.mrb[0].mxu0
      %v1680 = vadd.f32 0.0, %v1679
      %v1681 = vpop.f32.mrb[0].mxu0
      %v1682 = vadd.f32 0.0, %v1681
      %1683 = vmatprep.mubr.bf16.mxu0 0
      %1684 = vmatmul.mubr.bf16.gmra.mrb[0].mxu0 %v1630
      %v1685 = vpop.f32.mrb[0].mxu0
      %v1686 = vadd.f32 0.0, %v1685
      %v1687 = vpop.f32.mrb[0].mxu0
      %v1688 = vadd.f32 0.0, %v1687
      %v1689 = vpop.f32.mrb[0].mxu0
      %v1690 = vadd.f32 0.0, %v1689
      %v1691 = vpop.f32.mrb[0].mxu0
      %v1692 = vadd.f32 0.0, %v1691
      %1693 = vdwg.mxu0
      %1694 = vmatprep.subr.bf16.mxu0 0
      %1695 = vmatpush1.bf16.msra.mxu0 %v1639
      %1696 = vmatprep.subr.bf16.mxu0 0
      %1697 = vmatpush1.bf16.msra.mxu0 0
      %1698 = vmatprep.subr.bf16.mxu0 0
      %1699 = vmatpush1.bf16.msra.mxu0 0
      %1700 = vmatprep.subr.bf16.mxu0 0
      %1701 = vmatpush1.bf16.msra.mxu0 0
      %1702 = vmatprep.subr.bf16.mxu0 0
      %1703 = vmatpush1.bf16.msra.mxu0 0
      %1704 = vmatprep.subr.bf16.mxu0 0
      %1705 = vmatpush1.bf16.msra.mxu0 0
      %1706 = vmatprep.subr.bf16.mxu0 0
      %1707 = vmatpush1.bf16.msra.mxu0 0
      %1708 = vmatprep.subr.bf16.mxu0 0
      %1709 = vmatpush1.bf16.msra.mxu0 0
      %1710 = vmatprep.subr.bf16.mxu0 0
      %1711 = vmatpush1.bf16.msra.mxu0 0
      %1712 = vmatprep.subr.bf16.mxu0 0
      %1713 = vmatpush1.bf16.msra.mxu0 0
      %1714 = vmatprep.subr.bf16.mxu0 0
      %1715 = vmatpush1.bf16.msra.mxu0 0
      %1716 = vmatprep.subr.bf16.mxu0 0
      %1717 = vmatpush1.bf16.msra.mxu0 0
      %1718 = vmatprep.subr.bf16.mxu0 0
      %1719 = vmatpush1.bf16.msra.mxu0 0
      %1720 = vmatprep.subr.bf16.mxu0 0
      %1721 = vmatpush1.bf16.msra.mxu0 0
      %1722 = vmatprep.subr.bf16.mxu0 0
      %1723 = vmatpush1.bf16.msra.mxu0 0
      %1724 = vmatprep.subr.bf16.mxu0 0
      %1725 = vmatpush1.bf16.msra.mxu0 0
      %1726 = vmatprep.mubr.bf16.mxu0 0
      %1727 = vmatmul.mubr.bf16.gmra.mrb[0].mxu0 %v1627
      %v1728 = vpop.f32.mrb[0].mxu0
      %v1729 = vadd.f32 0.0, %v1728
      %v1730 = vpop.f32.mrb[0].mxu0
      %v1731 = vpop.f32.mrb[0].mxu0
      %v1732 = vadd.f32 0.0, %v1731
      %v1733 = vpop.f32.mrb[0].mxu0
      %1734 = vmatprep.mubr.bf16.mxu0 0
      %1735 = vmatmul.mubr.bf16.gmra.mrb[0].mxu0 %v1630
      %v1736 = vpop.f32.mrb[0].mxu0
      %v1737 = vadd.f32 0.0, %v1736
      %v1738 = vpop.f32.mrb[0].mxu0
      %v1739 = vpop.f32.mrb[0].mxu0
      %v1740 = vadd.f32 0.0, %v1739
      %v1741 = vpop.f32.mrb[0].mxu0
      %1742 = vdwg.mxu0
      %v1743 = vadd.f32 %v1572, %v1676
      %v1744 = vadd.f32 %v1573, %v1678
      %v1745 = vadd.f32 %v1574, %v1729
      %v1746 = vadd.f32 %v1575, %v1680
      %v1747 = vadd.f32 %v1576, %v1682
      %v1748 = vadd.f32 %v1577, %v1732
      %v1749 = vadd.f32 %v1578, %v1686
      %v1750 = vadd.f32 %v1579, %v1688
      %v1751 = vadd.f32 %v1580, %v1737
      %v1752 = vadd.f32 %v1581, %v1690
      %v1753 = vadd.f32 %v1582, %v1692
      %v1754 = vadd.f32 %v1583, %v1740
      %v1755 = vld [vmem:[%s254] sm:$0xff]
      %v1756 = vld [vmem:[%s254 + $0x8] sm:$0xff]
      %v1757 = vld [vmem:[%s254 + $0x10] sm:$0xff]
      %v1758 = vld [vmem:[%s254 + $0x18] sm:$0xff]
      %1760 = vset.pattern.permute.xlu0 0
      %1761 = vperm.xlu0 %1760, %v1755
      %v1762 = vpop.permute.xlu0 %1761
      %1765 = vset.pattern.permute.xlu0 0
      %1766 = vperm.xlu0 %1765, %v1756
      %v1767 = vpop.permute.xlu0 %1766
      %1770 = vset.pattern.permute.xlu0 0
      %1771 = vperm.xlu0 %1770, %v1757
      %v1772 = vpop.permute.xlu0 %1771
      %1775 = vset.pattern.permute.xlu0 0
      %1776 = vperm.xlu0 %1775, %v1758
      %v1777 = vpop.permute.xlu0 %1776
      %v1779 = vmul.f32 %v1743, %v1762
      %v1780 = vmul.f32 %v1744, %v1762
      %v1781 = vmul.f32 %v1745, %v1762
      %v1782 = vmul.f32 %v1746, %v1767
      %v1783 = vmul.f32 %v1747, %v1767
      %v1784 = vmul.f32 %v1748, %v1767
      %v1785 = vmul.f32 %v1749, %v1772
      %v1786 = vmul.f32 %v1750, %v1772
      %v1787 = vmul.f32 %v1751, %v1772
      %v1788 = vmul.f32 %v1752, %v1777
      %v1789 = vmul.f32 %v1753, %v1777
      %v1790 = vmul.f32 %v1754, %v1777
      %v1791 = vld [vmem:[%s3] sm:$0xff]
      %v1792 = vld [vmem:[%s3 + $0x8] sm:$0xff]
      %v1793 = vld [vmem:[%s3 + $0x10] sm:$0xff]
      %v1794 = vld [vmem:[%s3 + $0x18] sm:$0xff]
      %1796 = vset.pattern.permute.xlu0 0
      %1797 = vperm.xlu0 %1796, %v1791
      %v1798 = vpop.permute.xlu0 %1797
      %1801 = vset.pattern.permute.xlu0 0
      %1802 = vperm.xlu0 %1801, %v1792
      %v1803 = vpop.permute.xlu0 %1802
      %1806 = vset.pattern.permute.xlu0 0
      %1807 = vperm.xlu0 %1806, %v1793
      %v1808 = vpop.permute.xlu0 %1807
      %1811 = vset.pattern.permute.xlu0 0
      %1812 = vperm.xlu0 %1811, %v1794
      %v1813 = vpop.permute.xlu0 %1812
      %v1815 = vadd.f32 %v1779, %v1798
      %v1816 = vadd.f32 %v1780, %v1798
      %v1817 = vadd.f32 %v1781, %v1798
      %v1818 = vadd.f32 %v1782, %v1803
      %v1819 = vadd.f32 %v1783, %v1803
      %v1820 = vadd.f32 %v1784, %v1803
      %v1821 = vadd.f32 %v1785, %v1808
      %v1822 = vadd.f32 %v1786, %v1808
      %v1823 = vadd.f32 %v1787, %v1808
      %v1824 = vadd.f32 %v1788, %v1813
      %v1825 = vadd.f32 %v1789, %v1813
      %v1826 = vadd.f32 %v1790, %v1813
      %vm1827 = vcmp.ge.f32.partialorder %v1815, 0.0
      %vm1828 = vcmp.ge.f32.partialorder %v1816, 0.0
      %vm1829 = vcmp.ge.f32.partialorder %v1817, 0.0
      %vm1830 = vcmp.ge.f32.partialorder %v1818, 0.0
      %vm1831 = vcmp.ge.f32.partialorder %v1819, 0.0
      %vm1832 = vcmp.ge.f32.partialorder %v1820, 0.0
      %vm1833 = vcmp.ge.f32.partialorder %v1821, 0.0
      %vm1834 = vcmp.ge.f32.partialorder %v1822, 0.0
      %vm1835 = vcmp.ge.f32.partialorder %v1823, 0.0
      %vm1836 = vcmp.ge.f32.partialorder %v1824, 0.0
      %vm1837 = vcmp.ge.f32.partialorder %v1825, 0.0
      %vm1838 = vcmp.ge.f32.partialorder %v1826, 0.0
      %v1839 = vmul.f32 %v1815, 0.2
      %v1840 = vmul.f32 %v1816, 0.2
      %v1841 = vmul.f32 %v1817, 0.2
      %v1842 = vmul.f32 %v1818, 0.2
      %v1843 = vmul.f32 %v1819, 0.2
      %v1844 = vmul.f32 %v1820, 0.2
      %v1845 = vmul.f32 %v1821, 0.2
      %v1846 = vmul.f32 %v1822, 0.2
      %v1847 = vmul.f32 %v1823, 0.2
      %v1848 = vmul.f32 %v1824, 0.2
      %v1849 = vmul.f32 %v1825, 0.2
      %v1850 = vmul.f32 %v1826, 0.2
      %v1851 = vsel %vm1827, %v1815, %v1839
      %v1852 = vsel %vm1828, %v1816, %v1840
      %v1853 = vsel %vm1829, %v1817, %v1841
      %v1854 = vsel %vm1830, %v1818, %v1842
      %v1855 = vsel %vm1831, %v1819, %v1843
      %v1856 = vsel %vm1832, %v1820, %v1844
      %v1857 = vsel %vm1833, %v1821, %v1845
      %v1858 = vsel %vm1834, %v1822, %v1846
      %v1859 = vsel %vm1835, %v1823, %v1847
      %v1860 = vsel %vm1836, %v1824, %v1848
      %v1861 = vsel %vm1837, %v1825, %v1849
      %v1862 = vsel %vm1838, %v1826, %v1850
      %v1863 = vld [vmem:[%s259] sm:$0xff]
      %v1864 = vld [vmem:[%s259 + $0x8] sm:$0xff]
      %v1865 = vld [vmem:[%s259 + $0x10] sm:$0xff]
      %v1866 = vld [vmem:[%s259 + $0x18] sm:$0xff]
      %1868 = vset.pattern.permute.xlu0 0
      %1869 = vperm.xlu0 %1868, %v1863
      %v1870 = vpop.permute.xlu0 %1869
      %1873 = vset.pattern.permute.xlu0 0
      %1874 = vperm.xlu0 %1873, %v1864
      %v1875 = vpop.permute.xlu0 %1874
      %1878 = vset.pattern.permute.xlu0 0
      %1879 = vperm.xlu0 %1878, %v1865
      %v1880 = vpop.permute.xlu0 %1879
      %1883 = vset.pattern.permute.xlu0 0
      %1884 = vperm.xlu0 %1883, %v1866
      %v1885 = vpop.permute.xlu0 %1884
      %v1887 = vmul.f32 %v1851, %v1870
      %v1888 = vmul.f32 %v1852, %v1870
      %v1889 = vmul.f32 %v1853, %v1870
      %v1890 = vmul.f32 %v1854, %v1875
      %v1891 = vmul.f32 %v1855, %v1875
      %v1892 = vmul.f32 %v1856, %v1875
      %v1893 = vmul.f32 %v1857, %v1880
      %v1894 = vmul.f32 %v1858, %v1880
      %v1895 = vmul.f32 %v1859, %v1880
      %v1896 = vmul.f32 %v1860, %v1885
      %v1897 = vmul.f32 %v1861, %v1885
      %v1898 = vmul.f32 %v1862, %v1885
      %v1899 = vpack.c.bf16 %v1890, %v1887
      %v1900 = vpack.c.bf16 %v1891, %v1888
      %v1901 = vpack.c.bf16 %v1892, %v1889
      %v1902 = vpack.c.bf16 %v1896, %v1893
      %v1903 = vpack.c.bf16 %v1897, %v1894
      %v1904 = vpack.c.bf16 %v1898, %v1895
      %v1911 = vunpack.c.l.b16 %v1899
      %v1912 = vunpack.c.l.b16 %v1900
      %v1913 = vunpack.c.l.b16 %v1901
      %v1914 = vunpack.c.h.b16 %v1899
      %v1915 = vunpack.c.h.b16 %v1900
      %v1916 = vunpack.c.h.b16 %v1901
      %v1917 = vunpack.c.l.b16 %v1902
      %v1918 = vunpack.c.l.b16 %v1903
      %v1919 = vunpack.c.l.b16 %v1904
      %v1920 = vunpack.c.h.b16 %v1902
      %v1921 = vunpack.c.h.b16 %v1903
      %v1922 = vunpack.c.h.b16 %v1904
      %v1923 = vpack.c.b16 %v1912, %v1911
      %v1924 = vpack.c.b16 %v1913, %v1913
      %v1925 = vpack.c.b16 %v1915, %v1914
      %v1926 = vpack.c.b16 %v1916, %v1916
      %v1927 = vpack.c.b16 %v1918, %v1917
      %v1928 = vpack.c.b16 %v1919, %v1919
      %v1929 = vpack.c.b16 %v1921, %v1920
      %v1930 = vpack.c.b16 %v1922, %v1922
      %1939 = vst [vmem:[%s264] sm:$0xff] %v1923
      %vm1940 = vcmask 257024
      %1941 = vst.msk [vmem:[%s264 + $0x8] sm:$0xf] %vm1940, %v1924
      %1942 = vst [vmem:[%s264 + $0xc] sm:$0xff] %v1925
      %1943 = vst.msk [vmem:[%s264 + $0x14] sm:$0xf] %vm1940, %v1926
      %1944 = vst [vmem:[%s264 + $0x18] sm:$0xff] %v1927
      %1945 = vst.msk [vmem:[%s264 + $0x20] sm:$0xf] %vm1940, %v1928
      %1946 = vst [vmem:[%s264 + $0x24] sm:$0xff] %v1929
      %1947 = vst.msk [vmem:[%s264 + $0x2c] sm:$0xf] %vm1940, %v1930
      %p1948 = scmp.lt.s32.totalorder %s16, 1
      %s1949 = scalar_select %p1948, %s16, 1
      %s1950 = smul.addr %s1949, 12
      %s1951 = smul.addr %s1950, 4
      %s1952 = scalar_lea.vmem %s5, %s1951
      // Predicated region
      $region41: #{upsampling_resnet_block.3} parent=39 // pred_check
        %p1953 = pneg %p154
      $region42: #{upsampling_resnet_block.3} parent=39 // pred_check_branch
        %1955 = sbr.rel (%p1953) target = $region44
      $region43: #{upsampling_resnet_block.3} parent=39 // pred_region
        _
      $region44: #{upsampling_resnet_block.3} parent=39 // pred_fallthru
        _
    $region40: #{upsampling_resnet_block.3} parent=5 // pred_fallthru
      _
    %p1956 = scmp.le.s32.totalorder 2, %s11
    // Predicated region
    $region45: #{upsampling_resnet_block.3} parent=5 // pred_check
      %p1957 = pneg %p1956
    $region46: #{upsampling_resnet_block.3} parent=5 // pred_check_branch
      %1959 = sbr.rel (%p1957) target = $region48
    $region47: #{upsampling_resnet_block.3} parent=5 // pred_region
      %s1960 = ssub.s32 %s11, 2
      // Predicated region
      $region49: #{upsampling_resnet_block.3} parent=47 // pred_check
        %p1961 = pneg %p160
      $region50: #{upsampling_resnet_block.3} parent=47 // pred_check_branch
        %1963 = sbr.rel (%p1961) target = $region52
      $region51: #{upsampling_resnet_block.3} parent=47 // pred_region
        %p1964 = scmp.lt.s32.totalorder %s17, 1
        %s1965 = scalar_select %p1964, %s17, 1
        %s1966 = smul.addr %s1965, 12
        %s1967 = smul.addr %s1966, 4
        %s1968 = scalar_lea.vmem %s5, %s1967
      $region52: #{upsampling_resnet_block.3} parent=47 // pred_fallthru
        _
    $region48: #{upsampling_resnet_block.3} parent=5 // pred_fallthru
      _
  $region6: #{upsampling_resnet_block.3} parent=0 // loop_footer
    %s15 = sadd.s32 1, %s11
  $region7: #{upsampling_resnet_block.3} parent=0 // loop_footer_branch
    %10 = sbr.rel target = $region3
  $region8: #{upsampling_resnet_block.3} parent=0 // loop_exit
    _

// kernel: upsampling_resnet_block.5
$region0: #{upsampling_resnet_block.5}
  #allocation0 [shape = 'u32[]', space=smem, size = 0x4, offset = 0x4, fixed_abs, tag = 'smem constant byte address 0x4 - core index']
  #allocation1 [shape = 'u32[144,128]{1,0:T(1,128)}', space=vmem, size = 0x12000, scoped, tag = 'internal scratch']
  %s0 = inlined_call_operand.vmem [shape: bf16[9,8,8], index: 0, kind: input, shape index: {}]
  %s1 = inlined_call_operand.vmem [shape: bf16[2,8,1190], index: 1, kind: input, shape index: {}]
  %s2 = inlined_call_operand.vmem [shape: f32[2,8,1], index: 2, kind: input, shape index: {}]
  %s3 = inlined_call_operand.vmem [shape: f32[8,1], index: 3, kind: input, shape index: {}]
  %s4 = inlined_call_operand.vmem [shape: f32[2,8,1088], index: 4, kind: input, shape index: {}]
  %s5 = inlined_call_operand.vmem [shape: f32[2,8,1088], index: 5, kind: output, shape index: {}]
  %s6 = sld [smem:[#allocation0]]
  $region53: #{upsampling_resnet_block.5} parent=0
    _
  %s8 = ssub.s32 1, %s6
  %s9 = scalar_select 0, %s8, %s6
  loop: start=0, step=1, limit=4
  $region2: #{upsampling_resnet_block.5} parent=0 // loop_pre_header
    _
  $region3: #{upsampling_resnet_block.5} parent=0 // loop_header
    %s11 = sphi 0, %s15
    %p12 = scmp.ge.s32.totalorder %s11, 4
    %s19 = sphi 0, %s19
    %s21 = sphi 0, %s19
    %s22 = sphi 0, %s21
    %s36 = sphi 0, %s22
    %s42 = sphi 0, %s44
    %s45 = sphi 0, %s42
    %s46 = sphi 0, %s45
    %s62 = sphi 0, %s46
    %s68 = sphi 0, %s70
    %s71 = sphi 0, %s68
    %s72 = sphi 0, %s71
    %s88 = sphi 0, %s72
    %s92 = sphi 0, %s92
    %s94 = sphi 0, %s92
    %s95 = sphi 0, %s94
    %s109 = sphi 0, %s95
    %s115 = sphi 0, %s117
    %s118 = sphi 0, %s115
    %s119 = sphi 0, %s118
    %s135 = sphi 0, %s119
    %s141 = sphi 0, %s143
    %s144 = sphi 0, %s141
    %s145 = sphi 0, %s144
    %s161 = sphi 0, %s145
  $region4: #{upsampling_resnet_block.5} parent=0 // loop_header_branch
    %14 = sbr.rel (%p12) target = $region8
  $region5: #{upsampling_resnet_block.5} parent=0 // loop_body
    %s16 = ssub.s32 %s11, 1
    %s17 = ssub.s32 %s11, 2
    %s18 = sadd.s32 %s11, 1
    %s20 = sadd.s32 %s19, 1
    %p23 = scmp.eq.s32.totalorder %s11, 1
    %p24 = scmp.ne.s32.totalorder %s19, %s21
    %p25 = scmp.eq.s32.totalorder %s11, 0
    %p26 = por %p24, %p25
    %p27 = scmp.ne.s32.totalorder %s19, %s21
    %p28 = scmp.eq.s32.totalorder %s16, 1
    %p29 = por %p27, %p28
    %p30 = scmp.ne.s32.totalorder %s21, %s22
    %p31 = scmp.eq.s32.totalorder %s16, 0
    %p32 = por %p30, %p31
    %p33 = scmp.ne.s32.totalorder %s21, %s22
    %p34 = scmp.eq.s32.totalorder %s17, 1
    %p35 = por %p33, %p34
    %p37 = scmp.ne.s32.totalorder %s22, %s36
    %p38 = scmp.eq.s32.totalorder %s17, 0
    %p39 = por %p37, %p38
    %s40 = ssub.s32 %s11, %s18
    %p41 = scmp.eq.s32.totalorder %s40, 0
    %s43 = sadd.s32 %s42, 1
    %s44 = scalar_select %p41, %s42, %s43
    %p47 = pneg %p41
    %p48 = scmp.eq.s32.totalorder %s11, 1
    %p49 = por %p47, %p48
    %p50 = scmp.ne.s32.totalorder %s42, %s45
    %p51 = scmp.eq.s32.totalorder %s11, 0
    %p52 = por %p50, %p51
    %p53 = scmp.ne.s32.totalorder %s42, %s45
    %p54 = scmp.eq.s32.totalorder %s16, 1
    %p55 = por %p53, %p54
    %p56 = scmp.ne.s32.totalorder %s45, %s46
    %p57 = scmp.eq.s32.totalorder %s16, 0
    %p58 = por %p56, %p57
    %p59 = scmp.ne.s32.totalorder %s45, %s46
    %p60 = scmp.eq.s32.totalorder %s17, 1
    %p61 = por %p59, %p60
    %p63 = scmp.ne.s32.totalorder %s46, %s62
    %p64 = scmp.eq.s32.totalorder %s17, 0
    %p65 = por %p63, %p64
    %s66 = ssub.s32 %s11, %s18
    %p67 = scmp.eq.s32.totalorder %s66, 0
    %s69 = sadd.s32 %s68, 1
    %s70 = scalar_select %p67, %s68, %s69
    %p73 = pneg %p67
    %p74 = scmp.eq.s32.totalorder %s11, 1
    %p75 = por %p73, %p74
    %p76 = scmp.ne.s32.totalorder %s68, %s71
    %p77 = scmp.eq.s32.totalorder %s11, 0
    %p78 = por %p76, %p77
    %p79 = scmp.ne.s32.totalorder %s68, %s71
    %p80 = scmp.eq.s32.totalorder %s16, 1
    %p81 = por %p79, %p80
    %p82 = scmp.ne.s32.totalorder %s71, %s72
    %p83 = scmp.eq.s32.totalorder %s16, 0
    %p84 = por %p82, %p83
    %p85 = scmp.ne.s32.totalorder %s71, %s72
    %p86 = scmp.eq.s32.totalorder %s17, 1
    %p87 = por %p85, %p86
    %p89 = scmp.ne.s32.totalorder %s72, %s88
    %p90 = scmp.eq.s32.totalorder %s17, 0
    %p91 = por %p89, %p90
    %s93 = sadd.s32 %s92, 1
    %p96 = scmp.eq.s32.totalorder %s11, 1
    %p97 = scmp.ne.s32.totalorder %s92, %s94
    %p98 = scmp.eq.s32.totalorder %s11, 0
    %p99 = por %p97, %p98
    %p100 = scmp.ne.s32.totalorder %s92, %s94
    %p101 = scmp.eq.s32.totalorder %s16, 1
    %p102 = por %p100, %p101
    %p103 = scmp.ne.s32.totalorder %s94, %s95
    %p104 = scmp.eq.s32.totalorder %s16, 0
    %p105 = por %p103, %p104
    %p106 = scmp.ne.s32.totalorder %s94, %s95
    %p107 = scmp.eq.s32.totalorder %s17, 1
    %p108 = por %p106, %p107
    %p110 = scmp.ne.s32.totalorder %s95, %s109
    %p111 = scmp.eq.s32.totalorder %s17, 0
    %p112 = por %p110, %p111
    %s113 = ssub.s32 %s11, %s18
    %p114 = scmp.eq.s32.totalorder %s113, 0
    %s116 = sadd.s32 %s115, 1
    %s117 = scalar_select %p114, %s115, %s116
    %p120 = pneg %p114
    %p121 = scmp.eq.s32.totalorder %s11, 1
    %p122 = por %p120, %p121
    %p123 = scmp.ne.s32.totalorder %s115, %s118
    %p124 = scmp.eq.s32.totalorder %s11, 0
    %p125 = por %p123, %p124
    %p126 = scmp.ne.s32.totalorder %s115, %s118
    %p127 = scmp.eq.s32.totalorder %s16, 1
    %p128 = por %p126, %p127
    %p129 = scmp.ne.s32.totalorder %s118, %s119
    %p130 = scmp.eq.s32.totalorder %s16, 0
    %p131 = por %p129, %p130
    %p132 = scmp.ne.s32.totalorder %s118, %s119
    %p133 = scmp.eq.s32.totalorder %s17, 1
    %p134 = por %p132, %p133
    %p136 = scmp.ne.s32.totalorder %s119, %s135
    %p137 = scmp.eq.s32.totalorder %s17, 0
    %p138 = por %p136, %p137
    %s139 = ssub.s32 %s11, %s18
    %p140 = scmp.eq.s32.totalorder %s139, 0
    %s142 = sadd.s32 %s141, 1
    %s143 = scalar_select %p140, %s141, %s142
    %p146 = pneg %p140
    %p147 = scmp.eq.s32.totalorder %s11, 1
    %p148 = por %p146, %p147
    %p149 = scmp.ne.s32.totalorder %s141, %s144
    %p150 = scmp.eq.s32.totalorder %s11, 0
    %p151 = por %p149, %p150
    %p152 = scmp.ne.s32.totalorder %s141, %s144
    %p153 = scmp.eq.s32.totalorder %s16, 1
    %p154 = por %p152, %p153
    %p155 = scmp.ne.s32.totalorder %s144, %s145
    %p156 = scmp.eq.s32.totalorder %s16, 0
    %p157 = por %p155, %p156
    %p158 = scmp.ne.s32.totalorder %s144, %s145
    %p159 = scmp.eq.s32.totalorder %s17, 1
    %p160 = por %p158, %p159
    %p162 = scmp.ne.s32.totalorder %s145, %s161
    %p163 = scmp.eq.s32.totalorder %s17, 0
    %p164 = por %p162, %p163
    %p165 = scmp.le.s32.totalorder 1, %s11
    %p166 = scmp.lt.s32.totalorder %s11, 3
    %p167 = pnand %p165, %p166
    %p168 = pneg %p167
    // Predicated region
    $region9: #{upsampling_resnet_block.5} parent=5 // pred_check
      _
    $region10: #{upsampling_resnet_block.5} parent=5 // pred_check_branch
      %170 = sbr.rel (%p167) target = $region12
    $region11: #{upsampling_resnet_block.5} parent=5 // pred_region
      %s171 = ssub.s32 %s11, 1
      // Predicated region
      $region13: #{upsampling_resnet_block.5} parent=11 // pred_check
        %p172 = pneg %p32
      $region14: #{upsampling_resnet_block.5} parent=11 // pred_check_branch
        %174 = sbr.rel (%p172) target = $region16
      $region15: #{upsampling_resnet_block.5} parent=11 // pred_region
        _
      $region16: #{upsampling_resnet_block.5} parent=11 // pred_fallthru
        _
      // Predicated region
      $region17: #{upsampling_resnet_block.5} parent=11 // pred_check
        %p175 = pneg %p105
      $region18: #{upsampling_resnet_block.5} parent=11 // pred_check_branch
        %177 = sbr.rel (%p175) target = $region20
      $region19: #{upsampling_resnet_block.5} parent=11 // pred_region
        _
      $region20: #{upsampling_resnet_block.5} parent=11 // pred_fallthru
        _
    $region12: #{upsampling_resnet_block.5} parent=5 // pred_fallthru
      _
    %p178 = scmp.lt.s32.totalorder %s11, 2
    // Predicated region
    $region21: #{upsampling_resnet_block.5} parent=5 // pred_check
      %p179 = pneg %p178
    $region22: #{upsampling_resnet_block.5} parent=5 // pred_check_branch
      %181 = sbr.rel (%p179) target = $region24
    $region23: #{upsampling_resnet_block.5} parent=5 // pred_region
      // Predicated region
      $region25: #{upsampling_resnet_block.5} parent=23 // pred_check
        %p182 = pneg %p52
      $region26: #{upsampling_resnet_block.5} parent=23 // pred_check_branch
        %184 = sbr.rel (%p182) target = $region28
      $region27: #{upsampling_resnet_block.5} parent=23 // pred_region
        %p185 = scmp.lt.s32.totalorder %s11, 1
        %s186 = scalar_select %p185, %s11, 1
        %s187 = smul.addr %s186, 10
        %s188 = smul.addr %s187, 4
        %s189 = scalar_lea.vmem %s1, %s188
      $region28: #{upsampling_resnet_block.5} parent=23 // pred_fallthru
        _
      // Predicated region
      $region29: #{upsampling_resnet_block.5} parent=23 // pred_check
        %p190 = pneg %p78
      $region30: #{upsampling_resnet_block.5} parent=23 // pred_check_branch
        %192 = sbr.rel (%p190) target = $region32
      $region31: #{upsampling_resnet_block.5} parent=23 // pred_region
        %p193 = scmp.lt.s32.totalorder %s11, 1
        %s194 = scalar_select %p193, %s11, 1
        %s195 = smul.addr %s194, 8
        %s196 = scalar_lea.vmem %s2, %s195
      $region32: #{upsampling_resnet_block.5} parent=23 // pred_fallthru
        _
      // Predicated region
      $region33: #{upsampling_resnet_block.5} parent=23 // pred_check
        %p197 = pneg %p125
      $region34: #{upsampling_resnet_block.5} parent=23 // pred_check_branch
        %199 = sbr.rel (%p197) target = $region36
      $region35: #{upsampling_resnet_block.5} parent=23 // pred_region
        %p200 = scmp.lt.s32.totalorder %s11, 1
        %s201 = scalar_select %p200, %s11, 1
        %s202 = smul.addr %s201, 9
        %s203 = smul.addr %s202, 8
        %s204 = scalar_lea.vmem %s4, %s203
      $region36: #{upsampling_resnet_block.5} parent=23 // pred_fallthru
        _
    $region24: #{upsampling_resnet_block.5} parent=5 // pred_fallthru
      _
    %p205 = scmp.le.s32.totalorder 1, %s11
    %p206 = scmp.lt.s32.totalorder %s11, 3
    %p207 = pnand %p205, %p206
    %p208 = pneg %p207
    // Predicated region
    $region37: #{upsampling_resnet_block.5} parent=5 // pred_check
      _
    $region38: #{upsampling_resnet_block.5} parent=5 // pred_check_branch
      %210 = sbr.rel (%p207) target = $region40
    $region39: #{upsampling_resnet_block.5} parent=5 // pred_region
      %s211 = ssub.s32 %s11, 1
      %p212 = pneg %p32
      %p213 = pneg %p29
      %p214 = scmp.lt.s32.totalorder %s16, 1
      %s215 = scalar_select %p214, %s16, 1
      %s216 = smul.addr %s215, 10
      %s217 = smul.addr %s216, 4
      %s218 = scalar_lea.vmem %s1, %s217
      %p219 = pneg %p58
      %p220 = pneg %p55
      %p221 = scmp.lt.s32.totalorder %s16, 1
      %s222 = scalar_select %p221, %s16, 1
      %s223 = smul.addr %s222, 8
      %s224 = scalar_lea.vmem %s2, %s223
      %p225 = pneg %p84
      %p226 = pneg %p81
      %p227 = pneg %p105
      %p228 = pneg %p102
      %p229 = scmp.lt.s32.totalorder %s16, 1
      %s230 = scalar_select %p229, %s16, 1
      %s231 = smul.addr %s230, 9
      %s232 = smul.addr %s231, 8
      %s233 = scalar_lea.vmem %s4, %s232
      %p234 = pneg %p131
      %p235 = pneg %p128
      %p236 = pneg %p157
      %p237 = pneg %p154
      %p238 = scmp.lt.s32.totalorder %s16, 1
      %s239 = scalar_select %p238, %s16, 1
      %s240 = smul.addr %s239, 9
      %s241 = smul.addr %s240, 8
      %s242 = scalar_lea.vmem %s5, %s241
      %p243 = scmp.lt.s32.totalorder %s16, 1
      %s244 = scalar_select %p243, %s16, 1
      %s245 = smul.addr %s244, 10
      %s246 = smul.addr %s245, 4
      %s247 = scalar_lea.vmem %s1, %s246
      %p248 = scmp.lt.s32.totalorder %s16, 1
      %s249 = scalar_select %p248, %s16, 1
      %s250 = smul.addr %s249, 8
      %s251 = scalar_lea.vmem %s2, %s250
      %p252 = scmp.lt.s32.totalorder %s16, 1
      %s253 = scalar_select %p252, %s16, 1
      %s254 = smul.addr %s253, 9
      %s255 = smul.addr %s254, 8
      %s256 = scalar_lea.vmem %s4, %s255
      %p257 = scmp.lt.s32.totalorder %s16, 1
      %s258 = scalar_select %p257, %s16, 1
      %s259 = smul.addr %s258, 9
      %s260 = smul.addr %s259, 8
      %s261 = scalar_lea.vmem %s5, %s260
      %v263 = vld [vmem:[%s0] sm:$0xf]
      %v264 = vld [vmem:[%s247] sm:$0xff]
      %v265 = vld [vmem:[%s247 + $0x8] sm:$0xff]
      %v266 = vld [vmem:[%s247 + $0x10] sm:$0xff]
      %v267 = vld [vmem:[%s247 + $0x18] sm:$0xff]
      %v268 = vld [vmem:[%s247 + $0x20] sm:$0xf]
      %s269 = scalar_lea.vmem %s0, 4
      %v270 = vld [vmem:[%s269] sm:$0xf]
      %v276 = vunpack.c.l.b16 %v264
      %v277 = vunpack.c.h.b16 %v264
      %v278 = vunpack.c.l.b16 %v265
      %v279 = vunpack.c.h.b16 %v265
      %v280 = vunpack.c.l.b16 %v266
      %v281 = vunpack.c.h.b16 %v266
      %v282 = vunpack.c.l.b16 %v267
      %v283 = vunpack.c.h.b16 %v267
      %v284 = vunpack.c.l.b16 %v268
      %v285 = vpack.c.b16 %v276, %v276
      %v286 = vpack.c.b16 %v277, %v277
      %v287 = vpack.c.b16 %v278, %v278
      %v288 = vpack.c.b16 %v279, %v279
      %v289 = vpack.c.b16 %v280, %v280
      %v290 = vpack.c.b16 %v281, %v281
      %v291 = vpack.c.b16 %v282, %v282
      %v292 = vpack.c.b16 %v283, %v283
      %v293 = vpack.c.b16 %v284, %v284
      %294 = vrot.lane.b32.xlu0 %v285, 127
      %v295 = vpop.permute.xlu0 %294
      %296 = vrot.lane.b32.xlu0 %v286, 127
      %v297 = vpop.permute.xlu0 %296
      %298 = vrot.lane.b32.xlu0 %v287, 127
      %v299 = vpop.permute.xlu0 %298
      %300 = vrot.lane.b32.xlu0 %v288, 127
      %v301 = vpop.permute.xlu0 %300
      %302 = vrot.lane.b32.xlu0 %v289, 127
      %v303 = vpop.permute.xlu0 %302
      %304 = vrot.lane.b32.xlu0 %v290, 127
      %v305 = vpop.permute.xlu0 %304
      %306 = vrot.lane.b32.xlu0 %v291, 127
      %v307 = vpop.permute.xlu0 %306
      %308 = vrot.lane.b32.xlu0 %v292, 127
      %v309 = vpop.permute.xlu0 %308
      %310 = vrot.lane.b32.xlu0 %v293, 127
      %v311 = vpop.permute.xlu0 %310
      %vm312 = vcmask 1039360
      %v313 = vsel %vm312, %v295, %v297
      %v314 = vsel %vm312, %v297, %v299
      %v315 = vsel %vm312, %v299, %v301
      %v316 = vsel %vm312, %v301, %v303
      %v317 = vsel %vm312, %v303, %v305
      %v318 = vsel %vm312, %v305, %v307
      %v319 = vsel %vm312, %v307, %v309
      %v320 = vsel %vm312, %v309, %v311
      %vm321 = vcmask 64512
      %v323 = vsel %vm321, %v270, 0
      %vm325 = vcmask 1043456
      %v327 = vsel %vm325, %v313, 0
      %v330 = vsel %vm325, %v314, 0
      %v333 = vsel %vm325, %v315, 0
      %v336 = vsel %vm325, %v316, 0
      %v339 = vsel %vm325, %v317, 0
      %v342 = vsel %vm325, %v318, 0
      %v345 = vsel %vm325, %v319, 0
      %v348 = vsel %vm325, %v320, 0
      %v351 = vsel %vm325, %v311, 0
      %353 = vmatprep.subr.bf16.mxu0 %v330
      %354 = vmatpush1.bf16.msra.mxu0 %v327
      %355 = vmatprep.subr.bf16.mxu0 0
      %356 = vmatpush1.bf16.msra.mxu0 0
      %357 = vmatprep.subr.bf16.mxu0 0
      %358 = vmatpush1.bf16.msra.mxu0 0
      %359 = vmatprep.subr.bf16.mxu0 0
      %360 = vmatpush1.bf16.msra.mxu0 0
      %361 = vmatprep.subr.bf16.mxu0 0
      %362 = vmatpush1.bf16.msra.mxu0 0
      %363 = vmatprep.subr.bf16.mxu0 0
      %364 = vmatpush1.bf16.msra.mxu0 0
      %365 = vmatprep.subr.bf16.mxu0 0
      %366 = vmatpush1.bf16.msra.mxu0 0
      %367 = vmatprep.subr.bf16.mxu0 0
      %368 = vmatpush1.bf16.msra.mxu0 0
      %369 = vmatprep.subr.bf16.mxu0 0
      %370 = vmatpush1.bf16.msra.mxu0 0
      %371 = vmatprep.subr.bf16.mxu0 0
      %372 = vmatpush1.bf16.msra.mxu0 0
      %373 = vmatprep.subr.bf16.mxu0 0
      %374 = vmatpush1.bf16.msra.mxu0 0
      %375 = vmatprep.subr.bf16.mxu0 0
      %376 = vmatpush1.bf16.msra.mxu0 0
      %377 = vmatprep.subr.bf16.mxu0 0
      %378 = vmatpush1.bf16.msra.mxu0 0
      %379 = vmatprep.subr.bf16.mxu0 0
      %380 = vmatpush1.bf16.msra.mxu0 0
      %381 = vmatprep.subr.bf16.mxu0 0
      %382 = vmatpush1.bf16.msra.mxu0 0
      %383 = vmatprep.subr.bf16.mxu0 0
      %384 = vmatpush1.bf16.msra.mxu0 0
      %385 = vmatprep.mubr.bf16.mxu0 0
      %386 = vmatmul.mubr.bf16.gmra.mrb[0].mxu0 %v323
      %v387 = vpop.f32.mrb[0].mxu0
      %v388 = vadd.f32 0.0, %v387
      %v389 = vpop.f32.mrb[0].mxu0
      %v390 = vadd.f32 0.0, %v389
      %v391 = vpop.f32.mrb[0].mxu0
      %v392 = vpop.f32.mrb[0].mxu0
      %393 = vdwg.mxu0
      %394 = vmatprep.subr.bf16.mxu0 %v336
      %395 = vmatpush1.bf16.msra.mxu0 %v333
      %396 = vmatprep.subr.bf16.mxu0 0
      %397 = vmatpush1.bf16.msra.mxu0 0
      %398 = vmatprep.subr.bf16.mxu0 0
      %399 = vmatpush1.bf16.msra.mxu0 0
      %400 = vmatprep.subr.bf16.mxu0 0
      %401 = vmatpush1.bf16.msra.mxu0 0
      %402 = vmatprep.subr.bf16.mxu0 0
      %403 = vmatpush1.bf16.msra.mxu0 0
      %404 = vmatprep.subr.bf16.mxu0 0
      %405 = vmatpush1.bf16.msra.mxu0 0
      %406 = vmatprep.subr.bf16.mxu0 0
      %407 = vmatpush1.bf16.msra.mxu0 0
      %408 = vmatprep.subr.bf16.mxu0 0
      %409 = vmatpush1.bf16.msra.mxu0 0
      %410 = vmatprep.subr.bf16.mxu0 0
      %411 = vmatpush1.bf16.msra.mxu0 0
      %412 = vmatprep.subr.bf16.mxu0 0
      %413 = vmatpush1.bf16.msra.mxu0 0
      %414 = vmatprep.subr.bf16.mxu0 0
      %415 = vmatpush1.bf16.msra.mxu0 0
      %416 = vmatprep.subr.bf16.mxu0 0
      %417 = vmatpush1.bf16.msra.mxu0 0
      %418 = vmatprep.subr.bf16.mxu0 0
      %419 = vmatpush1.bf16.msra.mxu0 0
      %420 = vmatprep.subr.bf16.mxu0 0
      %421 = vmatpush1.bf16.msra.mxu0 0
      %422 = vmatprep.subr.bf16.mxu0 0
      %423 = vmatpush1.bf16.msra.mxu0 0
      %424 = vmatprep.subr.bf16.mxu0 0
      %425 = vmatpush1.bf16.msra.mxu0 0
      %426 = vmatprep.mubr.bf16.mxu0 0
      %427 = vmatmul.mubr.bf16.gmra.mrb[0].mxu0 %v323
      %v428 = vpop.f32.mrb[0].mxu0
      %v429 = vadd.f32 0.0, %v428
      %v430 = vpop.f32.mrb[0].mxu0
      %v431 = vadd.f32 0.0, %v430
      %v432 = vpop.f32.mrb[0].mxu0
      %v433 = vpop.f32.mrb[0].mxu0
      %434 = vdwg.mxu0
      %435 = vmatprep.subr.bf16.mxu0 %v342
      %436 = vmatpush1.bf16.msra.mxu0 %v339
      %437 = vmatprep.subr.bf16.mxu0 0
      %438 = vmatpush1.bf16.msra.mxu0 0
      %439 = vmatprep.subr.bf16.mxu0 0
      %440 = vmatpush1.bf16.msra.mxu0 0
      %441 = vmatprep.subr.bf16.mxu0 0
      %442 = vmatpush1.bf16.msra.mxu0 0
      %443 = vmatprep.subr.bf16.mxu0 0
      %444 = vmatpush1.bf16.msra.mxu0 0
      %445 = vmatprep.subr.bf16.mxu0 0
      %446 = vmatpush1.bf16.msra.mxu0 0
      %447 = vmatprep.subr.bf16.mxu0 0
      %448 = vmatpush1.bf16.msra.mxu0 0
      %449 = vmatprep.subr.bf16.mxu0 0
      %450 = vmatpush1.bf16.msra.mxu0 0
      %451 = vmatprep.subr.bf16.mxu0 0
      %452 = vmatpush1.bf16.msra.mxu0 0
      %453 = vmatprep.subr.bf16.mxu0 0
      %454 = vmatpush1.bf16.msra.mxu0 0
      %455 = vmatprep.subr.bf16.mxu0 0
      %456 = vmatpush1.bf16.msra.mxu0 0
      %457 = vmatprep.subr.bf16.mxu0 0
      %458 = vmatpush1.bf16.msra.mxu0 0
      %459 = vmatprep.subr.bf16.mxu0 0
      %460 = vmatpush1.bf16.msra.mxu0 0
      %461 = vmatprep.subr.bf16.mxu0 0
      %462 = vmatpush1.bf16.msra.mxu0 0
      %463 = vmatprep.subr.bf16.mxu0 0
      %464 = vmatpush1.bf16.msra.mxu0 0
      %465 = vmatprep.subr.bf16.mxu0 0
      %466 = vmatpush1.bf16.msra.mxu0 0
      %467 = vmatprep.mubr.bf16.mxu0 0
      %468 = vmatmul.mubr.bf16.gmra.mrb[0].mxu0 %v323
      %v469 = vpop.f32.mrb[0].mxu0
      %v470 = vadd.f32 0.0, %v469
      %v471 = vpop.f32.mrb[0].mxu0
      %v472 = vadd.f32 0.0, %v471
      %v473 = vpop.f32.mrb[0].mxu0
      %v474 = vpop.f32.mrb[0].mxu0
      %475 = vdwg.mxu0
      %476 = vmatprep.subr.bf16.mxu0 %v348
      %477 = vmatpush1.bf16.msra.mxu0 %v345
      %478 = vmatprep.subr.bf16.mxu0 0
      %479 = vmatpush1.bf16.msra.mxu0 0
      %480 = vmatprep.subr.bf16.mxu0 0
      %481 = vmatpush1.bf16.msra.mxu0 0
      %482 = vmatprep.subr.bf16.mxu0 0
      %483 = vmatpush1.bf16.msra.mxu0 0
      %484 = vmatprep.subr.bf16.mxu0 0
      %485 = vmatpush1.bf16.msra.mxu0 0
      %486 = vmatprep.subr.bf16.mxu0 0
      %487 = vmatpush1.bf16.msra.mxu0 0
      %488 = vmatprep.subr.bf16.mxu0 0
      %489 = vmatpush1.bf16.msra.mxu0 0
      %490 = vmatprep.subr.bf16.mxu0 0
      %491 = vmatpush1.bf16.msra.mxu0 0
      %492 = vmatprep.subr.bf16.mxu0 0
      %493 = vmatpush1.bf16.msra.mxu0 0
      %494 = vmatprep.subr.bf16.mxu0 0
      %495 = vmatpush1.bf16.msra.mxu0 0
      %496 = vmatprep.subr.bf16.mxu0 0
      %497 = vmatpush1.bf16.msra.mxu0 0
      %498 = vmatprep.subr.bf16.mxu0 0
      %499 = vmatpush1.bf16.msra.mxu0 0
      %500 = vmatprep.subr.bf16.mxu0 0
      %501 = vmatpush1.bf16.msra.mxu0 0
      %502 = vmatprep.subr.bf16.mxu0 0
      %503 = vmatpush1.bf16.msra.mxu0 0
      %504 = vmatprep.subr.bf16.mxu0 0
      %505 = vmatpush1.bf16.msra.mxu0 0
      %506 = vmatprep.subr.bf16.mxu0 0
      %507 = vmatpush1.bf16.msra.mxu0 0
      %508 = vmatprep.mubr.bf16.mxu0 0
      %509 = vmatmul.mubr.bf16.gmra.mrb[0].mxu0 %v323
      %v510 = vpop.f32.mrb[0].mxu0
      %v511 = vadd.f32 0.0, %v510
      %v512 = vpop.f32.mrb[0].mxu0
      %v513 = vadd.f32 0.0, %v512
      %v514 = vpop.f32.mrb[0].mxu0
      %v515 = vpop.f32.mrb[0].mxu0
      %516 = vdwg.mxu0
      %517 = vmatprep.subr.bf16.mxu0 0
      %518 = vmatpush1.bf16.msra.mxu0 %v351
      %519 = vmatprep.subr.bf16.mxu0 0
      %520 = vmatpush1.bf16.msra.mxu0 0
      %521 = vmatprep.subr.bf16.mxu0 0
      %522 = vmatpush1.bf16.msra.mxu0 0
      %523 = vmatprep.subr.bf16.mxu0 0
      %524 = vmatpush1.bf16.msra.mxu0 0
      %525 = vmatprep.subr.bf16.mxu0 0
      %526 = vmatpush1.bf16.msra.mxu0 0
      %527 = vmatprep.subr.bf16.mxu0 0
      %528 = vmatpush1.bf16.msra.mxu0 0
      %529 = vmatprep.subr.bf16.mxu0 0
      %530 = vmatpush1.bf16.msra.mxu0 0
      %531 = vmatprep.subr.bf16.mxu0 0
      %532 = vmatpush1.bf16.msra.mxu0 0
      %533 = vmatprep.subr.bf16.mxu0 0
      %534 = vmatpush1.bf16.msra.mxu0 0
      %535 = vmatprep.subr.bf16.mxu0 0
      %536 = vmatpush1.bf16.msra.mxu0 0
      %537 = vmatprep.subr.bf16.mxu0 0
      %538 = vmatpush1.bf16.msra.mxu0 0
      %539 = vmatprep.subr.bf16.mxu0 0
      %540 = vmatpush1.bf16.msra.mxu0 0
      %541 = vmatprep.subr.bf16.mxu0 0
      %542 = vmatpush1.bf16.msra.mxu0 0
      %543 = vmatprep.subr.bf16.mxu0 0
      %544 = vmatpush1.bf16.msra.mxu0 0
      %545 = vmatprep.subr.bf16.mxu0 0
      %546 = vmatpush1.bf16.msra.mxu0 0
      %547 = vmatprep.subr.bf16.mxu0 0
      %548 = vmatpush1.bf16.msra.mxu0 0
      %549 = vmatprep.mubr.bf16.mxu0 0
      %550 = vmatmul.mubr.bf16.gmra.mrb[0].mxu0 %v323
      %v551 = vpop.f32.mrb[0].mxu0
      %v552 = vadd.f32 0.0, %v551
      %v553 = vpop.f32.mrb[0].mxu0
      %v554 = vpop.f32.mrb[0].mxu0
      %v555 = vpop.f32.mrb[0].mxu0
      %556 = vdwg.mxu0
      %v558 = vsel %vm321, %v263, 0
      %v561 = vsel %vm325, %v285, 0
      %v564 = vsel %vm325, %v286, 0
      %v567 = vsel %vm325, %v287, 0
      %v570 = vsel %vm325, %v288, 0
      %v573 = vsel %vm325, %v289, 0
      %v576 = vsel %vm325, %v290, 0
      %v579 = vsel %vm325, %v291, 0
      %v582 = vsel %vm325, %v292, 0
      %v585 = vsel %vm325, %v293, 0
      %587 = vmatprep.subr.bf16.mxu0 %v564
      %588 = vmatpush1.bf16.msra.mxu0 %v561
      %589 = vmatprep.subr.bf16.mxu0 0
      %590 = vmatpush1.bf16.msra.mxu0 0
      %591 = vmatprep.subr.bf16.mxu0 0
      %592 = vmatpush1.bf16.msra.mxu0 0
      %593 = vmatprep.subr.bf16.mxu0 0
      %594 = vmatpush1.bf16.msra.mxu0 0
      %595 = vmatprep.subr.bf16.mxu0 0
      %596 = vmatpush1.bf16.msra.mxu0 0
      %597 = vmatprep.subr.bf16.mxu0 0
      %598 = vmatpush1.bf16.msra.mxu0 0
      %599 = vmatprep.subr.bf16.mxu0 0
      %600 = vmatpush1.bf16.msra.mxu0 0
      %601 = vmatprep.subr.bf16.mxu0 0
      %602 = vmatpush1.bf16.msra.mxu0 0
      %603 = vmatprep.subr.bf16.mxu0 0
      %604 = vmatpush1.bf16.msra.mxu0 0
      %605 = vmatprep.subr.bf16.mxu0 0
      %606 = vmatpush1.bf16.msra.mxu0 0
      %607 = vmatprep.subr.bf16.mxu0 0
      %608 = vmatpush1.bf16.msra.mxu0 0
      %609 = vmatprep.subr.bf16.mxu0 0
      %610 = vmatpush1.bf16.msra.mxu0 0
      %611 = vmatprep.subr.bf16.mxu0 0
      %612 = vmatpush1.bf16.msra.mxu0 0
      %613 = vmatprep.subr.bf16.mxu0 0
      %614 = vmatpush1.bf16.msra.mxu0 0
      %615 = vmatprep.subr.bf16.mxu0 0
      %616 = vmatpush1.bf16.msra.mxu0 0
      %617 = vmatprep.subr.bf16.mxu0 0
      %618 = vmatpush1.bf16.msra.mxu0 0
      %619 = vmatprep.mubr.bf16.mxu0 0
      %620 = vmatmul.mubr.bf16.gmra.mrb[0].mxu0 %v558
      %v621 = vpop.f32.mrb[0].mxu0
      %v622 = vadd.f32 %v388, %v621
      %v623 = vpop.f32.mrb[0].mxu0
      %v624 = vadd.f32 %v390, %v623
      %v625 = vpop.f32.mrb[0].mxu0
      %v626 = vpop.f32.mrb[0].mxu0
      %627 = vdwg.mxu0
      %628 = vmatprep.subr.bf16.mxu0 %v570
      %629 = vmatpush1.bf16.msra.mxu0 %v567
      %630 = vmatprep.subr.bf16.mxu0 0
      %631 = vmatpush1.bf16.msra.mxu0 0
      %632 = vmatprep.subr.bf16.mxu0 0
      %633 = vmatpush1.bf16.msra.mxu0 0
      %634 = vmatprep.subr.bf16.mxu0 0
      %635 = vmatpush1.bf16.msra.mxu0 0
      %636 = vmatprep.subr.bf16.mxu0 0
      %637 = vmatpush1.bf16.msra.mxu0 0
      %638 = vmatprep.subr.bf16.mxu0 0
      %639 = vmatpush1.bf16.msra.mxu0 0
      %640 = vmatprep.subr.bf16.mxu0 0
      %641 = vmatpush1.bf16.msra.mxu0 0
      %642 = vmatprep.subr.bf16.mxu0 0
      %643 = vmatpush1.bf16.msra.mxu0 0
      %644 = vmatprep.subr.bf16.mxu0 0
      %645 = vmatpush1.bf16.msra.mxu0 0
      %646 = vmatprep.subr.bf16.mxu0 0
      %647 = vmatpush1.bf16.msra.mxu0 0
      %648 = vmatprep.subr.bf16.mxu0 0
      %649 = vmatpush1.bf16.msra.mxu0 0
      %650 = vmatprep.subr.bf16.mxu0 0
      %651 = vmatpush1.bf16.msra.mxu0 0
      %652 = vmatprep.subr.bf16.mxu0 0
      %653 = vmatpush1.bf16.msra.mxu0 0
      %654 = vmatprep.subr.bf16.mxu0 0
      %655 = vmatpush1.bf16.msra.mxu0 0
      %656 = vmatprep.subr.bf16.mxu0 0
      %657 = vmatpush1.bf16.msra.mxu0 0
      %658 = vmatprep.subr.bf16.mxu0 0
      %659 = vmatpush1.bf16.msra.mxu0 0
      %660 = vmatprep.mubr.bf16.mxu0 0
      %661 = vmatmul.mubr.bf16.gmra.mrb[0].mxu0 %v558
      %v662 = vpop.f32.mrb[0].mxu0
      %v663 = vadd.f32 %v429, %v662
      %v664 = vpop.f32.mrb[0].mxu0
      %v665 = vadd.f32 %v431, %v664
      %v666 = vpop.f32.mrb[0].mxu0
      %v667 = vpop.f32.mrb[0].mxu0
      %668 = vdwg.mxu0
      %669 = vmatprep.subr.bf16.mxu0 %v576
      %670 = vmatpush1.bf16.msra.mxu0 %v573
      %671 = vmatprep.subr.bf16.mxu0 0
      %672 = vmatpush1.bf16.msra.mxu0 0
      %673 = vmatprep.subr.bf16.mxu0 0
      %674 = vmatpush1.bf16.msra.mxu0 0
      %675 = vmatprep.subr.bf16.mxu0 0
      %676 = vmatpush1.bf16.msra.mxu0 0
      %677 = vmatprep.subr.bf16.mxu0 0
      %678 = vmatpush1.bf16.msra.mxu0 0
      %679 = vmatprep.subr.bf16.mxu0 0
      %680 = vmatpush1.bf16.msra.mxu0 0
      %681 = vmatprep.subr.bf16.mxu0 0
      %682 = vmatpush1.bf16.msra.mxu0 0
      %683 = vmatprep.subr.bf16.mxu0 0
      %684 = vmatpush1.bf16.msra.mxu0 0
      %685 = vmatprep.subr.bf16.mxu0 0
      %686 = vmatpush1.bf16.msra.mxu0 0
      %687 = vmatprep.subr.bf16.mxu0 0
      %688 = vmatpush1.bf16.msra.mxu0 0
      %689 = vmatprep.subr.bf16.mxu0 0
      %690 = vmatpush1.bf16.msra.mxu0 0
      %691 = vmatprep.subr.bf16.mxu0 0
      %692 = vmatpush1.bf16.msra.mxu0 0
      %693 = vmatprep.subr.bf16.mxu0 0
      %694 = vmatpush1.bf16.msra.mxu0 0
      %695 = vmatprep.subr.bf16.mxu0 0
      %696 = vmatpush1.bf16.msra.mxu0 0
      %697 = vmatprep.subr.bf16.mxu0 0
      %698 = vmatpush1.bf16.msra.mxu0 0
      %699 = vmatprep.subr.bf16.mxu0 0
      %700 = vmatpush1.bf16.msra.mxu0 0
      %701 = vmatprep.mubr.bf16.mxu0 0
      %702 = vmatmul.mubr.bf16.gmra.mrb[0].mxu0 %v558
      %v703 = vpop.f32.mrb[0].mxu0
      %v704 = vadd.f32 %v470, %v703
      %v705 = vpop.f32.mrb[0].mxu0
      %v706 = vadd.f32 %v472, %v705
      %v707 = vpop.f32.mrb[0].mxu0
      %v708 = vpop.f32.mrb[0].mxu0
      %709 = vdwg.mxu0
      %710 = vmatprep.subr.bf16.mxu0 %v582
      %711 = vmatpush1.bf16.msra.mxu0 %v579
      %712 = vmatprep.subr.bf16.mxu0 0
      %713 = vmatpush1.bf16.msra.mxu0 0
      %714 = vmatprep.subr.bf16.mxu0 0
      %715 = vmatpush1.bf16.msra.mxu0 0
      %716 = vmatprep.subr.bf16.mxu0 0
      %717 = vmatpush1.bf16.msra.mxu0 0
      %718 = vmatprep.subr.bf16.mxu0 0
      %719 = vmatpush1.bf16.msra.mxu0 0
      %720 = vmatprep.subr.bf16.mxu0 0
      %721 = vmatpush1.bf16.msra.mxu0 0
      %722 = vmatprep.subr.bf16.mxu0 0
      %723 = vmatpush1.bf16.msra.mxu0 0
      %724 = vmatprep.subr.bf16.mxu0 0
      %725 = vmatpush1.bf16.msra.mxu0 0
      %726 = vmatprep.subr.bf16.mxu0 0
      %727 = vmatpush1.bf16.msra.mxu0 0
      %728 = vmatprep.subr.bf16.mxu0 0
      %729 = vmatpush1.bf16.msra.mxu0 0
      %730 = vmatprep.subr.bf16.mxu0 0
      %731 = vmatpush1.bf16.msra.mxu0 0
      %732 = vmatprep.subr.bf16.mxu0 0
      %733 = vmatpush1.bf16.msra.mxu0 0
      %734 = vmatprep.subr.bf16.mxu0 0
      %735 = vmatpush1.bf16.msra.mxu0 0
      %736 = vmatprep.subr.bf16.mxu0 0
      %737 = vmatpush1.bf16.msra.mxu0 0
      %738 = vmatprep.subr.bf16.mxu0 0
      %739 = vmatpush1.bf16.msra.mxu0 0
      %740 = vmatprep.subr.bf16.mxu0 0
      %741 = vmatpush1.bf16.msra.mxu0 0
      %742 = vmatprep.mubr.bf16.mxu0 0
      %743 = vmatmul.mubr.bf16.gmra.mrb[0].mxu0 %v558
      %v744 = vpop.f32.mrb[0].mxu0
      %v745 = vadd.f32 %v511, %v744
      %v746 = vpop.f32.mrb[0].mxu0
      %v747 = vadd.f32 %v513, %v746
      %v748 = vpop.f32.mrb[0].mxu0
      %v749 = vpop.f32.mrb[0].mxu0
      %750 = vdwg.mxu0
      %751 = vmatprep.subr.bf16.mxu0 0
      %752 = vmatpush1.bf16.msra.mxu0 %v585
      %753 = vmatprep.subr.bf16.mxu0 0
      %754 = vmatpush1.bf16.msra.mxu0 0
      %755 = vmatprep.subr.bf16.mxu0 0
      %756 = vmatpush1.bf16.msra.mxu0 0
      %757 = vmatprep.subr.bf16.mxu0 0
      %758 = vmatpush1.bf16.msra.mxu0 0
      %759 = vmatprep.subr.bf16.mxu0 0
      %760 = vmatpush1.bf16.msra.mxu0 0
      %761 = vmatprep.subr.bf16.mxu0 0
      %762 = vmatpush1.bf16.msra.mxu0 0
      %763 = vmatprep.subr.bf16.mxu0 0
      %764 = vmatpush1.bf16.msra.mxu0 0
      %765 = vmatprep.subr.bf16.mxu0 0
      %766 = vmatpush1.bf16.msra.mxu0 0
      %767 = vmatprep.subr.bf16.mxu0 0
      %768 = vmatpush1.bf16.msra.mxu0 0
      %769 = vmatprep.subr.bf16.mxu0 0
      %770 = vmatpush1.bf16.msra.mxu0 0
      %771 = vmatprep.subr.bf16.mxu0 0
      %772 = vmatpush1.bf16.msra.mxu0 0
      %773 = vmatprep.subr.bf16.mxu0 0
      %774 = vmatpush1.bf16.msra.mxu0 0
      %775 = vmatprep.subr.bf16.mxu0 0
      %776 = vmatpush1.bf16.msra.mxu0 0
      %777 = vmatprep.subr.bf16.mxu0 0
      %778 = vmatpush1.bf16.msra.mxu0 0
      %779 = vmatprep.subr.bf16.mxu0 0
      %780 = vmatpush1.bf16.msra.mxu0 0
      %781 = vmatprep.subr.bf16.mxu0 0
      %782 = vmatpush1.bf16.msra.mxu0 0
      %783 = vmatprep.mubr.bf16.mxu0 0
      %784 = vmatmul.mubr.bf16.gmra.mrb[0].mxu0 %v558
      %v785 = vpop.f32.mrb[0].mxu0
      %v786 = vadd.f32 %v552, %v785
      %v787 = vpop.f32.mrb[0].mxu0
      %v788 = vpop.f32.mrb[0].mxu0
      %v789 = vpop.f32.mrb[0].mxu0
      %790 = vdwg.mxu0
      %s791 = scalar_lea.vmem %s0, 8
      %v792 = vld [vmem:[%s791] sm:$0xf]
      %793 = vrot.lane.b32.xlu0 %v285, 126
      %v794 = vpop.permute.xlu0 %793
      %795 = vrot.lane.b32.xlu0 %v286, 126
      %v796 = vpop.permute.xlu0 %795
      %797 = vrot.lane.b32.xlu0 %v287, 126
      %v798 = vpop.permute.xlu0 %797
      %799 = vrot.lane.b32.xlu0 %v288, 126
      %v800 = vpop.permute.xlu0 %799
      %801 = vrot.lane.b32.xlu0 %v289, 126
      %v802 = vpop.permute.xlu0 %801
      %803 = vrot.lane.b32.xlu0 %v290, 126
      %v804 = vpop.permute.xlu0 %803
      %805 = vrot.lane.b32.xlu0 %v291, 126
      %v806 = vpop.permute.xlu0 %805
      %807 = vrot.lane.b32.xlu0 %v292, 126
      %v808 = vpop.permute.xlu0 %807
      %809 = vrot.lane.b32.xlu0 %v293, 126
      %v810 = vpop.permute.xlu0 %809
      %vm811 = vcmask 1031168
      %v812 = vsel %vm811, %v794, %v796
      %v813 = vsel %vm811, %v796, %v798
      %v814 = vsel %vm811, %v798, %v800
      %v815 = vsel %vm811, %v800, %v802
      %v816 = vsel %vm811, %v802, %v804
      %v817 = vsel %vm811, %v804, %v806
      %v818 = vsel %vm811, %v806, %v808
      %v819 = vsel %vm811, %v808, %v810
      %v821 = vsel %vm321, %v792, 0
      %v824 = vsel %vm325, %v812, 0
      %v827 = vsel %vm325, %v813, 0
      %v830 = vsel %vm325, %v814, 0
      %v833 = vsel %vm325, %v815, 0
      %v836 = vsel %vm325, %v816, 0
      %v839 = vsel %vm325, %v817, 0
      %v842 = vsel %vm325, %v818, 0
      %v845 = vsel %vm325, %v819, 0
      %v848 = vsel %vm325, %v810, 0
      %850 = vmatprep.subr.bf16.mxu0 %v827
      %851 = vmatpush1.bf16.msra.mxu0 %v824
      %852 = vmatprep.subr.bf16.mxu0 0
      %853 = vmatpush1.bf16.msra.mxu0 0
      %854 = vmatprep.subr.bf16.mxu0 0
      %855 = vmatpush1.bf16.msra.mxu0 0
      %856 = vmatprep.subr.bf16.mxu0 0
      %857 = vmatpush1.bf16.msra.mxu0 0
      %858 = vmatprep.subr.bf16.mxu0 0
      %859 = vmatpush1.bf16.msra.mxu0 0
      %860 = vmatprep.subr.bf16.mxu0 0
      %861 = vmatpush1.bf16.msra.mxu0 0
      %862 = vmatprep.subr.bf16.mxu0 0
      %863 = vmatpush1.bf16.msra.mxu0 0
      %864 = vmatprep.subr.bf16.mxu0 0
      %865 = vmatpush1.bf16.msra.mxu0 0
      %866 = vmatprep.subr.bf16.mxu0 0
      %867 = vmatpush1.bf16.msra.mxu0 0
      %868 = vmatprep.subr.bf16.mxu0 0
      %869 = vmatpush1.bf16.msra.mxu0 0
      %870 = vmatprep.subr.bf16.mxu0 0
      %871 = vmatpush1.bf16.msra.mxu0 0
      %872 = vmatprep.subr.bf16.mxu0 0
      %873 = vmatpush1.bf16.msra.mxu0 0
      %874 = vmatprep.subr.bf16.mxu0 0
      %875 = vmatpush1.bf16.msra.mxu0 0
      %876 = vmatprep.subr.bf16.mxu0 0
      %877 = vmatpush1.bf16.msra.mxu0 0
      %878 = vmatprep.subr.bf16.mxu0 0
      %879 = vmatpush1.bf16.msra.mxu0 0
      %880 = vmatprep.subr.bf16.mxu0 0
      %881 = vmatpush1.bf16.msra.mxu0 0
      %882 = vmatprep.mubr.bf16.mxu0 0
      %883 = vmatmul.mubr.bf16.gmra.mrb[0].mxu0 %v821
      %v884 = vpop.f32.mrb[0].mxu0
      %v885 = vadd.f32 0.0, %v884
      %v886 = vpop.f32.mrb[0].mxu0
      %v887 = vadd.f32 0.0, %v886
      %v888 = vpop.f32.mrb[0].mxu0
      %v889 = vpop.f32.mrb[0].mxu0
      %890 = vdwg.mxu0
      %891 = vmatprep.subr.bf16.mxu0 %v833
      %892 = vmatpush1.bf16.msra.mxu0 %v830
      %893 = vmatprep.subr.bf16.mxu0 0
      %894 = vmatpush1.bf16.msra.mxu0 0
      %895 = vmatprep.subr.bf16.mxu0 0
      %896 = vmatpush1.bf16.msra.mxu0 0
      %897 = vmatprep.subr.bf16.mxu0 0
      %898 = vmatpush1.bf16.msra.mxu0 0
      %899 = vmatprep.subr.bf16.mxu0 0
      %900 = vmatpush1.bf16.msra.mxu0 0
      %901 = vmatprep.subr.bf16.mxu0 0
      %902 = vmatpush1.bf16.msra.mxu0 0
      %903 = vmatprep.subr.bf16.mxu0 0
      %904 = vmatpush1.bf16.msra.mxu0 0
      %905 = vmatprep.subr.bf16.mxu0 0
      %906 = vmatpush1.bf16.msra.mxu0 0
      %907 = vmatprep.subr.bf16.mxu0 0
      %908 = vmatpush1.bf16.msra.mxu0 0
      %909 = vmatprep.subr.bf16.mxu0 0
      %910 = vmatpush1.bf16.msra.mxu0 0
      %911 = vmatprep.subr.bf16.mxu0 0
      %912 = vmatpush1.bf16.msra.mxu0 0
      %913 = vmatprep.subr.bf16.mxu0 0
      %914 = vmatpush1.bf16.msra.mxu0 0
      %915 = vmatprep.subr.bf16.mxu0 0
      %916 = vmatpush1.bf16.msra.mxu0 0
      %917 = vmatprep.subr.bf16.mxu0 0
      %918 = vmatpush1.bf16.msra.mxu0 0
      %919 = vmatprep.subr.bf16.mxu0 0
      %920 = vmatpush1.bf16.msra.mxu0 0
      %921 = vmatprep.subr.bf16.mxu0 0
      %922 = vmatpush1.bf16.msra.mxu0 0
      %923 = vmatprep.mubr.bf16.mxu0 0
      %924 = vmatmul.mubr.bf16.gmra.mrb[0].mxu0 %v821
      %v925 = vpop.f32.mrb[0].mxu0
      %v926 = vadd.f32 0.0, %v925
      %v927 = vpop.f32.mrb[0].mxu0
      %v928 = vadd.f32 0.0, %v927
      %v929 = vpop.f32.mrb[0].mxu0
      %v930 = vpop.f32.mrb[0].mxu0
      %931 = vdwg.mxu0
      %932 = vmatprep.subr.bf16.mxu0 %v839
      %933 = vmatpush1.bf16.msra.mxu0 %v836
      %934 = vmatprep.subr.bf16.mxu0 0
      %935 = vmatpush1.bf16.msra.mxu0 0
      %936 = vmatprep.subr.bf16.mxu0 0
      %937 = vmatpush1.bf16.msra.mxu0 0
      %938 = vmatprep.subr.bf16.mxu0 0
      %939 = vmatpush1.bf16.msra.mxu0 0
      %940 = vmatprep.subr.bf16.mxu0 0
      %941 = vmatpush1.bf16.msra.mxu0 0
      %942 = vmatprep.subr.bf16.mxu0 0
      %943 = vmatpush1.bf16.msra.mxu0 0
      %944 = vmatprep.subr.bf16.mxu0 0
      %945 = vmatpush1.bf16.msra.mxu0 0
      %946 = vmatprep.subr.bf16.mxu0 0
      %947 = vmatpush1.bf16.msra.mxu0 0
      %948 = vmatprep.subr.bf16.mxu0 0
      %949 = vmatpush1.bf16.msra.mxu0 0
      %950 = vmatprep.subr.bf16.mxu0 0
      %951 = vmatpush1.bf16.msra.mxu0 0
      %952 = vmatprep.subr.bf16.mxu0 0
      %953 = vmatpush1.bf16.msra.mxu0 0
      %954 = vmatprep.subr.bf16.mxu0 0
      %955 = vmatpush1.bf16.msra.mxu0 0
      %956 = vmatprep.subr.bf16.mxu0 0
      %957 = vmatpush1.bf16.msra.mxu0 0
      %958 = vmatprep.subr.bf16.mxu0 0
      %959 = vmatpush1.bf16.msra.mxu0 0
      %960 = vmatprep.subr.bf16.mxu0 0
      %961 = vmatpush1.bf16.msra.mxu0 0
      %962 = vmatprep.subr.bf16.mxu0 0
      %963 = vmatpush1.bf16.msra.mxu0 0
      %964 = vmatprep.mubr.bf16.mxu0 0
      %965 = vmatmul.mubr.bf16.gmra.mrb[0].mxu0 %v821
      %v966 = vpop.f32.mrb[0].mxu0
      %v967 = vadd.f32 0.0, %v966
      %v968 = vpop.f32.mrb[0].mxu0
      %v969 = vadd.f32 0.0, %v968
      %v970 = vpop.f32.mrb[0].mxu0
      %v971 = vpop.f32.mrb[0].mxu0
      %972 = vdwg.mxu0
      %973 = vmatprep.subr.bf16.mxu0 %v845
      %974 = vmatpush1.bf16.msra.mxu0 %v842
      %975 = vmatprep.subr.bf16.mxu0 0
      %976 = vmatpush1.bf16.msra.mxu0 0
      %977 = vmatprep.subr.bf16.mxu0 0
      %978 = vmatpush1.bf16.msra.mxu0 0
      %979 = vmatprep.subr.bf16.mxu0 0
      %980 = vmatpush1.bf16.msra.mxu0 0
      %981 = vmatprep.subr.bf16.mxu0 0
      %982 = vmatpush1.bf16.msra.mxu0 0
      %983 = vmatprep.subr.bf16.mxu0 0
      %984 = vmatpush1.bf16.msra.mxu0 0
      %985 = vmatprep.subr.bf16.mxu0 0
      %986 = vmatpush1.bf16.msra.mxu0 0
      %987 = vmatprep.subr.bf16.mxu0 0
      %988 = vmatpush1.bf16.msra.mxu0 0
      %989 = vmatprep.subr.bf16.mxu0 0
      %990 = vmatpush1.bf16.msra.mxu0 0
      %991 = vmatprep.subr.bf16.mxu0 0
      %992 = vmatpush1.bf16.msra.mxu0 0
      %993 = vmatprep.subr.bf16.mxu0 0
      %994 = vmatpush1.bf16.msra.mxu0 0
      %995 = vmatprep.subr.bf16.mxu0 0
      %996 = vmatpush1.bf16.msra.mxu0 0
      %997 = vmatprep.subr.bf16.mxu0 0
      %998 = vmatpush1.bf16.msra.mxu0 0
      %999 = vmatprep.subr.bf16.mxu0 0
      %1000 = vmatpush1.bf16.msra.mxu0 0
      %1001 = vmatprep.subr.bf16.mxu0 0
      %1002 = vmatpush1.bf16.msra.mxu0 0
      %1003 = vmatprep.subr.bf16.mxu0 0
      %1004 = vmatpush1.bf16.msra.mxu0 0
      %1005 = vmatprep.mubr.bf16.mxu0 0
      %1006 = vmatmul.mubr.bf16.gmra.mrb[0].mxu0 %v821
      %v1007 = vpop.f32.mrb[0].mxu0
      %v1008 = vadd.f32 0.0, %v1007
      %v1009 = vpop.f32.mrb[0].mxu0
      %v1010 = vadd.f32 0.0, %v1009
      %v1011 = vpop.f32.mrb[0].mxu0
      %v1012 = vpop.f32.mrb[0].mxu0
      %1013 = vdwg.mxu0
      %1014 = vmatprep.subr.bf16.mxu0 0
      %1015 = vmatpush1.bf16.msra.mxu0 %v848
      %1016 = vmatprep.subr.bf16.mxu0 0
      %1017 = vmatpush1.bf16.msra.mxu0 0
      %1018 = vmatprep.subr.bf16.mxu0 0
      %1019 = vmatpush1.bf16.msra.mxu0 0
      %1020 = vmatprep.subr.bf16.mxu0 0
      %1021 = vmatpush1.bf16.msra.mxu0 0
      %1022 = vmatprep.subr.bf16.mxu0 0
      %1023 = vmatpush1.bf16.msra.mxu0 0
      %1024 = vmatprep.subr.bf16.mxu0 0
      %1025 = vmatpush1.bf16.msra.mxu0 0
      %1026 = vmatprep.subr.bf16.mxu0 0
      %1027 = vmatpush1.bf16.msra.mxu0 0
      %1028 = vmatprep.subr.bf16.mxu0 0
      %1029 = vmatpush1.bf16.msra.mxu0 0
      %1030 = vmatprep.subr.bf16.mxu0 0
      %1031 = vmatpush1.bf16.msra.mxu0 0
      %1032 = vmatprep.subr.bf16.mxu0 0
      %1033 = vmatpush1.bf16.msra.mxu0 0
      %1034 = vmatprep.subr.bf16.mxu0 0
      %1035 = vmatpush1.bf16.msra.mxu0 0
      %1036 = vmatprep.subr.bf16.mxu0 0
      %1037 = vmatpush1.bf16.msra.mxu0 0
      %1038 = vmatprep.subr.bf16.mxu0 0
      %1039 = vmatpush1.bf16.msra.mxu0 0
      %1040 = vmatprep.subr.bf16.mxu0 0
      %1041 = vmatpush1.bf16.msra.mxu0 0
      %1042 = vmatprep.subr.bf16.mxu0 0
      %1043 = vmatpush1.bf16.msra.mxu0 0
      %1044 = vmatprep.subr.bf16.mxu0 0
      %1045 = vmatpush1.bf16.msra.mxu0 0
      %1046 = vmatprep.mubr.bf16.mxu0 0
      %1047 = vmatmul.mubr.bf16.gmra.mrb[0].mxu0 %v821
      %v1048 = vpop.f32.mrb[0].mxu0
      %v1049 = vadd.f32 0.0, %v1048
      %v1050 = vpop.f32.mrb[0].mxu0
      %v1051 = vpop.f32.mrb[0].mxu0
      %v1052 = vpop.f32.mrb[0].mxu0
      %1053 = vdwg.mxu0
      %v1054 = vadd.f32 %v622, %v885
      %v1055 = vadd.f32 %v624, %v887
      %v1056 = vadd.f32 %v663, %v926
      %v1057 = vadd.f32 %v665, %v928
      %v1058 = vadd.f32 %v704, %v967
      %v1059 = vadd.f32 %v706, %v969
      %v1060 = vadd.f32 %v745, %v1008
      %v1061 = vadd.f32 %v747, %v1010
      %v1062 = vadd.f32 %v786, %v1049
      %s1063 = scalar_lea.vmem %s0, 12
      %v1064 = vld [vmem:[%s1063] sm:$0xf]
      %1065 = vrot.lane.b32.xlu0 %v285, 94
      %v1066 = vpop.permute.xlu0 %1065
      %1067 = vrot.lane.b32.xlu0 %v286, 94
      %v1068 = vpop.permute.xlu0 %1067
      %1069 = vrot.lane.b32.xlu0 %v287, 94
      %v1070 = vpop.permute.xlu0 %1069
      %1071 = vrot.lane.b32.xlu0 %v288, 94
      %v1072 = vpop.permute.xlu0 %1071
      %1073 = vrot.lane.b32.xlu0 %v289, 94
      %v1074 = vpop.permute.xlu0 %1073
      %1075 = vrot.lane.b32.xlu0 %v290, 94
      %v1076 = vpop.permute.xlu0 %1075
      %1077 = vrot.lane.b32.xlu0 %v291, 94
      %v1078 = vpop.permute.xlu0 %1077
      %1079 = vrot.lane.b32.xlu0 %v292, 94
      %v1080 = vpop.permute.xlu0 %1079
      %1081 = vrot.lane.b32.xlu0 %v293, 94
      %v1082 = vpop.permute.xlu0 %1081
      %vm1083 = vcmask 769024
      %v1084 = vsel %vm1083, %v1066, %v1068
      %v1085 = vsel %vm1083, %v1068, %v1070
      %v1086 = vsel %vm1083, %v1070, %v1072
      %v1087 = vsel %vm1083, %v1072, %v1074
      %v1088 = vsel %vm1083, %v1074, %v1076
      %v1089 = vsel %vm1083, %v1076, %v1078
      %v1090 = vsel %vm1083, %v1078, %v1080
      %v1091 = vsel %vm1083, %v1080, %v1082
      %v1093 = vsel %vm321, %v1064, 0
      %v1096 = vsel %vm325, %v1084, 0
      %v1099 = vsel %vm325, %v1085, 0
      %v1102 = vsel %vm325, %v1086, 0
      %v1105 = vsel %vm325, %v1087, 0
      %v1108 = vsel %vm325, %v1088, 0
      %v1111 = vsel %vm325, %v1089, 0
      %v1114 = vsel %vm325, %v1090, 0
      %v1117 = vsel %vm325, %v1091, 0
      %v1120 = vsel %vm325, %v1082, 0
      %1122 = vmatprep.subr.bf16.mxu0 %v1099
      %1123 = vmatpush1.bf16.msra.mxu0 %v1096
      %1124 = vmatprep.subr.bf16.mxu0 0
      %1125 = vmatpush1.bf16.msra.mxu0 0
      %1126 = vmatprep.subr.bf16.mxu0 0
      %1127 = vmatpush1.bf16.msra.mxu0 0
      %1128 = vmatprep.subr.bf16.mxu0 0
      %1129 = vmatpush1.bf16.msra.mxu0 0
      %1130 = vmatprep.subr.bf16.mxu0 0
      %1131 = vmatpush1.bf16.msra.mxu0 0
      %1132 = vmatprep.subr.bf16.mxu0 0
      %1133 = vmatpush1.bf16.msra.mxu0 0
      %1134 = vmatprep.subr.bf16.mxu0 0
      %1135 = vmatpush1.bf16.msra.mxu0 0
      %1136 = vmatprep.subr.bf16.mxu0 0
      %1137 = vmatpush1.bf16.msra.mxu0 0
      %1138 = vmatprep.subr.bf16.mxu0 0
      %1139 = vmatpush1.bf16.msra.mxu0 0
      %1140 = vmatprep.subr.bf16.mxu0 0
      %1141 = vmatpush1.bf16.msra.mxu0 0
      %1142 = vmatprep.subr.bf16.mxu0 0
      %1143 = vmatpush1.bf16.msra.mxu0 0
      %1144 = vmatprep.subr.bf16.mxu0 0
      %1145 = vmatpush1.bf16.msra.mxu0 0
      %1146 = vmatprep.subr.bf16.mxu0 0
      %1147 = vmatpush1.bf16.msra.mxu0 0
      %1148 = vmatprep.subr.bf16.mxu0 0
      %1149 = vmatpush1.bf16.msra.mxu0 0
      %1150 = vmatprep.subr.bf16.mxu0 0
      %1151 = vmatpush1.bf16.msra.mxu0 0
      %1152 = vmatprep.subr.bf16.mxu0 0
      %1153 = vmatpush1.bf16.msra.mxu0 0
      %1154 = vmatprep.mubr.bf16.mxu0 0
      %1155 = vmatmul.mubr.bf16.gmra.mrb[0].mxu0 %v1093
      %v1156 = vpop.f32.mrb[0].mxu0
      %v1157 = vadd.f32 0.0, %v1156
      %v1158 = vpop.f32.mrb[0].mxu0
      %v1159 = vadd.f32 0.0, %v1158
      %v1160 = vpop.f32.mrb[0].mxu0
      %v1161 = vpop.f32.mrb[0].mxu0
      %1162 = vdwg.mxu0
      %1163 = vmatprep.subr.bf16.mxu0 %v1105
      %1164 = vmatpush1.bf16.msra.mxu0 %v1102
      %1165 = vmatprep.subr.bf16.mxu0 0
      %1166 = vmatpush1.bf16.msra.mxu0 0
      %1167 = vmatprep.subr.bf16.mxu0 0
      %1168 = vmatpush1.bf16.msra.mxu0 0
      %1169 = vmatprep.subr.bf16.mxu0 0
      %1170 = vmatpush1.bf16.msra.mxu0 0
      %1171 = vmatprep.subr.bf16.mxu0 0
      %1172 = vmatpush1.bf16.msra.mxu0 0
      %1173 = vmatprep.subr.bf16.mxu0 0
      %1174 = vmatpush1.bf16.msra.mxu0 0
      %1175 = vmatprep.subr.bf16.mxu0 0
      %1176 = vmatpush1.bf16.msra.mxu0 0
      %1177 = vmatprep.subr.bf16.mxu0 0
      %1178 = vmatpush1.bf16.msra.mxu0 0
      %1179 = vmatprep.subr.bf16.mxu0 0
      %1180 = vmatpush1.bf16.msra.mxu0 0
      %1181 = vmatprep.subr.bf16.mxu0 0
      %1182 = vmatpush1.bf16.msra.mxu0 0
      %1183 = vmatprep.subr.bf16.mxu0 0
      %1184 = vmatpush1.bf16.msra.mxu0 0
      %1185 = vmatprep.subr.bf16.mxu0 0
      %1186 = vmatpush1.bf16.msra.mxu0 0
      %1187 = vmatprep.subr.bf16.mxu0 0
      %1188 = vmatpush1.bf16.msra.mxu0 0
      %1189 = vmatprep.subr.bf16.mxu0 0
      %1190 = vmatpush1.bf16.msra.mxu0 0
      %1191 = vmatprep.subr.bf16.mxu0 0
      %1192 = vmatpush1.bf16.msra.mxu0 0
      %1193 = vmatprep.subr.bf16.mxu0 0
      %1194 = vmatpush1.bf16.msra.mxu0 0
      %1195 = vmatprep.mubr.bf16.mxu0 0
      %1196 = vmatmul.mubr.bf16.gmra.mrb[0].mxu0 %v1093
      %v1197 = vpop.f32.mrb[0].mxu0
      %v1198 = vadd.f32 0.0, %v1197
      %v1199 = vpop.f32.mrb[0].mxu0
      %v1200 = vadd.f32 0.0, %v1199
      %v1201 = vpop.f32.mrb[0].mxu0
      %v1202 = vpop.f32.mrb[0].mxu0
      %1203 = vdwg.mxu0
      %1204 = vmatprep.subr.bf16.mxu0 %v1111
      %1205 = vmatpush1.bf16.msra.mxu0 %v1108
      %1206 = vmatprep.subr.bf16.mxu0 0
      %1207 = vmatpush1.bf16.msra.mxu0 0
      %1208 = vmatprep.subr.bf16.mxu0 0
      %1209 = vmatpush1.bf16.msra.mxu0 0
      %1210 = vmatprep.subr.bf16.mxu0 0
      %1211 = vmatpush1.bf16.msra.mxu0 0
      %1212 = vmatprep.subr.bf16.mxu0 0
      %1213 = vmatpush1.bf16.msra.mxu0 0
      %1214 = vmatprep.subr.bf16.mxu0 0
      %1215 = vmatpush1.bf16.msra.mxu0 0
      %1216 = vmatprep.subr.bf16.mxu0 0
      %1217 = vmatpush1.bf16.msra.mxu0 0
      %1218 = vmatprep.subr.bf16.mxu0 0
      %1219 = vmatpush1.bf16.msra.mxu0 0
      %1220 = vmatprep.subr.bf16.mxu0 0
      %1221 = vmatpush1.bf16.msra.mxu0 0
      %1222 = vmatprep.subr.bf16.mxu0 0
      %1223 = vmatpush1.bf16.msra.mxu0 0
      %1224 = vmatprep.subr.bf16.mxu0 0
      %1225 = vmatpush1.bf16.msra.mxu0 0
      %1226 = vmatprep.subr.bf16.mxu0 0
      %1227 = vmatpush1.bf16.msra.mxu0 0
      %1228 = vmatprep.subr.bf16.mxu0 0
      %1229 = vmatpush1.bf16.msra.mxu0 0
      %1230 = vmatprep.subr.bf16.mxu0 0
      %1231 = vmatpush1.bf16.msra.mxu0 0
      %1232 = vmatprep.subr.bf16.mxu0 0
      %1233 = vmatpush1.bf16.msra.mxu0 0
      %1234 = vmatprep.subr.bf16.mxu0 0
      %1235 = vmatpush1.bf16.msra.mxu0 0
      %1236 = vmatprep.mubr.bf16.mxu0 0
      %1237 = vmatmul.mubr.bf16.gmra.mrb[0].mxu0 %v1093
      %v1238 = vpop.f32.mrb[0].mxu0
      %v1239 = vadd.f32 0.0, %v1238
      %v1240 = vpop.f32.mrb[0].mxu0
      %v1241 = vadd.f32 0.0, %v1240
      %v1242 = vpop.f32.mrb[0].mxu0
      %v1243 = vpop.f32.mrb[0].mxu0
      %1244 = vdwg.mxu0
      %1245 = vmatprep.subr.bf16.mxu0 %v1117
      %1246 = vmatpush1.bf16.msra.mxu0 %v1114
      %1247 = vmatprep.subr.bf16.mxu0 0
      %1248 = vmatpush1.bf16.msra.mxu0 0
      %1249 = vmatprep.subr.bf16.mxu0 0
      %1250 = vmatpush1.bf16.msra.mxu0 0
      %1251 = vmatprep.subr.bf16.mxu0 0
      %1252 = vmatpush1.bf16.msra.mxu0 0
      %1253 = vmatprep.subr.bf16.mxu0 0
      %1254 = vmatpush1.bf16.msra.mxu0 0
      %1255 = vmatprep.subr.bf16.mxu0 0
      %1256 = vmatpush1.bf16.msra.mxu0 0
      %1257 = vmatprep.subr.bf16.mxu0 0
      %1258 = vmatpush1.bf16.msra.mxu0 0
      %1259 = vmatprep.subr.bf16.mxu0 0
      %1260 = vmatpush1.bf16.msra.mxu0 0
      %1261 = vmatprep.subr.bf16.mxu0 0
      %1262 = vmatpush1.bf16.msra.mxu0 0
      %1263 = vmatprep.subr.bf16.mxu0 0
      %1264 = vmatpush1.bf16.msra.mxu0 0
      %1265 = vmatprep.subr.bf16.mxu0 0
      %1266 = vmatpush1.bf16.msra.mxu0 0
      %1267 = vmatprep.subr.bf16.mxu0 0
      %1268 = vmatpush1.bf16.msra.mxu0 0
      %1269 = vmatprep.subr.bf16.mxu0 0
      %1270 = vmatpush1.bf16.msra.mxu0 0
      %1271 = vmatprep.subr.bf16.mxu0 0
      %1272 = vmatpush1.bf16.msra.mxu0 0
      %1273 = vmatprep.subr.bf16.mxu0 0
      %1274 = vmatpush1.bf16.msra.mxu0 0
      %1275 = vmatprep.subr.bf16.mxu0 0
      %1276 = vmatpush1.bf16.msra.mxu0 0
      %1277 = vmatprep.mubr.bf16.mxu0 0
      %1278 = vmatmul.mubr.bf16.gmra.mrb[0].mxu0 %v1093
      %v1279 = vpop.f32.mrb[0].mxu0
      %v1280 = vadd.f32 0.0, %v1279
      %v1281 = vpop.f32.mrb[0].mxu0
      %v1282 = vadd.f32 0.0, %v1281
      %v1283 = vpop.f32.mrb[0].mxu0
      %v1284 = vpop.f32.mrb[0].mxu0
      %1285 = vdwg.mxu0
      %1286 = vmatprep.subr.bf16.mxu0 0
      %1287 = vmatpush1.bf16.msra.mxu0 %v1120
      %1288 = vmatprep.subr.bf16.mxu0 0
      %1289 = vmatpush1.bf16.msra.mxu0 0
      %1290 = vmatprep.subr.bf16.mxu0 0
      %1291 = vmatpush1.bf16.msra.mxu0 0
      %1292 = vmatprep.subr.bf16.mxu0 0
      %1293 = vmatpush1.bf16.msra.mxu0 0
      %1294 = vmatprep.subr.bf16.mxu0 0
      %1295 = vmatpush1.bf16.msra.mxu0 0
      %1296 = vmatprep.subr.bf16.mxu0 0
      %1297 = vmatpush1.bf16.msra.mxu0 0
      %1298 = vmatprep.subr.bf16.mxu0 0
      %1299 = vmatpush1.bf16.msra.mxu0 0
      %1300 = vmatprep.subr.bf16.mxu0 0
      %1301 = vmatpush1.bf16.msra.mxu0 0
      %1302 = vmatprep.subr.bf16.mxu0 0
      %1303 = vmatpush1.bf16.msra.mxu0 0
      %1304 = vmatprep.subr.bf16.mxu0 0
      %1305 = vmatpush1.bf16.msra.mxu0 0
      %1306 = vmatprep.subr.bf16.mxu0 0
      %1307 = vmatpush1.bf16.msra.mxu0 0
      %1308 = vmatprep.subr.bf16.mxu0 0
      %1309 = vmatpush1.bf16.msra.mxu0 0
      %1310 = vmatprep.subr.bf16.mxu0 0
      %1311 = vmatpush1.bf16.msra.mxu0 0
      %1312 = vmatprep.subr.bf16.mxu0 0
      %1313 = vmatpush1.bf16.msra.mxu0 0
      %1314 = vmatprep.subr.bf16.mxu0 0
      %1315 = vmatpush1.bf16.msra.mxu0 0
      %1316 = vmatprep.subr.bf16.mxu0 0
      %1317 = vmatpush1.bf16.msra.mxu0 0
      %1318 = vmatprep.mubr.bf16.mxu0 0
      %1319 = vmatmul.mubr.bf16.gmra.mrb[0].mxu0 %v1093
      %v1320 = vpop.f32.mrb[0].mxu0
      %v1321 = vadd.f32 0.0, %v1320
      %v1322 = vpop.f32.mrb[0].mxu0
      %v1323 = vpop.f32.mrb[0].mxu0
      %v1324 = vpop.f32.mrb[0].mxu0
      %1325 = vdwg.mxu0
      %v1326 = vadd.f32 %v1054, %v1157
      %v1327 = vadd.f32 %v1055, %v1159
      %v1328 = vadd.f32 %v1056, %v1198
      %v1329 = vadd.f32 %v1057, %v1200
      %v1330 = vadd.f32 %v1058, %v1239
      %v1331 = vadd.f32 %v1059, %v1241
      %v1332 = vadd.f32 %v1060, %v1280
      %v1333 = vadd.f32 %v1061, %v1282
      %v1334 = vadd.f32 %v1062, %v1321
      %s1335 = scalar_lea.vmem %s0, 16
      %v1336 = vld [vmem:[%s1335] sm:$0xf]
      %1337 = vrot.lane.b32.xlu0 %v285, 93
      %v1338 = vpop.permute.xlu0 %1337
      %1339 = vrot.lane.b32.xlu0 %v286, 93
      %v1340 = vpop.permute.xlu0 %1339
      %1341 = vrot.lane.b32.xlu0 %v287, 93
      %v1342 = vpop.permute.xlu0 %1341
      %1343 = vrot.lane.b32.xlu0 %v288, 93
      %v1344 = vpop.permute.xlu0 %1343
      %1345 = vrot.lane.b32.xlu0 %v289, 93
      %v1346 = vpop.permute.xlu0 %1345
      %1347 = vrot.lane.b32.xlu0 %v290, 93
      %v1348 = vpop.permute.xlu0 %1347
      %1349 = vrot.lane.b32.xlu0 %v291, 93
      %v1350 = vpop.permute.xlu0 %1349
      %1351 = vrot.lane.b32.xlu0 %v292, 93
      %v1352 = vpop.permute.xlu0 %1351
      %1353 = vrot.lane.b32.xlu0 %v293, 93
      %v1354 = vpop.permute.xlu0 %1353
      %vm1355 = vcmask 760832
      %v1356 = vsel %vm1355, %v1338, %v1340
      %v1357 = vsel %vm1355, %v1340, %v1342
      %v1358 = vsel %vm1355, %v1342, %v1344
      %v1359 = vsel %vm1355, %v1344, %v1346
      %v1360 = vsel %vm1355, %v1346, %v1348
      %v1361 = vsel %vm1355, %v1348, %v1350
      %v1362 = vsel %vm1355, %v1350, %v1352
      %v1363 = vsel %vm1355, %v1352, %v1354
      %v1365 = vsel %vm321, %v1336, 0
      %v1368 = vsel %vm325, %v1356, 0
      %v1371 = vsel %vm325, %v1357, 0
      %v1374 = vsel %vm325, %v1358, 0
      %v1377 = vsel %vm325, %v1359, 0
      %v1380 = vsel %vm325, %v1360, 0
      %v1383 = vsel %vm325, %v1361, 0
      %v1386 = vsel %vm325, %v1362, 0
      %v1389 = vsel %vm325, %v1363, 0
      %v1392 = vsel %vm325, %v1354, 0
      %1394 = vmatprep.subr.bf16.mxu0 %v1371
      %1395 = vmatpush1.bf16.msra.mxu0 %v1368
      %1396 = vmatprep.subr.bf16.mxu0 0
      %1397 = vmatpush1.bf16.msra.mxu0 0
      %1398 = vmatprep.subr.bf16.mxu0 0
      %1399 = vmatpush1.bf16.msra.mxu0 0
      %1400 = vmatprep.subr.bf16.mxu0 0
      %1401 = vmatpush1.bf16.msra.mxu0 0
      %1402 = vmatprep.subr.bf16.mxu0 0
      %1403 = vmatpush1.bf16.msra.mxu0 0
      %1404 = vmatprep.subr.bf16.mxu0 0
      %1405 = vmatpush1.bf16.msra.mxu0 0
      %1406 = vmatprep.subr.bf16.mxu0 0
      %1407 = vmatpush1.bf16.msra.mxu0 0
      %1408 = vmatprep.subr.bf16.mxu0 0
      %1409 = vmatpush1.bf16.msra.mxu0 0
      %1410 = vmatprep.subr.bf16.mxu0 0
      %1411 = vmatpush1.bf16.msra.mxu0 0
      %1412 = vmatprep.subr.bf16.mxu0 0
      %1413 = vmatpush1.bf16.msra.mxu0 0
      %1414 = vmatprep.subr.bf16.mxu0 0
      %1415 = vmatpush1.bf16.msra.mxu0 0
      %1416 = vmatprep.subr.bf16.mxu0 0
      %1417 = vmatpush1.bf16.msra.mxu0 0
      %1418 = vmatprep.subr.bf16.mxu0 0
      %1419 = vmatpush1.bf16.msra.mxu0 0
      %1420 = vmatprep.subr.bf16.mxu0 0
      %1421 = vmatpush1.bf16.msra.mxu0 0
      %1422 = vmatprep.subr.bf16.mxu0 0
      %1423 = vmatpush1.bf16.msra.mxu0 0
      %1424 = vmatprep.subr.bf16.mxu0 0
      %1425 = vmatpush1.bf16.msra.mxu0 0
      %1426 = vmatprep.mubr.bf16.mxu0 0
      %1427 = vmatmul.mubr.bf16.gmra.mrb[0].mxu0 %v1365
      %v1428 = vpop.f32.mrb[0].mxu0
      %v1429 = vadd.f32 0.0, %v1428
      %v1430 = vpop.f32.mrb[0].mxu0
      %v1431 = vadd.f32 0.0, %v1430
      %v1432 = vpop.f32.mrb[0].mxu0
      %v1433 = vpop.f32.mrb[0].mxu0
      %1434 = vdwg.mxu0
      %1435 = vmatprep.subr.bf16.mxu0 %v1377
      %1436 = vmatpush1.bf16.msra.mxu0 %v1374
      %1437 = vmatprep.subr.bf16.mxu0 0
      %1438 = vmatpush1.bf16.msra.mxu0 0
      %1439 = vmatprep.subr.bf16.mxu0 0
      %1440 = vmatpush1.bf16.msra.mxu0 0
      %1441 = vmatprep.subr.bf16.mxu0 0
      %1442 = vmatpush1.bf16.msra.mxu0 0
      %1443 = vmatprep.subr.bf16.mxu0 0
      %1444 = vmatpush1.bf16.msra.mxu0 0
      %1445 = vmatprep.subr.bf16.mxu0 0
      %1446 = vmatpush1.bf16.msra.mxu0 0
      %1447 = vmatprep.subr.bf16.mxu0 0
      %1448 = vmatpush1.bf16.msra.mxu0 0
      %1449 = vmatprep.subr.bf16.mxu0 0
      %1450 = vmatpush1.bf16.msra.mxu0 0
      %1451 = vmatprep.subr.bf16.mxu0 0
      %1452 = vmatpush1.bf16.msra.mxu0 0
      %1453 = vmatprep.subr.bf16.mxu0 0
      %1454 = vmatpush1.bf16.msra.mxu0 0
      %1455 = vmatprep.subr.bf16.mxu0 0
      %1456 = vmatpush1.bf16.msra.mxu0 0
      %1457 = vmatprep.subr.bf16.mxu0 0
      %1458 = vmatpush1.bf16.msra.mxu0 0
      %1459 = vmatprep.subr.bf16.mxu0 0
      %1460 = vmatpush1.bf16.msra.mxu0 0
      %1461 = vmatprep.subr.bf16.mxu0 0
      %1462 = vmatpush1.bf16.msra.mxu0 0
      %1463 = vmatprep.subr.bf16.mxu0 0
      %1464 = vmatpush1.bf16.msra.mxu0 0
      %1465 = vmatprep.subr.bf16.mxu0 0
      %1466 = vmatpush1.bf16.msra.mxu0 0
      %1467 = vmatprep.mubr.bf16.mxu0 0
      %1468 = vmatmul.mubr.bf16.gmra.mrb[0].mxu0 %v1365
      %v1469 = vpop.f32.mrb[0].mxu0
      %v1470 = vadd.f32 0.0, %v1469
      %v1471 = vpop.f32.mrb[0].mxu0
      %v1472 = vadd.f32 0.0, %v1471
      %v1473 = vpop.f32.mrb[0].mxu0
      %v1474 = vpop.f32.mrb[0].mxu0
      %1475 = vdwg.mxu0
      %1476 = vmatprep.subr.bf16.mxu0 %v1383
      %1477 = vmatpush1.bf16.msra.mxu0 %v1380
      %1478 = vmatprep.subr.bf16.mxu0 0
      %1479 = vmatpush1.bf16.msra.mxu0 0
      %1480 = vmatprep.subr.bf16.mxu0 0
      %1481 = vmatpush1.bf16.msra.mxu0 0
      %1482 = vmatprep.subr.bf16.mxu0 0
      %1483 = vmatpush1.bf16.msra.mxu0 0
      %1484 = vmatprep.subr.bf16.mxu0 0
      %1485 = vmatpush1.bf16.msra.mxu0 0
      %1486 = vmatprep.subr.bf16.mxu0 0
      %1487 = vmatpush1.bf16.msra.mxu0 0
      %1488 = vmatprep.subr.bf16.mxu0 0
      %1489 = vmatpush1.bf16.msra.mxu0 0
      %1490 = vmatprep.subr.bf16.mxu0 0
      %1491 = vmatpush1.bf16.msra.mxu0 0
      %1492 = vmatprep.subr.bf16.mxu0 0
      %1493 = vmatpush1.bf16.msra.mxu0 0
      %1494 = vmatprep.subr.bf16.mxu0 0
      %1495 = vmatpush1.bf16.msra.mxu0 0
      %1496 = vmatprep.subr.bf16.mxu0 0
      %1497 = vmatpush1.bf16.msra.mxu0 0
      %1498 = vmatprep.subr.bf16.mxu0 0
      %1499 = vmatpush1.bf16.msra.mxu0 0
      %1500 = vmatprep.subr.bf16.mxu0 0
      %1501 = vmatpush1.bf16.msra.mxu0 0
      %1502 = vmatprep.subr.bf16.mxu0 0
      %1503 = vmatpush1.bf16.msra.mxu0 0
      %1504 = vmatprep.subr.bf16.mxu0 0
      %1505 = vmatpush1.bf16.msra.mxu0 0
      %1506 = vmatprep.subr.bf16.mxu0 0
      %1507 = vmatpush1.bf16.msra.mxu0 0
      %1508 = vmatprep.mubr.bf16.mxu0 0
      %1509 = vmatmul.mubr.bf16.gmra.mrb[0].mxu0 %v1365
      %v1510 = vpop.f32.mrb[0].mxu0
      %v1511 = vadd.f32 0.0, %v1510
      %v1512 = vpop.f32.mrb[0].mxu0
      %v1513 = vadd.f32 0.0, %v1512
      %v1514 = vpop.f32.mrb[0].mxu0
      %v1515 = vpop.f32.mrb[0].mxu0
      %1516 = vdwg.mxu0
      %1517 = vmatprep.subr.bf16.mxu0 %v1389
      %1518 = vmatpush1.bf16.msra.mxu0 %v1386
      %1519 = vmatprep.subr.bf16.mxu0 0
      %1520 = vmatpush1.bf16.msra.mxu0 0
      %1521 = vmatprep.subr.bf16.mxu0 0
      %1522 = vmatpush1.bf16.msra.mxu0 0
      %1523 = vmatprep.subr.bf16.mxu0 0
      %1524 = vmatpush1.bf16.msra.mxu0 0
      %1525 = vmatprep.subr.bf16.mxu0 0
      %1526 = vmatpush1.bf16.msra.mxu0 0
      %1527 = vmatprep.subr.bf16.mxu0 0
      %1528 = vmatpush1.bf16.msra.mxu0 0
      %1529 = vmatprep.subr.bf16.mxu0 0
      %1530 = vmatpush1.bf16.msra.mxu0 0
      %1531 = vmatprep.subr.bf16.mxu0 0
      %1532 = vmatpush1.bf16.msra.mxu0 0
      %1533 = vmatprep.subr.bf16.mxu0 0
      %1534 = vmatpush1.bf16.msra.mxu0 0
      %1535 = vmatprep.subr.bf16.mxu0 0
      %1536 = vmatpush1.bf16.msra.mxu0 0
      %1537 = vmatprep.subr.bf16.mxu0 0
      %1538 = vmatpush1.bf16.msra.mxu0 0
      %1539 = vmatprep.subr.bf16.mxu0 0
      %1540 = vmatpush1.bf16.msra.mxu0 0
      %1541 = vmatprep.subr.bf16.mxu0 0
      %1542 = vmatpush1.bf16.msra.mxu0 0
      %1543 = vmatprep.subr.bf16.mxu0 0
      %1544 = vmatpush1.bf16.msra.mxu0 0
      %1545 = vmatprep.subr.bf16.mxu0 0
      %1546 = vmatpush1.bf16.msra.mxu0 0
      %1547 = vmatprep.subr.bf16.mxu0 0
      %1548 = vmatpush1.bf16.msra.mxu0 0
      %1549 = vmatprep.mubr.bf16.mxu0 0
      %1550 = vmatmul.mubr.bf16.gmra.mrb[0].mxu0 %v1365
      %v1551 = vpop.f32.mrb[0].mxu0
      %v1552 = vadd.f32 0.0, %v1551
      %v1553 = vpop.f32.mrb[0].mxu0
      %v1554 = vadd.f32 0.0, %v1553
      %v1555 = vpop.f32.mrb[0].mxu0
      %v1556 = vpop.f32.mrb[0].mxu0
      %1557 = vdwg.mxu0
      %1558 = vmatprep.subr.bf16.mxu0 0
      %1559 = vmatpush1.bf16.msra.mxu0 %v1392
      %1560 = vmatprep.subr.bf16.mxu0 0
      %1561 = vmatpush1.bf16.msra.mxu0 0
      %1562 = vmatprep.subr.bf16.mxu0 0
      %1563 = vmatpush1.bf16.msra.mxu0 0
      %1564 = vmatprep.subr.bf16.mxu0 0
      %1565 = vmatpush1.bf16.msra.mxu0 0
      %1566 = vmatprep.subr.bf16.mxu0 0
      %1567 = vmatpush1.bf16.msra.mxu0 0
      %1568 = vmatprep.subr.bf16.mxu0 0
      %1569 = vmatpush1.bf16.msra.mxu0 0
      %1570 = vmatprep.subr.bf16.mxu0 0
      %1571 = vmatpush1.bf16.msra.mxu0 0
      %1572 = vmatprep.subr.bf16.mxu0 0
      %1573 = vmatpush1.bf16.msra.mxu0 0
      %1574 = vmatprep.subr.bf16.mxu0 0
      %1575 = vmatpush1.bf16.msra.mxu0 0
      %1576 = vmatprep.subr.bf16.mxu0 0
      %1577 = vmatpush1.bf16.msra.mxu0 0
      %1578 = vmatprep.subr.bf16.mxu0 0
      %1579 = vmatpush1.bf16.msra.mxu0 0
      %1580 = vmatprep.subr.bf16.mxu0 0
      %1581 = vmatpush1.bf16.msra.mxu0 0
      %1582 = vmatprep.subr.bf16.mxu0 0
      %1583 = vmatpush1.bf16.msra.mxu0 0
      %1584 = vmatprep.subr.bf16.mxu0 0
      %1585 = vmatpush1.bf16.msra.mxu0 0
      %1586 = vmatprep.subr.bf16.mxu0 0
      %1587 = vmatpush1.bf16.msra.mxu0 0
      %1588 = vmatprep.subr.bf16.mxu0 0
      %1589 = vmatpush1.bf16.msra.mxu0 0
      %1590 = vmatprep.mubr.bf16.mxu0 0
      %1591 = vmatmul.mubr.bf16.gmra.mrb[0].mxu0 %v1365
      %v1592 = vpop.f32.mrb[0].mxu0
      %v1593 = vadd.f32 0.0, %v1592
      %v1594 = vpop.f32.mrb[0].mxu0
      %v1595 = vpop.f32.mrb[0].mxu0
      %v1596 = vpop.f32.mrb[0].mxu0
      %1597 = vdwg.mxu0
      %v1598 = vadd.f32 %v1326, %v1429
      %v1599 = vadd.f32 %v1327, %v1431
      %v1600 = vadd.f32 %v1328, %v1470
      %v1601 = vadd.f32 %v1329, %v1472
      %v1602 = vadd.f32 %v1330, %v1511
      %v1603 = vadd.f32 %v1331, %v1513
      %v1604 = vadd.f32 %v1332, %v1552
      %v1605 = vadd.f32 %v1333, %v1554
      %v1606 = vadd.f32 %v1334, %v1593
      %s1607 = scalar_lea.vmem %s0, 20
      %v1608 = vld [vmem:[%s1607] sm:$0xf]
      %1609 = vrot.lane.b32.xlu0 %v285, 92
      %v1610 = vpop.permute.xlu0 %1609
      %1611 = vrot.lane.b32.xlu0 %v286, 92
      %v1612 = vpop.permute.xlu0 %1611
      %1613 = vrot.lane.b32.xlu0 %v287, 92
      %v1614 = vpop.permute.xlu0 %1613
      %1615 = vrot.lane.b32.xlu0 %v288, 92
      %v1616 = vpop.permute.xlu0 %1615
      %1617 = vrot.lane.b32.xlu0 %v289, 92
      %v1618 = vpop.permute.xlu0 %1617
      %1619 = vrot.lane.b32.xlu0 %v290, 92
      %v1620 = vpop.permute.xlu0 %1619
      %1621 = vrot.lane.b32.xlu0 %v291, 92
      %v1622 = vpop.permute.xlu0 %1621
      %1623 = vrot.lane.b32.xlu0 %v292, 92
      %v1624 = vpop.permute.xlu0 %1623
      %1625 = vrot.lane.b32.xlu0 %v293, 92
      %v1626 = vpop.permute.xlu0 %1625
      %vm1627 = vcmask 752640
      %v1628 = vsel %vm1627, %v1610, %v1612
      %v1629 = vsel %vm1627, %v1612, %v1614
      %v1630 = vsel %vm1627, %v1614, %v1616
      %v1631 = vsel %vm1627, %v1616, %v1618
      %v1632 = vsel %vm1627, %v1618, %v1620
      %v1633 = vsel %vm1627, %v1620, %v1622
      %v1634 = vsel %vm1627, %v1622, %v1624
      %v1635 = vsel %vm1627, %v1624, %v1626
      %v1637 = vsel %vm321, %v1608, 0
      %v1640 = vsel %vm325, %v1628, 0
      %v1643 = vsel %vm325, %v1629, 0
      %v1646 = vsel %vm325, %v1630, 0
      %v1649 = vsel %vm325, %v1631, 0
      %v1652 = vsel %vm325, %v1632, 0
      %v1655 = vsel %vm325, %v1633, 0
      %v1658 = vsel %vm325, %v1634, 0
      %v1661 = vsel %vm325, %v1635, 0
      %v1664 = vsel %vm325, %v1626, 0
      %1666 = vmatprep.subr.bf16.mxu0 %v1643
      %1667 = vmatpush1.bf16.msra.mxu0 %v1640
      %1668 = vmatprep.subr.bf16.mxu0 0
      %1669 = vmatpush1.bf16.msra.mxu0 0
      %1670 = vmatprep.subr.bf16.mxu0 0
      %1671 = vmatpush1.bf16.msra.mxu0 0
      %1672 = vmatprep.subr.bf16.mxu0 0
      %1673 = vmatpush1.bf16.msra.mxu0 0
      %1674 = vmatprep.subr.bf16.mxu0 0
      %1675 = vmatpush1.bf16.msra.mxu0 0
      %1676 = vmatprep.subr.bf16.mxu0 0
      %1677 = vmatpush1.bf16.msra.mxu0 0
      %1678 = vmatprep.subr.bf16.mxu0 0
      %1679 = vmatpush1.bf16.msra.mxu0 0
      %1680 = vmatprep.subr.bf16.mxu0 0
      %1681 = vmatpush1.bf16.msra.mxu0 0
      %1682 = vmatprep.subr.bf16.mxu0 0
      %1683 = vmatpush1.bf16.msra.mxu0 0
      %1684 = vmatprep.subr.bf16.mxu0 0
      %1685 = vmatpush1.bf16.msra.mxu0 0
      %1686 = vmatprep.subr.bf16.mxu0 0
      %1687 = vmatpush1.bf16.msra.mxu0 0
      %1688 = vmatprep.subr.bf16.mxu0 0
      %1689 = vmatpush1.bf16.msra.mxu0 0
      %1690 = vmatprep.subr.bf16.mxu0 0
      %1691 = vmatpush1.bf16.msra.mxu0 0
      %1692 = vmatprep.subr.bf16.mxu0 0
      %1693 = vmatpush1.bf16.msra.mxu0 0
      %1694 = vmatprep.subr.bf16.mxu0 0
      %1695 = vmatpush1.bf16.msra.mxu0 0
      %1696 = vmatprep.subr.bf16.mxu0 0
      %1697 = vmatpush1.bf16.msra.mxu0 0
      %1698 = vmatprep.mubr.bf16.mxu0 0
      %1699 = vmatmul.mubr.bf16.gmra.mrb[0].mxu0 %v1637
      %v1700 = vpop.f32.mrb[0].mxu0
      %v1701 = vadd.f32 0.0, %v1700
      %v1702 = vpop.f32.mrb[0].mxu0
      %v1703 = vadd.f32 0.0, %v1702
      %v1704 = vpop.f32.mrb[0].mxu0
      %v1705 = vpop.f32.mrb[0].mxu0
      %1706 = vdwg.mxu0
      %1707 = vmatprep.subr.bf16.mxu0 %v1649
      %1708 = vmatpush1.bf16.msra.mxu0 %v1646
      %1709 = vmatprep.subr.bf16.mxu0 0
      %1710 = vmatpush1.bf16.msra.mxu0 0
      %1711 = vmatprep.subr.bf16.mxu0 0
      %1712 = vmatpush1.bf16.msra.mxu0 0
      %1713 = vmatprep.subr.bf16.mxu0 0
      %1714 = vmatpush1.bf16.msra.mxu0 0
      %1715 = vmatprep.subr.bf16.mxu0 0
      %1716 = vmatpush1.bf16.msra.mxu0 0
      %1717 = vmatprep.subr.bf16.mxu0 0
      %1718 = vmatpush1.bf16.msra.mxu0 0
      %1719 = vmatprep.subr.bf16.mxu0 0
      %1720 = vmatpush1.bf16.msra.mxu0 0
      %1721 = vmatprep.subr.bf16.mxu0 0
      %1722 = vmatpush1.bf16.msra.mxu0 0
      %1723 = vmatprep.subr.bf16.mxu0 0
      %1724 = vmatpush1.bf16.msra.mxu0 0
      %1725 = vmatprep.subr.bf16.mxu0 0
      %1726 = vmatpush1.bf16.msra.mxu0 0
      %1727 = vmatprep.subr.bf16.mxu0 0
      %1728 = vmatpush1.bf16.msra.mxu0 0
      %1729 = vmatprep.subr.bf16.mxu0 0
      %1730 = vmatpush1.bf16.msra.mxu0 0
      %1731 = vmatprep.subr.bf16.mxu0 0
      %1732 = vmatpush1.bf16.msra.mxu0 0
      %1733 = vmatprep.subr.bf16.mxu0 0
      %1734 = vmatpush1.bf16.msra.mxu0 0
      %1735 = vmatprep.subr.bf16.mxu0 0
      %1736 = vmatpush1.bf16.msra.mxu0 0
      %1737 = vmatprep.subr.bf16.mxu0 0
      %1738 = vmatpush1.bf16.msra.mxu0 0
      %1739 = vmatprep.mubr.bf16.mxu0 0
      %1740 = vmatmul.mubr.bf16.gmra.mrb[0].mxu0 %v1637
      %v1741 = vpop.f32.mrb[0].mxu0
      %v1742 = vadd.f32 0.0, %v1741
      %v1743 = vpop.f32.mrb[0].mxu0
      %v1744 = vadd.f32 0.0, %v1743
      %v1745 = vpop.f32.mrb[0].mxu0
      %v1746 = vpop.f32.mrb[0].mxu0
      %1747 = vdwg.mxu0
      %1748 = vmatprep.subr.bf16.mxu0 %v1655
      %1749 = vmatpush1.bf16.msra.mxu0 %v1652
      %1750 = vmatprep.subr.bf16.mxu0 0
      %1751 = vmatpush1.bf16.msra.mxu0 0
      %1752 = vmatprep.subr.bf16.mxu0 0
      %1753 = vmatpush1.bf16.msra.mxu0 0
      %1754 = vmatprep.subr.bf16.mxu0 0
      %1755 = vmatpush1.bf16.msra.mxu0 0
      %1756 = vmatprep.subr.bf16.mxu0 0
      %1757 = vmatpush1.bf16.msra.mxu0 0
      %1758 = vmatprep.subr.bf16.mxu0 0
      %1759 = vmatpush1.bf16.msra.mxu0 0
      %1760 = vmatprep.subr.bf16.mxu0 0
      %1761 = vmatpush1.bf16.msra.mxu0 0
      %1762 = vmatprep.subr.bf16.mxu0 0
      %1763 = vmatpush1.bf16.msra.mxu0 0
      %1764 = vmatprep.subr.bf16.mxu0 0
      %1765 = vmatpush1.bf16.msra.mxu0 0
      %1766 = vmatprep.subr.bf16.mxu0 0
      %1767 = vmatpush1.bf16.msra.mxu0 0
      %1768 = vmatprep.subr.bf16.mxu0 0
      %1769 = vmatpush1.bf16.msra.mxu0 0
      %1770 = vmatprep.subr.bf16.mxu0 0
      %1771 = vmatpush1.bf16.msra.mxu0 0
      %1772 = vmatprep.subr.bf16.mxu0 0
      %1773 = vmatpush1.bf16.msra.mxu0 0
      %1774 = vmatprep.subr.bf16.mxu0 0
      %1775 = vmatpush1.bf16.msra.mxu0 0
      %1776 = vmatprep.subr.bf16.mxu0 0
      %1777 = vmatpush1.bf16.msra.mxu0 0
      %1778 = vmatprep.subr.bf16.mxu0 0
      %1779 = vmatpush1.bf16.msra.mxu0 0
      %1780 = vmatprep.mubr.bf16.mxu0 0
      %1781 = vmatmul.mubr.bf16.gmra.mrb[0].mxu0 %v1637
      %v1782 = vpop.f32.mrb[0].mxu0
      %v1783 = vadd.f32 0.0, %v1782
      %v1784 = vpop.f32.mrb[0].mxu0
      %v1785 = vadd.f32 0.0, %v1784
      %v1786 = vpop.f32.mrb[0].mxu0
      %v1787 = vpop.f32.mrb[0].mxu0
      %1788 = vdwg.mxu0
      %1789 = vmatprep.subr.bf16.mxu0 %v1661
      %1790 = vmatpush1.bf16.msra.mxu0 %v1658
      %1791 = vmatprep.subr.bf16.mxu0 0
      %1792 = vmatpush1.bf16.msra.mxu0 0
      %1793 = vmatprep.subr.bf16.mxu0 0
      %1794 = vmatpush1.bf16.msra.mxu0 0
      %1795 = vmatprep.subr.bf16.mxu0 0
      %1796 = vmatpush1.bf16.msra.mxu0 0
      %1797 = vmatprep.subr.bf16.mxu0 0
      %1798 = vmatpush1.bf16.msra.mxu0 0
      %1799 = vmatprep.subr.bf16.mxu0 0
      %1800 = vmatpush1.bf16.msra.mxu0 0
      %1801 = vmatprep.subr.bf16.mxu0 0
      %1802 = vmatpush1.bf16.msra.mxu0 0
      %1803 = vmatprep.subr.bf16.mxu0 0
      %1804 = vmatpush1.bf16.msra.mxu0 0
      %1805 = vmatprep.subr.bf16.mxu0 0
      %1806 = vmatpush1.bf16.msra.mxu0 0
      %1807 = vmatprep.subr.bf16.mxu0 0
      %1808 = vmatpush1.bf16.msra.mxu0 0
      %1809 = vmatprep.subr.bf16.mxu0 0
      %1810 = vmatpush1.bf16.msra.mxu0 0
      %1811 = vmatprep.subr.bf16.mxu0 0
      %1812 = vmatpush1.bf16.msra.mxu0 0
      %1813 = vmatprep.subr.bf16.mxu0 0
      %1814 = vmatpush1.bf16.msra.mxu0 0
      %1815 = vmatprep.subr.bf16.mxu0 0
      %1816 = vmatpush1.bf16.msra.mxu0 0
      %1817 = vmatprep.subr.bf16.mxu0 0
      %1818 = vmatpush1.bf16.msra.mxu0 0
      %1819 = vmatprep.subr.bf16.mxu0 0
      %1820 = vmatpush1.bf16.msra.mxu0 0
      %1821 = vmatprep.mubr.bf16.mxu0 0
      %1822 = vmatmul.mubr.bf16.gmra.mrb[0].mxu0 %v1637
      %v1823 = vpop.f32.mrb[0].mxu0
      %v1824 = vadd.f32 0.0, %v1823
      %v1825 = vpop.f32.mrb[0].mxu0
      %v1826 = vadd.f32 0.0, %v1825
      %v1827 = vpop.f32.mrb[0].mxu0
      %v1828 = vpop.f32.mrb[0].mxu0
      %1829 = vdwg.mxu0
      %1830 = vmatprep.subr.bf16.mxu0 0
      %1831 = vmatpush1.bf16.msra.mxu0 %v1664
      %1832 = vmatprep.subr.bf16.mxu0 0
      %1833 = vmatpush1.bf16.msra.mxu0 0
      %1834 = vmatprep.subr.bf16.mxu0 0
      %1835 = vmatpush1.bf16.msra.mxu0 0
      %1836 = vmatprep.subr.bf16.mxu0 0
      %1837 = vmatpush1.bf16.msra.mxu0 0
      %1838 = vmatprep.subr.bf16.mxu0 0
      %1839 = vmatpush1.bf16.msra.mxu0 0
      %1840 = vmatprep.subr.bf16.mxu0 0
      %1841 = vmatpush1.bf16.msra.mxu0 0
      %1842 = vmatprep.subr.bf16.mxu0 0
      %1843 = vmatpush1.bf16.msra.mxu0 0
      %1844 = vmatprep.subr.bf16.mxu0 0
      %1845 = vmatpush1.bf16.msra.mxu0 0
      %1846 = vmatprep.subr.bf16.mxu0 0
      %1847 = vmatpush1.bf16.msra.mxu0 0
      %1848 = vmatprep.subr.bf16.mxu0 0
      %1849 = vmatpush1.bf16.msra.mxu0 0
      %1850 = vmatprep.subr.bf16.mxu0 0
      %1851 = vmatpush1.bf16.msra.mxu0 0
      %1852 = vmatprep.subr.bf16.mxu0 0
      %1853 = vmatpush1.bf16.msra.mxu0 0
      %1854 = vmatprep.subr.bf16.mxu0 0
      %1855 = vmatpush1.bf16.msra.mxu0 0
      %1856 = vmatprep.subr.bf16.mxu0 0
      %1857 = vmatpush1.bf16.msra.mxu0 0
      %1858 = vmatprep.subr.bf16.mxu0 0
      %1859 = vmatpush1.bf16.msra.mxu0 0
      %1860 = vmatprep.subr.bf16.mxu0 0
      %1861 = vmatpush1.bf16.msra.mxu0 0
      %1862 = vmatprep.mubr.bf16.mxu0 0
      %1863 = vmatmul.mubr.bf16.gmra.mrb[0].mxu0 %v1637
      %v1864 = vpop.f32.mrb[0].mxu0
      %v1865 = vadd.f32 0.0, %v1864
      %v1866 = vpop.f32.mrb[0].mxu0
      %v1867 = vpop.f32.mrb[0].mxu0
      %v1868 = vpop.f32.mrb[0].mxu0
      %1869 = vdwg.mxu0
      %v1870 = vadd.f32 %v1598, %v1701
      %v1871 = vadd.f32 %v1599, %v1703
      %v1872 = vadd.f32 %v1600, %v1742
      %v1873 = vadd.f32 %v1601, %v1744
      %v1874 = vadd.f32 %v1602, %v1783
      %v1875 = vadd.f32 %v1603, %v1785
      %v1876 = vadd.f32 %v1604, %v1824
      %v1877 = vadd.f32 %v1605, %v1826
      %v1878 = vadd.f32 %v1606, %v1865
      %s1879 = scalar_lea.vmem %s0, 24
      %v1880 = vld [vmem:[%s1879] sm:$0xf]
      %v1881 = vld [vmem:[%s247] sm:$0xff]
      %v1882 = vld [vmem:[%s247 + $0x8] sm:$0xff]
      %v1883 = vld [vmem:[%s247 + $0x10] sm:$0xff]
      %v1884 = vld [vmem:[%s247 + $0x18] sm:$0xff]
      %v1885 = vld [vmem:[%s247 + $0x20] sm:$0xff]
      %v1891 = vunpack.c.l.b16 %v1881
      %v1892 = vunpack.c.h.b16 %v1881
      %v1893 = vunpack.c.l.b16 %v1882
      %v1894 = vunpack.c.h.b16 %v1882
      %v1895 = vunpack.c.l.b16 %v1883
      %v1896 = vunpack.c.h.b16 %v1883
      %v1897 = vunpack.c.l.b16 %v1884
      %v1898 = vunpack.c.h.b16 %v1884
      %v1899 = vunpack.c.l.b16 %v1885
      %v1900 = vunpack.c.h.b16 %v1885
      %v1901 = vpack.c.b16 %v1891, %v1891
      %v1902 = vpack.c.b16 %v1892, %v1892
      %v1903 = vpack.c.b16 %v1893, %v1893
      %v1904 = vpack.c.b16 %v1894, %v1894
      %v1905 = vpack.c.b16 %v1895, %v1895
      %v1906 = vpack.c.b16 %v1896, %v1896
      %v1907 = vpack.c.b16 %v1897, %v1897
      %v1908 = vpack.c.b16 %v1898, %v1898
      %v1909 = vpack.c.b16 %v1899, %v1899
      %v1910 = vpack.c.b16 %v1900, %v1900
      %1911 = vrot.lane.b32.xlu0 %v1901, 60
      %v1912 = vpop.permute.xlu0 %1911
      %1913 = vrot.lane.b32.xlu0 %v1902, 60
      %v1914 = vpop.permute.xlu0 %1913
      %1915 = vrot.lane.b32.xlu0 %v1903, 60
      %v1916 = vpop.permute.xlu0 %1915
      %1917 = vrot.lane.b32.xlu0 %v1904, 60
      %v1918 = vpop.permute.xlu0 %1917
      %1919 = vrot.lane.b32.xlu0 %v1905, 60
      %v1920 = vpop.permute.xlu0 %1919
      %1921 = vrot.lane.b32.xlu0 %v1906, 60
      %v1922 = vpop.permute.xlu0 %1921
      %1923 = vrot.lane.b32.xlu0 %v1907, 60
      %v1924 = vpop.permute.xlu0 %1923
      %1925 = vrot.lane.b32.xlu0 %v1908, 60
      %v1926 = vpop.permute.xlu0 %1925
      %1927 = vrot.lane.b32.xlu0 %v1909, 60
      %v1928 = vpop.permute.xlu0 %1927
      %1929 = vrot.lane.b32.xlu0 %v1910, 60
      %v1930 = vpop.permute.xlu0 %1929
      %vm1931 = vcmask 490496
      %v1932 = vsel %vm1931, %v1912, %v1914
      %v1933 = vsel %vm1931, %v1914, %v1916
      %v1934 = vsel %vm1931, %v1916, %v1918
      %v1935 = vsel %vm1931, %v1918, %v1920
      %v1936 = vsel %vm1931, %v1920, %v1922
      %v1937 = vsel %vm1931, %v1922, %v1924
      %v1938 = vsel %vm1931, %v1924, %v1926
      %v1939 = vsel %vm1931, %v1926, %v1928
      %v1940 = vsel %vm1931, %v1928, %v1930
      %v1942 = vsel %vm321, %v1880, 0
      %v1945 = vsel %vm325, %v1932, 0
      %v1948 = vsel %vm325, %v1933, 0
      %v1951 = vsel %vm325, %v1934, 0
      %v1954 = vsel %vm325, %v1935, 0
      %v1957 = vsel %vm325, %v1936, 0
      %v1960 = vsel %vm325, %v1937, 0
      %v1963 = vsel %vm325, %v1938, 0
      %v1966 = vsel %vm325, %v1939, 0
      %v1969 = vsel %vm325, %v1940, 0
      %1971 = vmatprep.subr.bf16.mxu0 %v1948
      %1972 = vmatpush1.bf16.msra.mxu0 %v1945
      %1973 = vmatprep.subr.bf16.mxu0 0
      %1974 = vmatpush1.bf16.msra.mxu0 0
      %1975 = vmatprep.subr.bf16.mxu0 0
      %1976 = vmatpush1.bf16.msra.mxu0 0
      %1977 = vmatprep.subr.bf16.mxu0 0
      %1978 = vmatpush1.bf16.msra.mxu0 0
      %1979 = vmatprep.subr.bf16.mxu0 0
      %1980 = vmatpush1.bf16.msra.mxu0 0
      %1981 = vmatprep.subr.bf16.mxu0 0
      %1982 = vmatpush1.bf16.msra.mxu0 0
      %1983 = vmatprep.subr.bf16.mxu0 0
      %1984 = vmatpush1.bf16.msra.mxu0 0
      %1985 = vmatprep.subr.bf16.mxu0 0
      %1986 = vmatpush1.bf16.msra.mxu0 0
      %1987 = vmatprep.subr.bf16.mxu0 0
      %1988 = vmatpush1.bf16.msra.mxu0 0
      %1989 = vmatprep.subr.bf16.mxu0 0
      %1990 = vmatpush1.bf16.msra.mxu0 0
      %1991 = vmatprep.subr.bf16.mxu0 0
      %1992 = vmatpush1.bf16.msra.mxu0 0
      %1993 = vmatprep.subr.bf16.mxu0 0
      %1994 = vmatpush1.bf16.msra.mxu0 0
      %1995 = vmatprep.subr.bf16.mxu0 0
      %1996 = vmatpush1.bf16.msra.mxu0 0
      %1997 = vmatprep.subr.bf16.mxu0 0
      %1998 = vmatpush1.bf16.msra.mxu0 0
      %1999 = vmatprep.subr.bf16.mxu0 0
      %2000 = vmatpush1.bf16.msra.mxu0 0
      %2001 = vmatprep.subr.bf16.mxu0 0
      %2002 = vmatpush1.bf16.msra.mxu0 0
      %2003 = vmatprep.mubr.bf16.mxu0 0
      %2004 = vmatmul.mubr.bf16.gmra.mrb[0].mxu0 %v1942
      %v2005 = vpop.f32.mrb[0].mxu0
      %v2006 = vadd.f32 0.0, %v2005
      %v2007 = vpop.f32.mrb[0].mxu0
      %v2008 = vadd.f32 0.0, %v2007
      %v2009 = vpop.f32.mrb[0].mxu0
      %v2010 = vpop.f32.mrb[0].mxu0
      %2011 = vdwg.mxu0
      %2012 = vmatprep.subr.bf16.mxu0 %v1954
      %2013 = vmatpush1.bf16.msra.mxu0 %v1951
      %2014 = vmatprep.subr.bf16.mxu0 0
      %2015 = vmatpush1.bf16.msra.mxu0 0
      %2016 = vmatprep.subr.bf16.mxu0 0
      %2017 = vmatpush1.bf16.msra.mxu0 0
      %2018 = vmatprep.subr.bf16.mxu0 0
      %2019 = vmatpush1.bf16.msra.mxu0 0
      %2020 = vmatprep.subr.bf16.mxu0 0
      %2021 = vmatpush1.bf16.msra.mxu0 0
      %2022 = vmatprep.subr.bf16.mxu0 0
      %2023 = vmatpush1.bf16.msra.mxu0 0
      %2024 = vmatprep.subr.bf16.mxu0 0
      %2025 = vmatpush1.bf16.msra.mxu0 0
      %2026 = vmatprep.subr.bf16.mxu0 0
      %2027 = vmatpush1.bf16.msra.mxu0 0
      %2028 = vmatprep.subr.bf16.mxu0 0
      %2029 = vmatpush1.bf16.msra.mxu0 0
      %2030 = vmatprep.subr.bf16.mxu0 0
      %2031 = vmatpush1.bf16.msra.mxu0 0
      %2032 = vmatprep.subr.bf16.mxu0 0
      %2033 = vmatpush1.bf16.msra.mxu0 0
      %2034 = vmatprep.subr.bf16.mxu0 0
      %2035 = vmatpush1.bf16.msra.mxu0 0
      %2036 = vmatprep.subr.bf16.mxu0 0
      %2037 = vmatpush1.bf16.msra.mxu0 0
      %2038 = vmatprep.subr.bf16.mxu0 0
      %2039 = vmatpush1.bf16.msra.mxu0 0
      %2040 = vmatprep.subr.bf16.mxu0 0
      %2041 = vmatpush1.bf16.msra.mxu0 0
      %2042 = vmatprep.subr.bf16.mxu0 0
      %2043 = vmatpush1.bf16.msra.mxu0 0
      %2044 = vmatprep.mubr.bf16.mxu0 0
      %2045 = vmatmul.mubr.bf16.gmra.mrb[0].mxu0 %v1942
      %v2046 = vpop.f32.mrb[0].mxu0
      %v2047 = vadd.f32 0.0, %v2046
      %v2048 = vpop.f32.mrb[0].mxu0
      %v2049 = vadd.f32 0.0, %v2048
      %v2050 = vpop.f32.mrb[0].mxu0
      %v2051 = vpop.f32.mrb[0].mxu0
      %2052 = vdwg.mxu0
      %2053 = vmatprep.subr.bf16.mxu0 %v1960
      %2054 = vmatpush1.bf16.msra.mxu0 %v1957
      %2055 = vmatprep.subr.bf16.mxu0 0
      %2056 = vmatpush1.bf16.msra.mxu0 0
      %2057 = vmatprep.subr.bf16.mxu0 0
      %2058 = vmatpush1.bf16.msra.mxu0 0
      %2059 = vmatprep.subr.bf16.mxu0 0
      %2060 = vmatpush1.bf16.msra.mxu0 0
      %2061 = vmatprep.subr.bf16.mxu0 0
      %2062 = vmatpush1.bf16.msra.mxu0 0
      %2063 = vmatprep.subr.bf16.mxu0 0
      %2064 = vmatpush1.bf16.msra.mxu0 0
      %2065 = vmatprep.subr.bf16.mxu0 0
      %2066 = vmatpush1.bf16.msra.mxu0 0
      %2067 = vmatprep.subr.bf16.mxu0 0
      %2068 = vmatpush1.bf16.msra.mxu0 0
      %2069 = vmatprep.subr.bf16.mxu0 0
      %2070 = vmatpush1.bf16.msra.mxu0 0
      %2071 = vmatprep.subr.bf16.mxu0 0
      %2072 = vmatpush1.bf16.msra.mxu0 0
      %2073 = vmatprep.subr.bf16.mxu0 0
      %2074 = vmatpush1.bf16.msra.mxu0 0
      %2075 = vmatprep.subr.bf16.mxu0 0
      %2076 = vmatpush1.bf16.msra.mxu0 0
      %2077 = vmatprep.subr.bf16.mxu0 0
      %2078 = vmatpush1.bf16.msra.mxu0 0
      %2079 = vmatprep.subr.bf16.mxu0 0
      %2080 = vmatpush1.bf16.msra.mxu0 0
      %2081 = vmatprep.subr.bf16.mxu0 0
      %2082 = vmatpush1.bf16.msra.mxu0 0
      %2083 = vmatprep.subr.bf16.mxu0 0
      %2084 = vmatpush1.bf16.msra.mxu0 0
      %2085 = vmatprep.mubr.bf16.mxu0 0
      %2086 = vmatmul.mubr.bf16.gmra.mrb[0].mxu0 %v1942
      %v2087 = vpop.f32.mrb[0].mxu0
      %v2088 = vadd.f32 0.0, %v2087
      %v2089 = vpop.f32.mrb[0].mxu0
      %v2090 = vadd.f32 0.0, %v2089
      %v2091 = vpop.f32.mrb[0].mxu0
      %v2092 = vpop.f32.mrb[0].mxu0
      %2093 = vdwg.mxu0
      %2094 = vmatprep.subr.bf16.mxu0 %v1966
      %2095 = vmatpush1.bf16.msra.mxu0 %v1963
      %2096 = vmatprep.subr.bf16.mxu0 0
      %2097 = vmatpush1.bf16.msra.mxu0 0
      %2098 = vmatprep.subr.bf16.mxu0 0
      %2099 = vmatpush1.bf16.msra.mxu0 0
      %2100 = vmatprep.subr.bf16.mxu0 0
      %2101 = vmatpush1.bf16.msra.mxu0 0
      %2102 = vmatprep.subr.bf16.mxu0 0
      %2103 = vmatpush1.bf16.msra.mxu0 0
      %2104 = vmatprep.subr.bf16.mxu0 0
      %2105 = vmatpush1.bf16.msra.mxu0 0
      %2106 = vmatprep.subr.bf16.mxu0 0
      %2107 = vmatpush1.bf16.msra.mxu0 0
      %2108 = vmatprep.subr.bf16.mxu0 0
      %2109 = vmatpush1.bf16.msra.mxu0 0
      %2110 = vmatprep.subr.bf16.mxu0 0
      %2111 = vmatpush1.bf16.msra.mxu0 0
      %2112 = vmatprep.subr.bf16.mxu0 0
      %2113 = vmatpush1.bf16.msra.mxu0 0
      %2114 = vmatprep.subr.bf16.mxu0 0
      %2115 = vmatpush1.bf16.msra.mxu0 0
      %2116 = vmatprep.subr.bf16.mxu0 0
      %2117 = vmatpush1.bf16.msra.mxu0 0
      %2118 = vmatprep.subr.bf16.mxu0 0
      %2119 = vmatpush1.bf16.msra.mxu0 0
      %2120 = vmatprep.subr.bf16.mxu0 0
      %2121 = vmatpush1.bf16.msra.mxu0 0
      %2122 = vmatprep.subr.bf16.mxu0 0
      %2123 = vmatpush1.bf16.msra.mxu0 0
      %2124 = vmatprep.subr.bf16.mxu0 0
      %2125 = vmatpush1.bf16.msra.mxu0 0
      %2126 = vmatprep.mubr.bf16.mxu0 0
      %2127 = vmatmul.mubr.bf16.gmra.mrb[0].mxu0 %v1942
      %v2128 = vpop.f32.mrb[0].mxu0
      %v2129 = vadd.f32 0.0, %v2128
      %v2130 = vpop.f32.mrb[0].mxu0
      %v2131 = vadd.f32 0.0, %v2130
      %v2132 = vpop.f32.mrb[0].mxu0
      %v2133 = vpop.f32.mrb[0].mxu0
      %2134 = vdwg.mxu0
      %2135 = vmatprep.subr.bf16.mxu0 0
      %2136 = vmatpush1.bf16.msra.mxu0 %v1969
      %2137 = vmatprep.subr.bf16.mxu0 0
      %2138 = vmatpush1.bf16.msra.mxu0 0
      %2139 = vmatprep.subr.bf16.mxu0 0
      %2140 = vmatpush1.bf16.msra.mxu0 0
      %2141 = vmatprep.subr.bf16.mxu0 0
      %2142 = vmatpush1.bf16.msra.mxu0 0
      %2143 = vmatprep.subr.bf16.mxu0 0
      %2144 = vmatpush1.bf16.msra.mxu0 0
      %2145 = vmatprep.subr.bf16.mxu0 0
      %2146 = vmatpush1.bf16.msra.mxu0 0
      %2147 = vmatprep.subr.bf16.mxu0 0
      %2148 = vmatpush1.bf16.msra.mxu0 0
      %2149 = vmatprep.subr.bf16.mxu0 0
      %2150 = vmatpush1.bf16.msra.mxu0 0
      %2151 = vmatprep.subr.bf16.mxu0 0
      %2152 = vmatpush1.bf16.msra.mxu0 0
      %2153 = vmatprep.subr.bf16.mxu0 0
      %2154 = vmatpush1.bf16.msra.mxu0 0
      %2155 = vmatprep.subr.bf16.mxu0 0
      %2156 = vmatpush1.bf16.msra.mxu0 0
      %2157 = vmatprep.subr.bf16.mxu0 0
      %2158 = vmatpush1.bf16.msra.mxu0 0
      %2159 = vmatprep.subr.bf16.mxu0 0
      %2160 = vmatpush1.bf16.msra.mxu0 0
      %2161 = vmatprep.subr.bf16.mxu0 0
      %2162 = vmatpush1.bf16.msra.mxu0 0
      %2163 = vmatprep.subr.bf16.mxu0 0
      %2164 = vmatpush1.bf16.msra.mxu0 0
      %2165 = vmatprep.subr.bf16.mxu0 0
      %2166 = vmatpush1.bf16.msra.mxu0 0
      %2167 = vmatprep.mubr.bf16.mxu0 0
      %2168 = vmatmul.mubr.bf16.gmra.mrb[0].mxu0 %v1942
      %v2169 = vpop.f32.mrb[0].mxu0
      %v2170 = vadd.f32 0.0, %v2169
      %v2171 = vpop.f32.mrb[0].mxu0
      %v2172 = vpop.f32.mrb[0].mxu0
      %v2173 = vpop.f32.mrb[0].mxu0
      %2174 = vdwg.mxu0
      %v2175 = vadd.f32 %v1870, %v2006
      %v2176 = vadd.f32 %v1871, %v2008
      %v2177 = vadd.f32 %v1872, %v2047
      %v2178 = vadd.f32 %v1873, %v2049
      %v2179 = vadd.f32 %v1874, %v2088
      %v2180 = vadd.f32 %v1875, %v2090
      %v2181 = vadd.f32 %v1876, %v2129
      %v2182 = vadd.f32 %v1877, %v2131
      %v2183 = vadd.f32 %v1878, %v2170
      %s2184 = scalar_lea.vmem %s0, 28
      %v2185 = vld [vmem:[%s2184] sm:$0xf]
      %2186 = vrot.lane.b32.xlu0 %v1901, 59
      %v2187 = vpop.permute.xlu0 %2186
      %2188 = vrot.lane.b32.xlu0 %v1902, 59
      %v2189 = vpop.permute.xlu0 %2188
      %2190 = vrot.lane.b32.xlu0 %v1903, 59
      %v2191 = vpop.permute.xlu0 %2190
      %2192 = vrot.lane.b32.xlu0 %v1904, 59
      %v2193 = vpop.permute.xlu0 %2192
      %2194 = vrot.lane.b32.xlu0 %v1905, 59
      %v2195 = vpop.permute.xlu0 %2194
      %2196 = vrot.lane.b32.xlu0 %v1906, 59
      %v2197 = vpop.permute.xlu0 %2196
      %2198 = vrot.lane.b32.xlu0 %v1907, 59
      %v2199 = vpop.permute.xlu0 %2198
      %2200 = vrot.lane.b32.xlu0 %v1908, 59
      %v2201 = vpop.permute.xlu0 %2200
      %2202 = vrot.lane.b32.xlu0 %v1909, 59
      %v2203 = vpop.permute.xlu0 %2202
      %2204 = vrot.lane.b32.xlu0 %v1910, 59
      %v2205 = vpop.permute.xlu0 %2204
      %vm2206 = vcmask 482304
      %v2207 = vsel %vm2206, %v2187, %v2189
      %v2208 = vsel %vm2206, %v2189, %v2191
      %v2209 = vsel %vm2206, %v2191, %v2193
      %v2210 = vsel %vm2206, %v2193, %v2195
      %v2211 = vsel %vm2206, %v2195, %v2197
      %v2212 = vsel %vm2206, %v2197, %v2199
      %v2213 = vsel %vm2206, %v2199, %v2201
      %v2214 = vsel %vm2206, %v2201, %v2203
      %v2215 = vsel %vm2206, %v2203, %v2205
      %v2217 = vsel %vm321, %v2185, 0
      %v2220 = vsel %vm325, %v2207, 0
      %v2223 = vsel %vm325, %v2208, 0
      %v2226 = vsel %vm325, %v2209, 0
      %v2229 = vsel %vm325, %v2210, 0
      %v2232 = vsel %vm325, %v2211, 0
      %v2235 = vsel %vm325, %v2212, 0
      %v2238 = vsel %vm325, %v2213, 0
      %v2241 = vsel %vm325, %v2214, 0
      %v2244 = vsel %vm325, %v2215, 0
      %2246 = vmatprep.subr.bf16.mxu0 %v2223
      %2247 = vmatpush1.bf16.msra.mxu0 %v2220
      %2248 = vmatprep.subr.bf16.mxu0 0
      %2249 = vmatpush1.bf16.msra.mxu0 0
      %2250 = vmatprep.subr.bf16.mxu0 0
      %2251 = vmatpush1.bf16.msra.mxu0 0
      %2252 = vmatprep.subr.bf16.mxu0 0
      %2253 = vmatpush1.bf16.msra.mxu0 0
      %2254 = vmatprep.subr.bf16.mxu0 0
      %2255 = vmatpush1.bf16.msra.mxu0 0
      %2256 = vmatprep.subr.bf16.mxu0 0
      %2257 = vmatpush1.bf16.msra.mxu0 0
      %2258 = vmatprep.subr.bf16.mxu0 0
      %2259 = vmatpush1.bf16.msra.mxu0 0
      %2260 = vmatprep.subr.bf16.mxu0 0
      %2261 = vmatpush1.bf16.msra.mxu0 0
      %2262 = vmatprep.subr.bf16.mxu0 0
      %2263 = vmatpush1.bf16.msra.mxu0 0
      %2264 = vmatprep.subr.bf16.mxu0 0
      %2265 = vmatpush1.bf16.msra.mxu0 0
      %2266 = vmatprep.subr.bf16.mxu0 0
      %2267 = vmatpush1.bf16.msra.mxu0 0
      %2268 = vmatprep.subr.bf16.mxu0 0
      %2269 = vmatpush1.bf16.msra.mxu0 0
      %2270 = vmatprep.subr.bf16.mxu0 0
      %2271 = vmatpush1.bf16.msra.mxu0 0
      %2272 = vmatprep.subr.bf16.mxu0 0
      %2273 = vmatpush1.bf16.msra.mxu0 0
      %2274 = vmatprep.subr.bf16.mxu0 0
      %2275 = vmatpush1.bf16.msra.mxu0 0
      %2276 = vmatprep.subr.bf16.mxu0 0
      %2277 = vmatpush1.bf16.msra.mxu0 0
      %2278 = vmatprep.mubr.bf16.mxu0 0
      %2279 = vmatmul.mubr.bf16.gmra.mrb[0].mxu0 %v2217
      %v2280 = vpop.f32.mrb[0].mxu0
      %v2281 = vadd.f32 0.0, %v2280
      %v2282 = vpop.f32.mrb[0].mxu0
      %v2283 = vadd.f32 0.0, %v2282
      %v2284 = vpop.f32.mrb[0].mxu0
      %v2285 = vpop.f32.mrb[0].mxu0
      %2286 = vdwg.mxu0
      %2287 = vmatprep.subr.bf16.mxu0 %v2229
      %2288 = vmatpush1.bf16.msra.mxu0 %v2226
      %2289 = vmatprep.subr.bf16.mxu0 0
      %2290 = vmatpush1.bf16.msra.mxu0 0
      %2291 = vmatprep.subr.bf16.mxu0 0
      %2292 = vmatpush1.bf16.msra.mxu0 0
      %2293 = vmatprep.subr.bf16.mxu0 0
      %2294 = vmatpush1.bf16.msra.mxu0 0
      %2295 = vmatprep.subr.bf16.mxu0 0
      %2296 = vmatpush1.bf16.msra.mxu0 0
      %2297 = vmatprep.subr.bf16.mxu0 0
      %2298 = vmatpush1.bf16.msra.mxu0 0
      %2299 = vmatprep.subr.bf16.mxu0 0
      %2300 = vmatpush1.bf16.msra.mxu0 0
      %2301 = vmatprep.subr.bf16.mxu0 0
      %2302 = vmatpush1.bf16.msra.mxu0 0
      %2303 = vmatprep.subr.bf16.mxu0 0
      %2304 = vmatpush1.bf16.msra.mxu0 0
      %2305 = vmatprep.subr.bf16.mxu0 0
      %2306 = vmatpush1.bf16.msra.mxu0 0
      %2307 = vmatprep.subr.bf16.mxu0 0
      %2308 = vmatpush1.bf16.msra.mxu0 0
      %2309 = vmatprep.subr.bf16.mxu0 0
      %2310 = vmatpush1.bf16.msra.mxu0 0
      %2311 = vmatprep.subr.bf16.mxu0 0
      %2312 = vmatpush1.bf16.msra.mxu0 0
      %2313 = vmatprep.subr.bf16.mxu0 0
      %2314 = vmatpush1.bf16.msra.mxu0 0
      %2315 = vmatprep.subr.bf16.mxu0 0
      %2316 = vmatpush1.bf16.msra.mxu0 0
      %2317 = vmatprep.subr.bf16.mxu0 0
      %2318 = vmatpush1.bf16.msra.mxu0 0
      %2319 = vmatprep.mubr.bf16.mxu0 0
      %2320 = vmatmul.mubr.bf16.gmra.mrb[0].mxu0 %v2217
      %v2321 = vpop.f32.mrb[0].mxu0
      %v2322 = vadd.f32 0.0, %v2321
      %v2323 = vpop.f32.mrb[0].mxu0
      %v2324 = vadd.f32 0.0, %v2323
      %v2325 = vpop.f32.mrb[0].mxu0
      %v2326 = vpop.f32.mrb[0].mxu0
      %2327 = vdwg.mxu0
      %2328 = vmatprep.subr.bf16.mxu0 %v2235
      %2329 = vmatpush1.bf16.msra.mxu0 %v2232
      %2330 = vmatprep.subr.bf16.mxu0 0
      %2331 = vmatpush1.bf16.msra.mxu0 0
      %2332 = vmatprep.subr.bf16.mxu0 0
      %2333 = vmatpush1.bf16.msra.mxu0 0
      %2334 = vmatprep.subr.bf16.mxu0 0
      %2335 = vmatpush1.bf16.msra.mxu0 0
      %2336 = vmatprep.subr.bf16.mxu0 0
      %2337 = vmatpush1.bf16.msra.mxu0 0
      %2338 = vmatprep.subr.bf16.mxu0 0
      %2339 = vmatpush1.bf16.msra.mxu0 0
      %2340 = vmatprep.subr.bf16.mxu0 0
      %2341 = vmatpush1.bf16.msra.mxu0 0
      %2342 = vmatprep.subr.bf16.mxu0 0
      %2343 = vmatpush1.bf16.msra.mxu0 0
      %2344 = vmatprep.subr.bf16.mxu0 0
      %2345 = vmatpush1.bf16.msra.mxu0 0
      %2346 = vmatprep.subr.bf16.mxu0 0
      %2347 = vmatpush1.bf16.msra.mxu0 0
      %2348 = vmatprep.subr.bf16.mxu0 0
      %2349 = vmatpush1.bf16.msra.mxu0 0
      %2350 = vmatprep.subr.bf16.mxu0 0
      %2351 = vmatpush1.bf16.msra.mxu0 0
      %2352 = vmatprep.subr.bf16.mxu0 0
      %2353 = vmatpush1.bf16.msra.mxu0 0
      %2354 = vmatprep.subr.bf16.mxu0 0
      %2355 = vmatpush1.bf16.msra.mxu0 0
      %2356 = vmatprep.subr.bf16.mxu0 0
      %2357 = vmatpush1.bf16.msra.mxu0 0
      %2358 = vmatprep.subr.bf16.mxu0 0
      %2359 = vmatpush1.bf16.msra.mxu0 0
      %2360 = vmatprep.mubr.bf16.mxu0 0
      %2361 = vmatmul.mubr.bf16.gmra.mrb[0].mxu0 %v2217
      %v2362 = vpop.f32.mrb[0].mxu0
      %v2363 = vadd.f32 0.0, %v2362
      %v2364 = vpop.f32.mrb[0].mxu0
      %v2365 = vadd.f32 0.0, %v2364
      %v2366 = vpop.f32.mrb[0].mxu0
      %v2367 = vpop.f32.mrb[0].mxu0
      %2368 = vdwg.mxu0
      %2369 = vmatprep.subr.bf16.mxu0 %v2241
      %2370 = vmatpush1.bf16.msra.mxu0 %v2238
      %2371 = vmatprep.subr.bf16.mxu0 0
      %2372 = vmatpush1.bf16.msra.mxu0 0
      %2373 = vmatprep.subr.bf16.mxu0 0
      %2374 = vmatpush1.bf16.msra.mxu0 0
      %2375 = vmatprep.subr.bf16.mxu0 0
      %2376 = vmatpush1.bf16.msra.mxu0 0
      %2377 = vmatprep.subr.bf16.mxu0 0
      %2378 = vmatpush1.bf16.msra.mxu0 0
      %2379 = vmatprep.subr.bf16.mxu0 0
      %2380 = vmatpush1.bf16.msra.mxu0 0
      %2381 = vmatprep.subr.bf16.mxu0 0
      %2382 = vmatpush1.bf16.msra.mxu0 0
      %2383 = vmatprep.subr.bf16.mxu0 0
      %2384 = vmatpush1.bf16.msra.mxu0 0
      %2385 = vmatprep.subr.bf16.mxu0 0
      %2386 = vmatpush1.bf16.msra.mxu0 0
      %2387 = vmatprep.subr.bf16.mxu0 0
      %2388 = vmatpush1.bf16.msra.mxu0 0
      %2389 = vmatprep.subr.bf16.mxu0 0
      %2390 = vmatpush1.bf16.msra.mxu0 0
      %2391 = vmatprep.subr.bf16.mxu0 0
      %2392 = vmatpush1.bf16.msra.mxu0 0
      %2393 = vmatprep.subr.bf16.mxu0 0
      %2394 = vmatpush1.bf16.msra.mxu0 0
      %2395 = vmatprep.subr.bf16.mxu0 0
      %2396 = vmatpush1.bf16.msra.mxu0 0
      %2397 = vmatprep.subr.bf16.mxu0 0
      %2398 = vmatpush1.bf16.msra.mxu0 0
      %2399 = vmatprep.subr.bf16.mxu0 0
      %2400 = vmatpush1.bf16.msra.mxu0 0
      %2401 = vmatprep.mubr.bf16.mxu0 0
      %2402 = vmatmul.mubr.bf16.gmra.mrb[0].mxu0 %v2217
      %v2403 = vpop.f32.mrb[0].mxu0
      %v2404 = vadd.f32 0.0, %v2403
      %v2405 = vpop.f32.mrb[0].mxu0
      %v2406 = vadd.f32 0.0, %v2405
      %v2407 = vpop.f32.mrb[0].mxu0
      %v2408 = vpop.f32.mrb[0].mxu0
      %2409 = vdwg.mxu0
      %2410 = vmatprep.subr.bf16.mxu0 0
      %2411 = vmatpush1.bf16.msra.mxu0 %v2244
      %2412 = vmatprep.subr.bf16.mxu0 0
      %2413 = vmatpush1.bf16.msra.mxu0 0
      %2414 = vmatprep.subr.bf16.mxu0 0
      %2415 = vmatpush1.bf16.msra.mxu0 0
      %2416 = vmatprep.subr.bf16.mxu0 0
      %2417 = vmatpush1.bf16.msra.mxu0 0
      %2418 = vmatprep.subr.bf16.mxu0 0
      %2419 = vmatpush1.bf16.msra.mxu0 0
      %2420 = vmatprep.subr.bf16.mxu0 0
      %2421 = vmatpush1.bf16.msra.mxu0 0
      %2422 = vmatprep.subr.bf16.mxu0 0
      %2423 = vmatpush1.bf16.msra.mxu0 0
      %2424 = vmatprep.subr.bf16.mxu0 0
      %2425 = vmatpush1.bf16.msra.mxu0 0
      %2426 = vmatprep.subr.bf16.mxu0 0
      %2427 = vmatpush1.bf16.msra.mxu0 0
      %2428 = vmatprep.subr.bf16.mxu0 0
      %2429 = vmatpush1.bf16.msra.mxu0 0
      %2430 = vmatprep.subr.bf16.mxu0 0
      %2431 = vmatpush1.bf16.msra.mxu0 0
      %2432 = vmatprep.subr.bf16.mxu0 0
      %2433 = vmatpush1.bf16.msra.mxu0 0
      %2434 = vmatprep.subr.bf16.mxu0 0
      %2435 = vmatpush1.bf16.msra.mxu0 0
      %2436 = vmatprep.subr.bf16.mxu0 0
      %2437 = vmatpush1.bf16.msra.mxu0 0
      %2438 = vmatprep.subr.bf16.mxu0 0
      %2439 = vmatpush1.bf16.msra.mxu0 0
      %2440 = vmatprep.subr.bf16.mxu0 0
      %2441 = vmatpush1.bf16.msra.mxu0 0
      %2442 = vmatprep.mubr.bf16.mxu0 0
      %2443 = vmatmul.mubr.bf16.gmra.mrb[0].mxu0 %v2217
      %v2444 = vpop.f32.mrb[0].mxu0
      %v2445 = vadd.f32 0.0, %v2444
      %v2446 = vpop.f32.mrb[0].mxu0
      %v2447 = vpop.f32.mrb[0].mxu0
      %v2448 = vpop.f32.mrb[0].mxu0
      %2449 = vdwg.mxu0
      %v2450 = vadd.f32 %v2175, %v2281
      %v2451 = vadd.f32 %v2176, %v2283
      %v2452 = vadd.f32 %v2177, %v2322
      %v2453 = vadd.f32 %v2178, %v2324
      %v2454 = vadd.f32 %v2179, %v2363
      %v2455 = vadd.f32 %v2180, %v2365
      %v2456 = vadd.f32 %v2181, %v2404
      %v2457 = vadd.f32 %v2182, %v2406
      %v2458 = vadd.f32 %v2183, %v2445
      %s2459 = scalar_lea.vmem %s0, 32
      %v2460 = vld [vmem:[%s2459] sm:$0xf]
      %2461 = vrot.lane.b32.xlu0 %v1901, 58
      %v2462 = vpop.permute.xlu0 %2461
      %2463 = vrot.lane.b32.xlu0 %v1902, 58
      %v2464 = vpop.permute.xlu0 %2463
      %2465 = vrot.lane.b32.xlu0 %v1903, 58
      %v2466 = vpop.permute.xlu0 %2465
      %2467 = vrot.lane.b32.xlu0 %v1904, 58
      %v2468 = vpop.permute.xlu0 %2467
      %2469 = vrot.lane.b32.xlu0 %v1905, 58
      %v2470 = vpop.permute.xlu0 %2469
      %2471 = vrot.lane.b32.xlu0 %v1906, 58
      %v2472 = vpop.permute.xlu0 %2471
      %2473 = vrot.lane.b32.xlu0 %v1907, 58
      %v2474 = vpop.permute.xlu0 %2473
      %2475 = vrot.lane.b32.xlu0 %v1908, 58
      %v2476 = vpop.permute.xlu0 %2475
      %2477 = vrot.lane.b32.xlu0 %v1909, 58
      %v2478 = vpop.permute.xlu0 %2477
      %2479 = vrot.lane.b32.xlu0 %v1910, 58
      %v2480 = vpop.permute.xlu0 %2479
      %vm2481 = vcmask 474112
      %v2482 = vsel %vm2481, %v2462, %v2464
      %v2483 = vsel %vm2481, %v2464, %v2466
      %v2484 = vsel %vm2481, %v2466, %v2468
      %v2485 = vsel %vm2481, %v2468, %v2470
      %v2486 = vsel %vm2481, %v2470, %v2472
      %v2487 = vsel %vm2481, %v2472, %v2474
      %v2488 = vsel %vm2481, %v2474, %v2476
      %v2489 = vsel %vm2481, %v2476, %v2478
      %v2490 = vsel %vm2481, %v2478, %v2480
      %v2492 = vsel %vm321, %v2460, 0
      %v2495 = vsel %vm325, %v2482, 0
      %v2498 = vsel %vm325, %v2483, 0
      %v2501 = vsel %vm325, %v2484, 0
      %v2504 = vsel %vm325, %v2485, 0
      %v2507 = vsel %vm325, %v2486, 0
      %v2510 = vsel %vm325, %v2487, 0
      %v2513 = vsel %vm325, %v2488, 0
      %v2516 = vsel %vm325, %v2489, 0
      %v2519 = vsel %vm325, %v2490, 0
      %2521 = vmatprep.subr.bf16.mxu0 %v2498
      %2522 = vmatpush1.bf16.msra.mxu0 %v2495
      %2523 = vmatprep.subr.bf16.mxu0 0
      %2524 = vmatpush1.bf16.msra.mxu0 0
      %2525 = vmatprep.subr.bf16.mxu0 0
      %2526 = vmatpush1.bf16.msra.mxu0 0
      %2527 = vmatprep.subr.bf16.mxu0 0
      %2528 = vmatpush1.bf16.msra.mxu0 0
      %2529 = vmatprep.subr.bf16.mxu0 0
      %2530 = vmatpush1.bf16.msra.mxu0 0
      %2531 = vmatprep.subr.bf16.mxu0 0
      %2532 = vmatpush1.bf16.msra.mxu0 0
      %2533 = vmatprep.subr.bf16.mxu0 0
      %2534 = vmatpush1.bf16.msra.mxu0 0
      %2535 = vmatprep.subr.bf16.mxu0 0
      %2536 = vmatpush1.bf16.msra.mxu0 0
      %2537 = vmatprep.subr.bf16.mxu0 0
      %2538 = vmatpush1.bf16.msra.mxu0 0
      %2539 = vmatprep.subr.bf16.mxu0 0
      %2540 = vmatpush1.bf16.msra.mxu0 0
      %2541 = vmatprep.subr.bf16.mxu0 0
      %2542 = vmatpush1.bf16.msra.mxu0 0
      %2543 = vmatprep.subr.bf16.mxu0 0
      %2544 = vmatpush1.bf16.msra.mxu0 0
      %2545 = vmatprep.subr.bf16.mxu0 0
      %2546 = vmatpush1.bf16.msra.mxu0 0
      %2547 = vmatprep.subr.bf16.mxu0 0
      %2548 = vmatpush1.bf16.msra.mxu0 0
      %2549 = vmatprep.subr.bf16.mxu0 0
      %2550 = vmatpush1.bf16.msra.mxu0 0
      %2551 = vmatprep.subr.bf16.mxu0 0
      %2552 = vmatpush1.bf16.msra.mxu0 0
      %2553 = vmatprep.mubr.bf16.mxu0 0
      %2554 = vmatmul.mubr.bf16.gmra.mrb[0].mxu0 %v2492
      %v2555 = vpop.f32.mrb[0].mxu0
      %v2556 = vadd.f32 0.0, %v2555
      %v2557 = vpop.f32.mrb[0].mxu0
      %v2558 = vadd.f32 0.0, %v2557
      %v2559 = vpop.f32.mrb[0].mxu0
      %v2560 = vpop.f32.mrb[0].mxu0
      %2561 = vdwg.mxu0
      %2562 = vmatprep.subr.bf16.mxu0 %v2504
      %2563 = vmatpush1.bf16.msra.mxu0 %v2501
      %2564 = vmatprep.subr.bf16.mxu0 0
      %2565 = vmatpush1.bf16.msra.mxu0 0
      %2566 = vmatprep.subr.bf16.mxu0 0
      %2567 = vmatpush1.bf16.msra.mxu0 0
      %2568 = vmatprep.subr.bf16.mxu0 0
      %2569 = vmatpush1.bf16.msra.mxu0 0
      %2570 = vmatprep.subr.bf16.mxu0 0
      %2571 = vmatpush1.bf16.msra.mxu0 0
      %2572 = vmatprep.subr.bf16.mxu0 0
      %2573 = vmatpush1.bf16.msra.mxu0 0
      %2574 = vmatprep.subr.bf16.mxu0 0
      %2575 = vmatpush1.bf16.msra.mxu0 0
      %2576 = vmatprep.subr.bf16.mxu0 0
      %2577 = vmatpush1.bf16.msra.mxu0 0
      %2578 = vmatprep.subr.bf16.mxu0 0
      %2579 = vmatpush1.bf16.msra.mxu0 0
      %2580 = vmatprep.subr.bf16.mxu0 0
      %2581 = vmatpush1.bf16.msra.mxu0 0
      %2582 = vmatprep.subr.bf16.mxu0 0
      %2583 = vmatpush1.bf16.msra.mxu0 0
      %2584 = vmatprep.subr.bf16.mxu0 0
      %2585 = vmatpush1.bf16.msra.mxu0 0
      %2586 = vmatprep.subr.bf16.mxu0 0
      %2587 = vmatpush1.bf16.msra.mxu0 0
      %2588 = vmatprep.subr.bf16.mxu0 0
      %2589 = vmatpush1.bf16.msra.mxu0 0
      %2590 = vmatprep.subr.bf16.mxu0 0
      %2591 = vmatpush1.bf16.msra.mxu0 0
      %2592 = vmatprep.subr.bf16.mxu0 0
      %2593 = vmatpush1.bf16.msra.mxu0 0
      %2594 = vmatprep.mubr.bf16.mxu0 0
      %2595 = vmatmul.mubr.bf16.gmra.mrb[0].mxu0 %v2492
      %v2596 = vpop.f32.mrb[0].mxu0
      %v2597 = vadd.f32 0.0, %v2596
      %v2598 = vpop.f32.mrb[0].mxu0
      %v2599 = vadd.f32 0.0, %v2598
      %v2600 = vpop.f32.mrb[0].mxu0
      %v2601 = vpop.f32.mrb[0].mxu0
      %2602 = vdwg.mxu0
      %2603 = vmatprep.subr.bf16.mxu0 %v2510
      %2604 = vmatpush1.bf16.msra.mxu0 %v2507
      %2605 = vmatprep.subr.bf16.mxu0 0
      %2606 = vmatpush1.bf16.msra.mxu0 0
      %2607 = vmatprep.subr.bf16.mxu0 0
      %2608 = vmatpush1.bf16.msra.mxu0 0
      %2609 = vmatprep.subr.bf16.mxu0 0
      %2610 = vmatpush1.bf16.msra.mxu0 0
      %2611 = vmatprep.subr.bf16.mxu0 0
      %2612 = vmatpush1.bf16.msra.mxu0 0
      %2613 = vmatprep.subr.bf16.mxu0 0
      %2614 = vmatpush1.bf16.msra.mxu0 0
      %2615 = vmatprep.subr.bf16.mxu0 0
      %2616 = vmatpush1.bf16.msra.mxu0 0
      %2617 = vmatprep.subr.bf16.mxu0 0
      %2618 = vmatpush1.bf16.msra.mxu0 0
      %2619 = vmatprep.subr.bf16.mxu0 0
      %2620 = vmatpush1.bf16.msra.mxu0 0
      %2621 = vmatprep.subr.bf16.mxu0 0
      %2622 = vmatpush1.bf16.msra.mxu0 0
      %2623 = vmatprep.subr.bf16.mxu0 0
      %2624 = vmatpush1.bf16.msra.mxu0 0
      %2625 = vmatprep.subr.bf16.mxu0 0
      %2626 = vmatpush1.bf16.msra.mxu0 0
      %2627 = vmatprep.subr.bf16.mxu0 0
      %2628 = vmatpush1.bf16.msra.mxu0 0
      %2629 = vmatprep.subr.bf16.mxu0 0
      %2630 = vmatpush1.bf16.msra.mxu0 0
      %2631 = vmatprep.subr.bf16.mxu0 0
      %2632 = vmatpush1.bf16.msra.mxu0 0
      %2633 = vmatprep.subr.bf16.mxu0 0
      %2634 = vmatpush1.bf16.msra.mxu0 0
      %2635 = vmatprep.mubr.bf16.mxu0 0
      %2636 = vmatmul.mubr.bf16.gmra.mrb[0].mxu0 %v2492
      %v2637 = vpop.f32.mrb[0].mxu0
      %v2638 = vadd.f32 0.0, %v2637
      %v2639 = vpop.f32.mrb[0].mxu0
      %v2640 = vadd.f32 0.0, %v2639
      %v2641 = vpop.f32.mrb[0].mxu0
      %v2642 = vpop.f32.mrb[0].mxu0
      %2643 = vdwg.mxu0
      %2644 = vmatprep.subr.bf16.mxu0 %v2516
      %2645 = vmatpush1.bf16.msra.mxu0 %v2513
      %2646 = vmatprep.subr.bf16.mxu0 0
      %2647 = vmatpush1.bf16.msra.mxu0 0
      %2648 = vmatprep.subr.bf16.mxu0 0
      %2649 = vmatpush1.bf16.msra.mxu0 0
      %2650 = vmatprep.subr.bf16.mxu0 0
      %2651 = vmatpush1.bf16.msra.mxu0 0
      %2652 = vmatprep.subr.bf16.mxu0 0
      %2653 = vmatpush1.bf16.msra.mxu0 0
      %2654 = vmatprep.subr.bf16.mxu0 0
      %2655 = vmatpush1.bf16.msra.mxu0 0
      %2656 = vmatprep.subr.bf16.mxu0 0
      %2657 = vmatpush1.bf16.msra.mxu0 0
      %2658 = vmatprep.subr.bf16.mxu0 0
      %2659 = vmatpush1.bf16.msra.mxu0 0
      %2660 = vmatprep.subr.bf16.mxu0 0
      %2661 = vmatpush1.bf16.msra.mxu0 0
      %2662 = vmatprep.subr.bf16.mxu0 0
      %2663 = vmatpush1.bf16.msra.mxu0 0
      %2664 = vmatprep.subr.bf16.mxu0 0
      %2665 = vmatpush1.bf16.msra.mxu0 0
      %2666 = vmatprep.subr.bf16.mxu0 0
      %2667 = vmatpush1.bf16.msra.mxu0 0
      %2668 = vmatprep.subr.bf16.mxu0 0
      %2669 = vmatpush1.bf16.msra.mxu0 0
      %2670 = vmatprep.subr.bf16.mxu0 0
      %2671 = vmatpush1.bf16.msra.mxu0 0
      %2672 = vmatprep.subr.bf16.mxu0 0
      %2673 = vmatpush1.bf16.msra.mxu0 0
      %2674 = vmatprep.subr.bf16.mxu0 0
      %2675 = vmatpush1.bf16.msra.mxu0 0
      %2676 = vmatprep.mubr.bf16.mxu0 0
      %2677 = vmatmul.mubr.bf16.gmra.mrb[0].mxu0 %v2492
      %v2678 = vpop.f32.mrb[0].mxu0
      %v2679 = vadd.f32 0.0, %v2678
      %v2680 = vpop.f32.mrb[0].mxu0
      %v2681 = vadd.f32 0.0, %v2680
      %v2682 = vpop.f32.mrb[0].mxu0
      %v2683 = vpop.f32.mrb[0].mxu0
      %2684 = vdwg.mxu0
      %2685 = vmatprep.subr.bf16.mxu0 0
      %2686 = vmatpush1.bf16.msra.mxu0 %v2519
      %2687 = vmatprep.subr.bf16.mxu0 0
      %2688 = vmatpush1.bf16.msra.mxu0 0
      %2689 = vmatprep.subr.bf16.mxu0 0
      %2690 = vmatpush1.bf16.msra.mxu0 0
      %2691 = vmatprep.subr.bf16.mxu0 0
      %2692 = vmatpush1.bf16.msra.mxu0 0
      %2693 = vmatprep.subr.bf16.mxu0 0
      %2694 = vmatpush1.bf16.msra.mxu0 0
      %2695 = vmatprep.subr.bf16.mxu0 0
      %2696 = vmatpush1.bf16.msra.mxu0 0
      %2697 = vmatprep.subr.bf16.mxu0 0
      %2698 = vmatpush1.bf16.msra.mxu0 0
      %2699 = vmatprep.subr.bf16.mxu0 0
      %2700 = vmatpush1.bf16.msra.mxu0 0
      %2701 = vmatprep.subr.bf16.mxu0 0
      %2702 = vmatpush1.bf16.msra.mxu0 0
      %2703 = vmatprep.subr.bf16.mxu0 0
      %2704 = vmatpush1.bf16.msra.mxu0 0
      %2705 = vmatprep.subr.bf16.mxu0 0
      %2706 = vmatpush1.bf16.msra.mxu0 0
      %2707 = vmatprep.subr.bf16.mxu0 0
      %2708 = vmatpush1.bf16.msra.mxu0 0
      %2709 = vmatprep.subr.bf16.mxu0 0
      %2710 = vmatpush1.bf16.msra.mxu0 0
      %2711 = vmatprep.subr.bf16.mxu0 0
      %2712 = vmatpush1.bf16.msra.mxu0 0
      %2713 = vmatprep.subr.bf16.mxu0 0
      %2714 = vmatpush1.bf16.msra.mxu0 0
      %2715 = vmatprep.subr.bf16.mxu0 0
      %2716 = vmatpush1.bf16.msra.mxu0 0
      %2717 = vmatprep.mubr.bf16.mxu0 0
      %2718 = vmatmul.mubr.bf16.gmra.mrb[0].mxu0 %v2492
      %v2719 = vpop.f32.mrb[0].mxu0
      %v2720 = vadd.f32 0.0, %v2719
      %v2721 = vpop.f32.mrb[0].mxu0
      %v2722 = vpop.f32.mrb[0].mxu0
      %v2723 = vpop.f32.mrb[0].mxu0
      %2724 = vdwg.mxu0
      %v2725 = vadd.f32 %v2450, %v2556
      %v2726 = vadd.f32 %v2451, %v2558
      %v2727 = vadd.f32 %v2452, %v2597
      %v2728 = vadd.f32 %v2453, %v2599
      %v2729 = vadd.f32 %v2454, %v2638
      %v2730 = vadd.f32 %v2455, %v2640
      %v2731 = vadd.f32 %v2456, %v2679
      %v2732 = vadd.f32 %v2457, %v2681
      %v2733 = vadd.f32 %v2458, %v2720
      %v2734 = vld [vmem:[%s251] sm:$0xff]
      %2736 = vset.pattern.permute.xlu0 0
      %2737 = vperm.xlu0 %2736, %v2734
      %v2738 = vpop.permute.xlu0 %2737
      %v2740 = vmul.f32 %v2725, %v2738
      %v2741 = vmul.f32 %v2726, %v2738
      %v2742 = vmul.f32 %v2727, %v2738
      %v2743 = vmul.f32 %v2728, %v2738
      %v2744 = vmul.f32 %v2729, %v2738
      %v2745 = vmul.f32 %v2730, %v2738
      %v2746 = vmul.f32 %v2731, %v2738
      %v2747 = vmul.f32 %v2732, %v2738
      %v2748 = vmul.f32 %v2733, %v2738
      %v2749 = vld [vmem:[%s3] sm:$0xff]
      %2751 = vset.pattern.permute.xlu0 0
      %2752 = vperm.xlu0 %2751, %v2749
      %v2753 = vpop.permute.xlu0 %2752
      %v2755 = vadd.f32 %v2740, %v2753
      %v2756 = vadd.f32 %v2741, %v2753
      %v2757 = vadd.f32 %v2742, %v2753
      %v2758 = vadd.f32 %v2743, %v2753
      %v2759 = vadd.f32 %v2744, %v2753
      %v2760 = vadd.f32 %v2745, %v2753
      %v2761 = vadd.f32 %v2746, %v2753
      %v2762 = vadd.f32 %v2747, %v2753
      %v2763 = vadd.f32 %v2748, %v2753
      %vm2764 = vcmp.ge.f32.partialorder %v2755, 0.0
      %vm2765 = vcmp.ge.f32.partialorder %v2756, 0.0
      %vm2766 = vcmp.ge.f32.partialorder %v2757, 0.0
      %vm2767 = vcmp.ge.f32.partialorder %v2758, 0.0
      %vm2768 = vcmp.ge.f32.partialorder %v2759, 0.0
      %vm2769 = vcmp.ge.f32.partialorder %v2760, 0.0
      %vm2770 = vcmp.ge.f32.partialorder %v2761, 0.0
      %vm2771 = vcmp.ge.f32.partialorder %v2762, 0.0
      %vm2772 = vcmp.ge.f32.partialorder %v2763, 0.0
      %v2773 = vmul.f32 %v2755, 0.2
      %v2774 = vmul.f32 %v2756, 0.2
      %v2775 = vmul.f32 %v2757, 0.2
      %v2776 = vmul.f32 %v2758, 0.2
      %v2777 = vmul.f32 %v2759, 0.2
      %v2778 = vmul.f32 %v2760, 0.2
      %v2779 = vmul.f32 %v2761, 0.2
      %v2780 = vmul.f32 %v2762, 0.2
      %v2781 = vmul.f32 %v2763, 0.2
      %v2782 = vsel %vm2764, %v2755, %v2773
      %v2783 = vsel %vm2765, %v2756, %v2774
      %v2784 = vsel %vm2766, %v2757, %v2775
      %v2785 = vsel %vm2767, %v2758, %v2776
      %v2786 = vsel %vm2768, %v2759, %v2777
      %v2787 = vsel %vm2769, %v2760, %v2778
      %v2788 = vsel %vm2770, %v2761, %v2779
      %v2789 = vsel %vm2771, %v2762, %v2780
      %v2790 = vsel %vm2772, %v2763, %v2781
      %v2791 = vld [vmem:[%s256] sm:$0xff]
      %v2792 = vld [vmem:[%s256 + $0x8] sm:$0xff]
      %v2793 = vld [vmem:[%s256 + $0x10] sm:$0xff]
      %v2794 = vld [vmem:[%s256 + $0x18] sm:$0xff]
      %v2795 = vld [vmem:[%s256 + $0x20] sm:$0xff]
      %v2796 = vld [vmem:[%s256 + $0x28] sm:$0xff]
      %v2797 = vld [vmem:[%s256 + $0x30] sm:$0xff]
      %v2798 = vld [vmem:[%s256 + $0x38] sm:$0xff]
      %v2799 = vld [vmem:[%s256 + $0x40] sm:$0xff]
      %v2800 = vmul.f32 %v2791, 0.70710677
      %v2801 = vmul.f32 %v2792, 0.70710677
      %v2802 = vmul.f32 %v2793, 0.70710677
      %v2803 = vmul.f32 %v2794, 0.70710677
      %v2804 = vmul.f32 %v2795, 0.70710677
      %v2805 = vmul.f32 %v2796, 0.70710677
      %v2806 = vmul.f32 %v2797, 0.70710677
      %v2807 = vmul.f32 %v2798, 0.70710677
      %v2808 = vmul.f32 %v2799, 0.70710677
      %v2809 = vadd.f32 %v2800, %v2782
      %v2810 = vadd.f32 %v2801, %v2783
      %v2811 = vadd.f32 %v2802, %v2784
      %v2812 = vadd.f32 %v2803, %v2785
      %v2813 = vadd.f32 %v2804, %v2786
      %v2814 = vadd.f32 %v2805, %v2787
      %v2815 = vadd.f32 %v2806, %v2788
      %v2816 = vadd.f32 %v2807, %v2789
      %v2817 = vadd.f32 %v2808, %v2790
      %2818 = vst [vmem:[%s261] sm:$0xff] %v2809
      %2819 = vst [vmem:[%s261 + $0x8] sm:$0xff] %v2810
      %2820 = vst [vmem:[%s261 + $0x10] sm:$0xff] %v2811
      %2821 = vst [vmem:[%s261 + $0x18] sm:$0xff] %v2812
      %2822 = vst [vmem:[%s261 + $0x20] sm:$0xff] %v2813
      %2823 = vst [vmem:[%s261 + $0x28] sm:$0xff] %v2814
      %2824 = vst [vmem:[%s261 + $0x30] sm:$0xff] %v2815
      %2825 = vst [vmem:[%s261 + $0x38] sm:$0xff] %v2816
      %vm2826 = vcmask 523264
      %2827 = vst.msk [vmem:[%s261 + $0x40] sm:$0xff] %vm2826, %v2817
      %p2828 = scmp.lt.s32.totalorder %s16, 1
      %s2829 = scalar_select %p2828, %s16, 1
      %s2830 = smul.addr %s2829, 9
      %s2831 = smul.addr %s2830, 8
      %s2832 = scalar_lea.vmem %s5, %s2831
      // Predicated region
      $region41: #{upsampling_resnet_block.5} parent=39 // pred_check
        %p2833 = pneg %p154
      $region42: #{upsampling_resnet_block.5} parent=39 // pred_check_branch
        %2835 = sbr.rel (%p2833) target = $region44
      $region43: #{upsampling_resnet_block.5} parent=39 // pred_region
        _
      $region44: #{upsampling_resnet_block.5} parent=39 // pred_fallthru
        _
    $region40: #{upsampling_resnet_block.5} parent=5 // pred_fallthru
      _
    %p2836 = scmp.le.s32.totalorder 2, %s11
    // Predicated region
    $region45: #{upsampling_resnet_block.5} parent=5 // pred_check
      %p2837 = pneg %p2836
    $region46: #{upsampling_resnet_block.5} parent=5 // pred_check_branch
      %2839 = sbr.rel (%p2837) target = $region48
    $region47: #{upsampling_resnet_block.5} parent=5 // pred_region
      %s2840 = ssub.s32 %s11, 2
      // Predicated region
      $region49: #{upsampling_resnet_block.5} parent=47 // pred_check
        %p2841 = pneg %p160
      $region50: #{upsampling_resnet_block.5} parent=47 // pred_check_branch
        %2843 = sbr.rel (%p2841) target = $region52
      $region51: #{upsampling_resnet_block.5} parent=47 // pred_region
        %p2844 = scmp.lt.s32.totalorder %s17, 1
        %s2845 = scalar_select %p2844, %s17, 1
        %s2846 = smul.addr %s2845, 9
        %s2847 = smul.addr %s2846, 8
        %s2848 = scalar_lea.vmem %s5, %s2847
      $region52: #{upsampling_resnet_block.5} parent=47 // pred_fallthru
        _
    $region48: #{upsampling_resnet_block.5} parent=5 // pred_fallthru
      _
  $region6: #{upsampling_resnet_block.5} parent=0 // loop_footer
    %s15 = sadd.s32 1, %s11
  $region7: #{upsampling_resnet_block.5} parent=0 // loop_footer_branch
    %10 = sbr.rel target = $region3
  $region8: #{upsampling_resnet_block.5} parent=0 // loop_exit
    _

</llo_original>
